<compile_context>
chip_gen: v7x
topology: tpu7x:2x2x1
jax: 0.10.0
libtpu: 0.0.40
codegen_flags: <defaults>
</compile_context>

<pallas_src>
import functools
import math

import jax
import jax.numpy as jnp
from jax import lax
from jax.experimental import pallas as pl
from jax.experimental.pallas import tpu as pltpu


_MXU_DTYPE = jnp.bfloat16              # MXU operand dtype (accumulation is always f32)
_ACT_DTYPE = jnp.bfloat16              # inter-kernel activation dtype (q/k/v/y)
_NEG_INF = -1e30                       # finite "minus inf": robust to fully-masked rows
_VMEM_LIMIT_BYTES = 48 * 1024 * 1024   # explicit scoped-VMEM limit (<= v7x 64 MiB w/ headroom)


# ------------------------------ tile helpers --------------------------------

def _tile_second_minor(dim, cap):
    """Largest multiple of 8 <= cap that divides dim (sublane axis); else full extent."""
    t = (min(cap, dim) // 8) * 8
    while t >= 8:
        if dim % t == 0:
            return t
        t -= 8
    return dim


def _tile_minor(dim, cap):
    """Largest multiple of 128 <= cap that divides dim (lane axis); else full extent."""
    t = (min(cap, dim) // 128) * 128
    while t >= 128:
        if dim % t == 0:
            return t
        t -= 128
    return dim


# ----------------------------- Pallas kernels ------------------------------

def _fused_linear_kernel(x_ref, *rest):
    """y_i = x @ W_i + b_i for i in range(n), tiled over (M, N, K).

    rest = (w_0..w_{n-1}, b_0..b_{n-1}, o_0..o_{n-1}, acc_0..acc_{n-1}).
    MXU operands are bf16; accumulation and bias-add are f32.
    """
    n = len(rest) // 4
    w_refs = rest[:n]
    b_refs = rest[n:2 * n]
    o_refs = rest[2 * n:3 * n]
    acc_refs = rest[3 * n:]

    kk = pl.program_id(2)

    @pl.when(kk == 0)
    def _init():
        for acc in acc_refs:
            acc[...] = jnp.zeros_like(acc)

    x = x_ref[...].astype(_MXU_DTYPE)
    for w_ref, acc in zip(w_refs, acc_refs):
        acc[...] += jnp.dot(x, w_ref[...].astype(_MXU_DTYPE),
                            preferred_element_type=jnp.float32)

    @pl.when(kk == pl.num_programs(2) - 1)
    def _finalize():
        for acc, b_ref, o_ref in zip(acc_refs, b_refs, o_refs):
            o_ref[...] = (acc[...] + b_ref[...].astype(jnp.float32)).astype(o_ref.dtype)


def _flash_attn_kernel(n_head, qi_ref, ki_ref, q_ref, k_ref, v_ref, o_ref,
                       m_scr, l_scr, acc_scr):
    """Causal flash attention on lane-dense (1, tile, C) blocks; heads split in-kernel.

    Grid = (B, n_tri_steps); the second axis walks only the live lower-triangular
    (qi, ki) tile pairs (qi_ref/ki_ref are the prefetched tile schedules in SMEM).
    q/k/v/o refs: (1, tq, C) with tq == tk; m_scr/l_scr: (tq, n_head) f32;
    acc_scr: (tq, C) f32.
    """
    t = pl.program_id(1)
    qi = qi_ref[t]
    ki = ki_ref[t]

    tq = q_ref.shape[1]
    tk = k_ref.shape[1]
    c = q_ref.shape[2]
    d = c // n_head
    scale = 1.0 / math.sqrt(d)

    @pl.when(ki == 0)
    def _init():
        m_scr[...] = jnp.full_like(m_scr, _NEG_INF)
        l_scr[...] = jnp.zeros_like(l_scr)
        acc_scr[...] = jnp.zeros_like(acc_scr)

    # Fold the 1/sqrt(d) scale into q once per tile (shared by all heads), cast once for MXU.
    q_all = (q_ref[0] * scale).astype(_MXU_DTYPE)       # (tq, C)
    k_all = k_ref[0].astype(_MXU_DTYPE)                 # (tk, C)
    v_all = v_ref[0].astype(_MXU_DTYPE)                 # (tk, C)

    def _heads_update(masked):
        if masked:
            # Diagonal tile only (tq == tk and qi == ki): local lower-triangular mask.
            rows = lax.broadcasted_iota(jnp.int32, (tq, tk), 0)
            cols = lax.broadcasted_iota(jnp.int32, (tq, tk), 1)
            keep = cols <= rows
        for h in range(n_head):
            sl = slice(h * d, (h + 1) * d)
            # 'qd,kd->qk': contract head_dim directly, no explicit transpose of k.
            s = lax.dot_general(q_all[:, sl], k_all[:, sl],
                                (((1,), (1,)), ((), ())),
                                preferred_element_type=jnp.float32)
            if masked:
                s = jnp.where(keep, s, _NEG_INF)

            m_prev = m_scr[:, h:h + 1]                                    # (tq, 1)
            l_prev = l_scr[:, h:h + 1]
            m_new = jnp.maximum(m_prev, jnp.max(s, axis=-1, keepdims=True))
            alpha = jnp.exp(m_prev - m_new)
            p = jnp.exp(s - m_new)                                        # (tq, tk) f32

            l_scr[:, h:h + 1] = alpha * l_prev + jnp.sum(p, axis=-1, keepdims=True)
            acc_scr[:, sl] = alpha * acc_scr[:, sl] + jnp.dot(
                p.astype(_MXU_DTYPE), v_all[:, sl], preferred_element_type=jnp.float32)
            m_scr[:, h:h + 1] = m_new

    # Off-diagonal live tiles: fully unmasked -> no iota/compare/select work.
    @pl.when(ki < qi)
    def _off_diag():
        _heads_update(masked=False)

    # Diagonal tile: apply the causal mask; it is also the last KV step for this q tile,
    # so normalize in place and emit a single lane-dense (tq, C) store.
    @pl.when(ki == qi)
    def _diag_and_finalize():
        _heads_update(masked=True)
        inv_l = 1.0 / l_scr[...]                        # exact reciprocal, once per q tile
        for h in range(n_head):
            sl = slice(h * d, (h + 1) * d)
            acc_scr[:, sl] = acc_scr[:, sl] * inv_l[:, h:h + 1]
        o_ref[0] = acc_scr[...].astype(o_ref.dtype)     # one dense (tq, C) store


# ------------------------------- wrappers -----------------------------------

def pallas_fused_linear(x2d, weights, biases, out_dtype):
    """y_i = x2d @ weights[i] + biases[i].

    x2d: (M, K); weights[i]: (K, N) pre-transposed (bf16); biases[i]: (1, N) f32.
    Returns a tuple of (M, N) arrays of dtype out_dtype.
    """
    M, K = x2d.shape
    N = weights[0].shape[1]
    n = len(weights)

    tm = _tile_second_minor(M, 512)
    tn = _tile_minor(N, 768)
    tk = _tile_minor(K, 768)
    grid = (M // tm, N // tn, K // tk)

    x_spec = pl.BlockSpec((tm, tk), lambda i, j, k: (i, k))
    w_spec = pl.BlockSpec((tk, tn), lambda i, j, k: (k, j))
    b_spec = pl.BlockSpec((1, tn), lambda i, j, k: (0, j))
    o_spec = pl.BlockSpec((tm, tn), lambda i, j, k: (i, j))

    return pl.pallas_call(
        _fused_linear_kernel,
        out_shape=tuple(jax.ShapeDtypeStruct((M, N), out_dtype) for _ in range(n)),
        grid=grid,
        in_specs=[x_spec] + [w_spec] * n + [b_spec] * n,
        out_specs=tuple(o_spec for _ in range(n)),
        scratch_shapes=[pltpu.VMEM((tm, tn), jnp.float32) for _ in range(n)],
        compiler_params=pltpu.CompilerParams(
            dimension_semantics=("parallel", "parallel", "arbitrary"),
            vmem_limit_bytes=_VMEM_LIMIT_BYTES),
    )(x2d, *weights, *biases)


def pallas_flash_causal_attention(q, k, v, n_head):
    """q, k, v: (B, T, C) with C = n_head * head_dim -> (B, T, C) in _ACT_DTYPE."""
    B, T, C = q.shape
    tq = _tile_second_minor(T, 256)
    tk = tq                      # equal tiles -> the diagonal tile is exactly qi == ki
    nq = T // tq
    n_steps = nq * (nq + 1) // 2

    # Triangular (qi, ki) schedule: only live (causal) tiles get a grid step.
    qi_sched, ki_sched = [], []
    for qi in range(nq):
        for ki in range(qi + 1):
            qi_sched.append(qi)
            ki_sched.append(ki)
    qi_sched = jnp.array(qi_sched, dtype=jnp.int32)
    ki_sched = jnp.array(ki_sched, dtype=jnp.int32)

    q_spec = pl.BlockSpec((1, tq, C), lambda b, t, qi_r, ki_r: (b, qi_r[t], 0))
    kv_spec = pl.BlockSpec((1, tk, C), lambda b, t, qi_r, ki_r: (b, ki_r[t], 0))
    o_spec = pl.BlockSpec((1, tq, C), lambda b, t, qi_r, ki_r: (b, qi_r[t], 0))

    kernel = functools.partial(_flash_attn_kernel, n_head)
    return pl.pallas_call(
        kernel,
        out_shape=jax.ShapeDtypeStruct((B, T, C), _ACT_DTYPE),
        grid_spec=pltpu.PrefetchScalarGridSpec(
            num_scalar_prefetch=2,
            grid=(B, n_steps),
            in_specs=[q_spec, kv_spec, kv_spec],
            out_specs=o_spec,
            scratch_shapes=[
                pltpu.VMEM((tq, n_head), jnp.float32),   # running max m
                pltpu.VMEM((tq, n_head), jnp.float32),   # running denom l
                pltpu.VMEM((tq, C), jnp.float32),        # running output accumulator
            ]),
        compiler_params=pltpu.CompilerParams(
            dimension_semantics=("parallel", "arbitrary"),
            vmem_limit_bytes=_VMEM_LIMIT_BYTES),
    )(qi_sched, ki_sched, q, k, v)


def prepare_params(c_attn_w, c_attn_b, c_proj_w, c_proj_b, n_embd):
    """One-time parameter prep (outside hot path): transpose to (in, out), split QKV,
    and store weights in bf16 (biases stay f32 and are added to the f32 accumulator)."""
    C = n_embd
    w_attn_t = c_attn_w.T.astype(_MXU_DTYPE)            # (C, 3C), done once
    return {
        "wq": w_attn_t[:, :C],
        "wk": w_attn_t[:, C:2 * C],
        "wv": w_attn_t[:, 2 * C:],
        "bq": c_attn_b[:C].reshape(1, C).astype(jnp.float32),
        "bk": c_attn_b[C:2 * C].reshape(1, C).astype(jnp.float32),
        "bv": c_attn_b[2 * C:].reshape(1, C).astype(jnp.float32),
        "wo": c_proj_w.T.astype(_MXU_DTYPE),             # (C, C)
        "bo": c_proj_b.reshape(1, C).astype(jnp.float32),
    }


def causal_self_attention_short(x, params, n_head):
    """short_forward: QKV projection -> causal flash attention -> output projection."""
    B, T, C = x.shape
    x2d = x.reshape(B * T, C)                               # free reshape, no transpose

    q2d, k2d, v2d = pallas_fused_linear(
        x2d,
        [params["wq"], params["wk"], params["wv"]],
        [params["bq"], params["bk"], params["bv"]],
        out_dtype=_ACT_DTYPE)

    q = q2d.reshape(B, T, C)                                # free reshapes (row-major)
    k = k2d.reshape(B, T, C)
    v = v2d.reshape(B, T, C)

    y = pallas_flash_causal_attention(q, k, v, n_head)      # (B, T, C), lane-dense store

    (out2d,) = pallas_fused_linear(y.reshape(B * T, C), [params["wo"]], [params["bo"]],
                                   out_dtype=jnp.float32)
    return out2d.reshape(B, T, C)


def causal_self_attention_forward(x, params, n_head, moba_chunk_size, moba_topk):
    B, T, C = x.shape
    window_size = moba_chunk_size * moba_topk
    if T <= window_size:
        return causal_self_attention_short(x, params, n_head)
    # TODO(synk): moba_attn_varlen (long_forward MoBA branch) has no provided definition.
    raise NotImplementedError("MoBA long_forward path is not implemented")


# ------------------------------ reference ------------------------------------

def reference_forward(x, c_attn_w, c_attn_b, c_proj_w, c_proj_b, n_head):
    B, T, C = x.shape
    hd = C // n_head
    qkv = x.reshape(B * T, C) @ c_attn_w.T + c_attn_b
    qkv = qkv.reshape(B, T, 3 * C)
    q, k, v = qkv[..., :C], qkv[..., C:2 * C], qkv[..., 2 * C:]
    q = q.reshape(B, T, n_head, hd).transpose(0, 2, 1, 3)
    k = k.reshape(B, T, n_head, hd).transpose(0, 2, 1, 3)
    v = v.reshape(B, T, n_head, hd).transpose(0, 2, 1, 3)
    s = jnp.einsum("bhqd,bhkd->bhqk", q, k) / math.sqrt(hd)
    mask = jnp.tril(jnp.ones((T, T), dtype=bool))
    s = jnp.where(mask, s, -jnp.inf)
    p = jax.nn.softmax(s, axis=-1)
    y = jnp.einsum("bhqk,bhkd->bhqd", p, v)
    y = y.transpose(0, 2, 1, 3).reshape(B * T, C)
    y = y @ c_proj_w.T + c_proj_b
    return y.reshape(B, T, C)


# --------------------------------- main ---------------------------------------

if __name__ == "__main__":
    # Small config consistent with the module: n_embd % n_head == 0,
    # T <= moba_chunk_size * moba_topk  => short_forward path.
    B, T, C = 2, 16, 32
    n_head = 4
    moba_chunk_size, moba_topk = 8, 2          # window_size = 16 >= T

    key = jax.random.PRNGKey(0)
    kx, kw1, kb1, kw2, kb2 = jax.random.split(key, 5)

    x = jax.random.normal(kx, (B, T, C), dtype=jnp.float32)

    # Torch-style parameters: nn.Linear(C, 3C) weight (3C, C); nn.Linear(C, C) weight (C, C).
    c_attn_w = 0.02 * jax.random.normal(kw1, (3 * C, C), dtype=jnp.float32)
    c_attn_b = 0.01 * jax.random.normal(kb1, (3 * C,), dtype=jnp.float32)
    c_proj_w = 0.02 * jax.random.normal(kw2, (C, C), dtype=jnp.float32)
    c_proj_b = 0.01 * jax.random.normal(kb2, (C,), dtype=jnp.float32)

    params = prepare_params(c_attn_w, c_attn_b, c_proj_w, c_proj_b, C)

    fwd = jax.jit(causal_self_attention_forward,
                  static_argnames=("n_head", "moba_chunk_size", "moba_topk"))
    out = fwd(x, params, n_head=n_head,
              moba_chunk_size=moba_chunk_size, moba_topk=moba_topk)
    out = jax.block_until_ready(out)

    ref = reference_forward(x, c_attn_w, c_attn_b, c_proj_w, c_proj_b, n_head)
    assert out.shape == (B, T, C)
    # bf16 MXU operands + bf16 inter-kernel activations => bf16-level tolerance vs f32 ref.
    assert jnp.allclose(out, ref, atol=5e-3, rtol=5e-2), "mismatch vs reference"

    print("KERNEL_OK")
</pallas_src>

<mosaic_0001>
module attributes {stable_mosaic.version = 11 : i64} {
  func.func @_fused_linear_kernel(%arg0: i32, %arg1: i32, %arg2: i32, %arg3: memref<32x32xbf16, #tpu.memory_space<vmem>>, %arg4: memref<32x32xbf16, #tpu.memory_space<vmem>>, %arg5: memref<1x32xf32, #tpu.memory_space<vmem>>, %arg6: memref<32x32xf32, #tpu.memory_space<vmem>>, %arg7: memref<32x32xf32, #tpu.memory_space<vmem>>) attributes {dimension_semantics = [#tpu.dimension_semantics<parallel>, #tpu.dimension_semantics<parallel>, #tpu.dimension_semantics<arbitrary>], iteration_bounds = array<i64: 1, 1, 1>, scalar_prefetch = 0 : i64, scratch_operands = 1 : i64, tpu.core_type = #tpu.core_type<tc>, window_params = [{transform_indices = @transform_0, window_bounds = array<i64: 32, 32>}, {transform_indices = @transform_1, window_bounds = array<i64: 32, 32>}, {transform_indices = @transform_2, window_bounds = array<i64: 1, 32>}, {transform_indices = @transform_3, window_bounds = array<i64: 32, 32>}]} {
    %c0_i32 = arith.constant 0 : i32
    %0 = arith.cmpi eq, %arg2, %c0_i32 : i32
    %1 = arith.extui %0 : i1 to i32
    %c0_i32_0 = arith.constant 0 : i32
    %2 = arith.cmpi ne, %1, %c0_i32_0 : i32
    scf.if %2 {
      %cst_10 = arith.constant 0.000000e+00 : f32
      %12 = vector.broadcast %cst_10 : f32 to vector<32x32xf32>
      %c0_11 = arith.constant 0 : index
      %c0_12 = arith.constant 0 : index
      %13 = vector.load %arg7[%c0_11, %c0_12] : memref<32x32xf32, #tpu.memory_space<vmem>>, vector<32x32xf32>
      tpu.vector_store %arg7[%c0_11, %c0_12], %12 {strides = array<i32>} : memref<32x32xf32, #tpu.memory_space<vmem>>, vector<32x32xf32>,
    } else {
    }
    %c0 = arith.constant 0 : index
    %c0_1 = arith.constant 0 : index
    %3 = vector.load %arg3[%c0, %c0_1] : memref<32x32xbf16, #tpu.memory_space<vmem>>, vector<32x32xbf16>
    %c0_2 = arith.constant 0 : index
    %c0_3 = arith.constant 0 : index
    %4 = vector.load %arg7[%c0_2, %c0_3] : memref<32x32xf32, #tpu.memory_space<vmem>>, vector<32x32xf32>
    %c0_4 = arith.constant 0 : index
    %c0_5 = arith.constant 0 : index
    %5 = vector.load %arg4[%c0_4, %c0_5] : memref<32x32xbf16, #tpu.memory_space<vmem>>, vector<32x32xbf16>
    %cst = arith.constant dense<0.000000e+00> : vector<32x32xf32>
    %6 = tpu.matmul %3, %5, %cst {dimension_numbers = #tpu.dot_dimension_numbers<[1], [0], [0], [1], [0, 0, 1, 1], [], []>} : vector<32x32xbf16>, vector<32x32xbf16>, vector<32x32xf32> -> vector<32x32xf32>
    %7 = arith.addf %4, %6 : vector<32x32xf32>
    %c0_6 = arith.constant 0 : index
    %c0_7 = arith.constant 0 : index
    %8 = vector.load %arg7[%c0_6, %c0_7] : memref<32x32xf32, #tpu.memory_space<vmem>>, vector<32x32xf32>
    tpu.vector_store %arg7[%c0_6, %c0_7], %7 {strides = array<i32>} : memref<32x32xf32, #tpu.memory_space<vmem>>, vector<32x32xf32>,
    %c0_i32_8 = arith.constant 0 : i32
    %9 = arith.cmpi eq, %arg2, %c0_i32_8 : i32
    %10 = arith.extui %9 : i1 to i32
    %c0_i32_9 = arith.constant 0 : i32
    %11 = arith.cmpi ne, %10, %c0_i32_9 : i32
    scf.if %11 {
      %c0_10 = arith.constant 0 : index
      %c0_11 = arith.constant 0 : index
      %12 = vector.load %arg7[%c0_10, %c0_11] : memref<32x32xf32, #tpu.memory_space<vmem>>, vector<32x32xf32>
      %c0_12 = arith.constant 0 : index
      %c0_13 = arith.constant 0 : index
      %13 = vector.load %arg5[%c0_12, %c0_13] : memref<1x32xf32, #tpu.memory_space<vmem>>, vector<1x32xf32>
      %14 = vector.broadcast %13 : vector<1x32xf32> to vector<32x32xf32>
      %15 = arith.addf %12, %14 : vector<32x32xf32>
      %c0_14 = arith.constant 0 : index
      %c0_15 = arith.constant 0 : index
      %16 = vector.load %arg6[%c0_14, %c0_15] : memref<32x32xf32, #tpu.memory_space<vmem>>, vector<32x32xf32>
      tpu.vector_store %arg6[%c0_14, %c0_15], %15 {strides = array<i32>} : memref<32x32xf32, #tpu.memory_space<vmem>>, vector<32x32xf32>,
    } else {
    }
    return
  }
  func.func @transform_0(%arg0: i32, %arg1: i32, %arg2: i32) -> (i32, i32) {
    %c0_i32 = arith.constant 0 : i32
    return %arg0, %arg2 : i32, i32
  }
  func.func @transform_1(%arg0: i32, %arg1: i32, %arg2: i32) -> (i32, i32) {
    %c0_i32 = arith.constant 0 : i32
    return %arg2, %arg1 : i32, i32
  }
  func.func @transform_2(%arg0: i32, %arg1: i32, %arg2: i32) -> (i32, i32) {
    %c0_i32 = arith.constant 0 : i32
    %c0_i32_0 = arith.constant 0 : i32
    return %c0_i32, %arg1 : i32, i32
  }
  func.func @transform_3(%arg0: i32, %arg1: i32, %arg2: i32) -> (i32, i32) {
    %c0_i32 = arith.constant 0 : i32
    return %arg0, %arg1 : i32, i32
  }
}

module attributes {stable_mosaic.version = 11 : i64} {
  func.func @_fused_linear_kernel(%arg0: i32, %arg1: i32, %arg2: i32, %arg3: memref<32x32xf32, #tpu.memory_space<vmem>>, %arg4: memref<32x32xbf16, #tpu.memory_space<vmem>>, %arg5: memref<32x32xbf16, #tpu.memory_space<vmem>>, %arg6: memref<32x32xbf16, #tpu.memory_space<vmem>>, %arg7: memref<1x32xf32, #tpu.memory_space<vmem>>, %arg8: memref<1x32xf32, #tpu.memory_space<vmem>>, %arg9: memref<1x32xf32, #tpu.memory_space<vmem>>, %arg10: memref<32x32xbf16, #tpu.memory_space<vmem>>, %arg11: memref<32x32xbf16, #tpu.memory_space<vmem>>, %arg12: memref<32x32xbf16, #tpu.memory_space<vmem>>, %arg13: memref<32x32xf32, #tpu.memory_space<vmem>>, %arg14: memref<32x32xf32, #tpu.memory_space<vmem>>, %arg15: memref<32x32xf32, #tpu.memory_space<vmem>>) attributes {dimension_semantics = [#tpu.dimension_semantics<parallel>, #tpu.dimension_semantics<parallel>, #tpu.dimension_semantics<arbitrary>], iteration_bounds = array<i64: 1, 1, 1>, scalar_prefetch = 0 : i64, scratch_operands = 3 : i64, tpu.core_type = #tpu.core_type<tc>, window_params = [{transform_indices = @transform_0, window_bounds = array<i64: 32, 32>}, {transform_indices = @transform_1, window_bounds = array<i64: 32, 32>}, {transform_indices = @transform_2, window_bounds = array<i64: 32, 32>}, {transform_indices = @transform_3, window_bounds = array<i64: 32, 32>}, {transform_indices = @transform_4, window_bounds = array<i64: 1, 32>}, {transform_indices = @transform_5, window_bounds = array<i64: 1, 32>}, {transform_indices = @transform_6, window_bounds = array<i64: 1, 32>}, {transform_indices = @transform_7, window_bounds = array<i64: 32, 32>}, {transform_indices = @transform_8, window_bounds = array<i64: 32, 32>}, {transform_indices = @transform_9, window_bounds = array<i64: 32, 32>}]} {
    %c0_i32 = arith.constant 0 : i32
    %0 = arith.cmpi eq, %arg2, %c0_i32 : i32
    %1 = arith.extui %0 : i1 to i32
    %c0_i32_0 = arith.constant 0 : i32
    %2 = arith.cmpi ne, %1, %c0_i32_0 : i32
    scf.if %2 {
      %cst_24 = arith.constant 0.000000e+00 : f32
      %23 = vector.broadcast %cst_24 : f32 to vector<32x32xf32>
      %c0_25 = arith.constant 0 : index
      %c0_26 = arith.constant 0 : index
      %24 = vector.load %arg13[%c0_25, %c0_26] : memref<32x32xf32, #tpu.memory_space<vmem>>, vector<32x32xf32>
      tpu.vector_store %arg13[%c0_25, %c0_26], %23 {strides = array<i32>} : memref<32x32xf32, #tpu.memory_space<vmem>>, vector<32x32xf32>,
      %cst_27 = arith.constant 0.000000e+00 : f32
      %25 = vector.broadcast %cst_27 : f32 to vector<32x32xf32>
      %c0_28 = arith.constant 0 : index
      %c0_29 = arith.constant 0 : index
      %26 = vector.load %arg14[%c0_28, %c0_29] : memref<32x32xf32, #tpu.memory_space<vmem>>, vector<32x32xf32>
      tpu.vector_store %arg14[%c0_28, %c0_29], %25 {strides = array<i32>} : memref<32x32xf32, #tpu.memory_space<vmem>>, vector<32x32xf32>,
      %cst_30 = arith.constant 0.000000e+00 : f32
      %27 = vector.broadcast %cst_30 : f32 to vector<32x32xf32>
      %c0_31 = arith.constant 0 : index
      %c0_32 = arith.constant 0 : index
      %28 = vector.load %arg15[%c0_31, %c0_32] : memref<32x32xf32, #tpu.memory_space<vmem>>, vector<32x32xf32>
      tpu.vector_store %arg15[%c0_31, %c0_32], %27 {strides = array<i32>} : memref<32x32xf32, #tpu.memory_space<vmem>>, vector<32x32xf32>,
    } else {
    }
    %c0 = arith.constant 0 : index
    %c0_1 = arith.constant 0 : index
    %3 = vector.load %arg3[%c0, %c0_1] : memref<32x32xf32, #tpu.memory_space<vmem>>, vector<32x32xf32>
    %4 = arith.truncf %3 : vector<32x32xf32> to vector<32x32xbf16>
    %c0_2 = arith.constant 0 : index
    %c0_3 = arith.constant 0 : index
    %5 = vector.load %arg13[%c0_2, %c0_3] : memref<32x32xf32, #tpu.memory_space<vmem>>, vector<32x32xf32>
    %c0_4 = arith.constant 0 : index
    %c0_5 = arith.constant 0 : index
    %6 = vector.load %arg4[%c0_4, %c0_5] : memref<32x32xbf16, #tpu.memory_space<vmem>>, vector<32x32xbf16>
    %cst = arith.constant dense<0.000000e+00> : vector<32x32xf32>
    %7 = tpu.matmul %4, %6, %cst {dimension_numbers = #tpu.dot_dimension_numbers<[1], [0], [0], [1], [0, 0, 1, 1], [], []>} : vector<32x32xbf16>, vector<32x32xbf16>, vector<32x32xf32> -> vector<32x32xf32>
    %8 = arith.addf %5, %7 : vector<32x32xf32>
    %c0_6 = arith.constant 0 : index
    %c0_7 = arith.constant 0 : index
    %9 = vector.load %arg13[%c0_6, %c0_7] : memref<32x32xf32, #tpu.memory_space<vmem>>, vector<32x32xf32>
    tpu.vector_store %arg13[%c0_6, %c0_7], %8 {strides = array<i32>} : memref<32x32xf32, #tpu.memory_space<vmem>>, vector<32x32xf32>,
    %c0_8 = arith.constant 0 : index
    %c0_9 = arith.constant 0 : index
    %10 = vector.load %arg14[%c0_8, %c0_9] : memref<32x32xf32, #tpu.memory_space<vmem>>, vector<32x32xf32>
    %c0_10 = arith.constant 0 : index
    %c0_11 = arith.constant 0 : index
    %11 = vector.load %arg5[%c0_10, %c0_11] : memref<32x32xbf16, #tpu.memory_space<vmem>>, vector<32x32xbf16>
    %cst_12 = arith.constant dense<0.000000e+00> : vector<32x32xf32>
    %12 = tpu.matmul %4, %11, %cst_12 {dimension_numbers = #tpu.dot_dimension_numbers<[1], [0], [0], [1], [0, 0, 1, 1], [], []>} : vector<32x32xbf16>, vector<32x32xbf16>, vector<32x32xf32> -> vector<32x32xf32>
    %13 = arith.addf %10, %12 : vector<32x32xf32>
    %c0_13 = arith.constant 0 : index
    %c0_14 = arith.constant 0 : index
    %14 = vector.load %arg14[%c0_13, %c0_14] : memref<32x32xf32, #tpu.memory_space<vmem>>, vector<32x32xf32>
    tpu.vector_store %arg14[%c0_13, %c0_14], %13 {strides = array<i32>} : memref<32x32xf32, #tpu.memory_space<vmem>>, vector<32x32xf32>,
    %c0_15 = arith.constant 0 : index
    %c0_16 = arith.constant 0 : index
    %15 = vector.load %arg15[%c0_15, %c0_16] : memref<32x32xf32, #tpu.memory_space<vmem>>, vector<32x32xf32>
    %c0_17 = arith.constant 0 : index
    %c0_18 = arith.constant 0 : index
    %16 = vector.load %arg6[%c0_17, %c0_18] : memref<32x32xbf16, #tpu.memory_space<vmem>>, vector<32x32xbf16>
    %cst_19 = arith.constant dense<0.000000e+00> : vector<32x32xf32>
    %17 = tpu.matmul %4, %16, %cst_19 {dimension_numbers = #tpu.dot_dimension_numbers<[1], [0], [0], [1], [0, 0, 1, 1], [], []>} : vector<32x32xbf16>, vector<32x32xbf16>, vector<32x32xf32> -> vector<32x32xf32>
    %18 = arith.addf %15, %17 : vector<32x32xf32>
    %c0_20 = arith.constant 0 : index
    %c0_21 = arith.constant 0 : index
    %19 = vector.load %arg15[%c0_20, %c0_21] : memref<32x32xf32, #tpu.memory_space<vmem>>, vector<32x32xf32>
    tpu.vector_store %arg15[%c0_20, %c0_21], %18 {strides = array<i32>} : memref<32x32xf32, #tpu.memory_space<vmem>>, vector<32x32xf32>,
    %c0_i32_22 = arith.constant 0 : i32
    %20 = arith.cmpi eq, %arg2, %c0_i32_22 : i32
    %21 = arith.extui %20 : i1 to i32
    %c0_i32_23 = arith.constant 0 : i32
    %22 = arith.cmpi ne, %21, %c0_i32_23 : i32
    scf.if %22 {
      %c0_24 = arith.constant 0 : index
      %c0_25 = arith.constant 0 : index
      %23 = vector.load %arg13[%c0_24, %c0_25] : memref<32x32xf32, #tpu.memory_space<vmem>>, vector<32x32xf32>
      %c0_26 = arith.constant 0 : index
      %c0_27 = arith.constant 0 : index
      %24 = vector.load %arg7[%c0_26, %c0_27] : memref<1x32xf32, #tpu.memory_space<vmem>>, vector<1x32xf32>
      %25 = vector.broadcast %24 : vector<1x32xf32> to vector<32x32xf32>
      %26 = arith.addf %23, %25 : vector<32x32xf32>
      %27 = arith.truncf %26 : vector<32x32xf32> to vector<32x32xbf16>
      %c0_28 = arith.constant 0 : index
      %c0_29 = arith.constant 0 : index
      %28 = vector.load %arg10[%c0_28, %c0_29] : memref<32x32xbf16, #tpu.memory_space<vmem>>, vector<32x32xbf16>
      tpu.vector_store %arg10[%c0_28, %c0_29], %27 {strides = array<i32>} : memref<32x32xbf16, #tpu.memory_space<vmem>>, vector<32x32xbf16>,
      %c0_30 = arith.constant 0 : index
      %c0_31 = arith.constant 0 : index
      %29 = vector.load %arg14[%c0_30, %c0_31] : memref<32x32xf32, #tpu.memory_space<vmem>>, vector<32x32xf32>
      %c0_32 = arith.constant 0 : index
      %c0_33 = arith.constant 0 : index
      %30 = vector.load %arg8[%c0_32, %c0_33] : memref<1x32xf32, #tpu.memory_space<vmem>>, vector<1x32xf32>
      %31 = vector.broadcast %30 : vector<1x32xf32> to vector<32x32xf32>
      %32 = arith.addf %29, %31 : vector<32x32xf32>
      %33 = arith.truncf %32 : vector<32x32xf32> to vector<32x32xbf16>
      %c0_34 = arith.constant 0 : index
      %c0_35 = arith.constant 0 : index
      %34 = vector.load %arg11[%c0_34, %c0_35] : memref<32x32xbf16, #tpu.memory_space<vmem>>, vector<32x32xbf16>
      tpu.vector_store %arg11[%c0_34, %c0_35], %33 {strides = array<i32>} : memref<32x32xbf16, #tpu.memory_space<vmem>>, vector<32x32xbf16>,
      %c0_36 = arith.constant 0 : index
      %c0_37 = arith.constant 0 : index
      %35 = vector.load %arg15[%c0_36, %c0_37] : memref<32x32xf32, #tpu.memory_space<vmem>>, vector<32x32xf32>
      %c0_38 = arith.constant 0 : index
      %c0_39 = arith.constant 0 : index
      %36 = vector.load %arg9[%c0_38, %c0_39] : memref<1x32xf32, #tpu.memory_space<vmem>>, vector<1x32xf32>
      %37 = vector.broadcast %36 : vector<1x32xf32> to vector<32x32xf32>
      %38 = arith.addf %35, %37 : vector<32x32xf32>
      %39 = arith.truncf %38 : vector<32x32xf32> to vector<32x32xbf16>
      %c0_40 = arith.constant 0 : index
      %c0_41 = arith.constant 0 : index
      %40 = vector.load %arg12[%c0_40, %c0_41] : memref<32x32xbf16, #tpu.memory_space<vmem>>, vector<32x32xbf16>
      tpu.vector_store %arg12[%c0_40, %c0_41], %39 {strides = array<i32>} : memref<32x32xbf16, #tpu.memory_space<vmem>>, vector<32x32xbf16>,
    } else {
    }
    return
  }
  func.func @transform_0(%arg0: i32, %arg1: i32, %arg2: i32) -> (i32, i32) {
    %c0_i32 = arith.constant 0 : i32
    return %arg0, %arg2 : i32, i32
  }
  func.func @transform_1(%arg0: i32, %arg1: i32, %arg2: i32) -> (i32, i32) {
    %c0_i32 = arith.constant 0 : i32
    return %arg2, %arg1 : i32, i32
  }
  func.func @transform_2(%arg0: i32, %arg1: i32, %arg2: i32) -> (i32, i32) {
    %c0_i32 = arith.constant 0 : i32
    return %arg2, %arg1 : i32, i32
  }
  func.func @transform_3(%arg0: i32, %arg1: i32, %arg2: i32) -> (i32, i32) {
    %c0_i32 = arith.constant 0 : i32
    return %arg2, %arg1 : i32, i32
  }
  func.func @transform_4(%arg0: i32, %arg1: i32, %arg2: i32) -> (i32, i32) {
    %c0_i32 = arith.constant 0 : i32
    %c0_i32_0 = arith.constant 0 : i32
    return %c0_i32, %arg1 : i32, i32
  }
  func.func @transform_5(%arg0: i32, %arg1: i32, %arg2: i32) -> (i32, i32) {
    %c0_i32 = arith.constant 0 : i32
    %c0_i32_0 = arith.constant 0 : i32
    return %c0_i32, %arg1 : i32, i32
  }
  func.func @transform_6(%arg0: i32, %arg1: i32, %arg2: i32) -> (i32, i32) {
    %c0_i32 = arith.constant 0 : i32
    %c0_i32_0 = arith.constant 0 : i32
    return %c0_i32, %arg1 : i32, i32
  }
  func.func @transform_7(%arg0: i32, %arg1: i32, %arg2: i32) -> (i32, i32) {
    %c0_i32 = arith.constant 0 : i32
    return %arg0, %arg1 : i32, i32
  }
  func.func @transform_8(%arg0: i32, %arg1: i32, %arg2: i32) -> (i32, i32) {
    %c0_i32 = arith.constant 0 : i32
    return %arg0, %arg1 : i32, i32
  }
  func.func @transform_9(%arg0: i32, %arg1: i32, %arg2: i32) -> (i32, i32) {
    %c0_i32 = arith.constant 0 : i32
    return %arg0, %arg1 : i32, i32
  }
}

module attributes {stable_mosaic.version = 11 : i64} {
  func.func @_flash_attn_kernel(%arg0: i32, %arg1: i32, %arg2: memref<1xi32, #tpu.memory_space<smem>>, %arg3: memref<1xi32, #tpu.memory_space<smem>>, %arg4: memref<1x16x32xbf16, #tpu.memory_space<vmem>>, %arg5: memref<1x16x32xbf16, #tpu.memory_space<vmem>>, %arg6: memref<1x16x32xbf16, #tpu.memory_space<vmem>>, %arg7: memref<1x16x32xbf16, #tpu.memory_space<vmem>>, %arg8: memref<16x4xf32, #tpu.memory_space<vmem>>, %arg9: memref<16x4xf32, #tpu.memory_space<vmem>>, %arg10: memref<16x32xf32, #tpu.memory_space<vmem>>) attributes {dimension_semantics = [#tpu.dimension_semantics<parallel>, #tpu.dimension_semantics<arbitrary>], iteration_bounds = array<i64: 2, 1>, scalar_prefetch = 2 : i64, scratch_operands = 3 : i64, tpu.core_type = #tpu.core_type<tc>, window_params = [{transform_indices = @transform_0, window_bounds = array<i64: 1, 16, 32>}, {transform_indices = @transform_1, window_bounds = array<i64: 1, 16, 32>}, {transform_indices = @transform_2, window_bounds = array<i64: 1, 16, 32>}, {transform_indices = @transform_3, window_bounds = array<i64: 1, 16, 32>}]} {
    %0 = arith.index_cast %arg1 : i32 to index
    %1 = memref.load %arg2[%0] : memref<1xi32, #tpu.memory_space<smem>>
    %2 = arith.index_cast %arg1 : i32 to index
    %3 = memref.load %arg3[%2] : memref<1xi32, #tpu.memory_space<smem>>
    %c0_i32 = arith.constant 0 : i32
    %4 = arith.cmpi eq, %3, %c0_i32 : i32
    %5 = arith.extui %4 : i1 to i32
    %c0_i32_0 = arith.constant 0 : i32
    %6 = arith.cmpi ne, %5, %c0_i32_0 : i32
    scf.if %6 {
      %cst_11 = arith.constant -1.000000e+30 : f32
      %21 = vector.broadcast %cst_11 : f32 to vector<16x4xf32>
      %c0_12 = arith.constant 0 : index
      %c0_13 = arith.constant 0 : index
      %22 = vector.load %arg8[%c0_12, %c0_13] : memref<16x4xf32, #tpu.memory_space<vmem>>, vector<16x4xf32>
      tpu.vector_store %arg8[%c0_12, %c0_13], %21 {strides = array<i32>} : memref<16x4xf32, #tpu.memory_space<vmem>>, vector<16x4xf32>,
      %cst_14 = arith.constant 0.000000e+00 : f32
      %23 = vector.broadcast %cst_14 : f32 to vector<16x4xf32>
      %c0_15 = arith.constant 0 : index
      %c0_16 = arith.constant 0 : index
      %24 = vector.load %arg9[%c0_15, %c0_16] : memref<16x4xf32, #tpu.memory_space<vmem>>, vector<16x4xf32>
      tpu.vector_store %arg9[%c0_15, %c0_16], %23 {strides = array<i32>} : memref<16x4xf32, #tpu.memory_space<vmem>>, vector<16x4xf32>,
      %cst_17 = arith.constant 0.000000e+00 : f32
      %25 = vector.broadcast %cst_17 : f32 to vector<16x32xf32>
      %c0_18 = arith.constant 0 : index
      %c0_19 = arith.constant 0 : index
      %26 = vector.load %arg10[%c0_18, %c0_19] : memref<16x32xf32, #tpu.memory_space<vmem>>, vector<16x32xf32>
      tpu.vector_store %arg10[%c0_18, %c0_19], %25 {strides = array<i32>} : memref<16x32xf32, #tpu.memory_space<vmem>>, vector<16x32xf32>,
    } else {
    }
    %c0 = arith.constant 0 : index
    %c0_1 = arith.constant 0 : index
    %c0_2 = arith.constant 0 : index
    %7 = vector.load %arg4[%c0, %c0_1, %c0_2] : memref<1x16x32xbf16, #tpu.memory_space<vmem>>, vector<1x16x32xbf16>
    %8 = vector.shape_cast %7 : vector<1x16x32xbf16> to vector<16x32xbf16>
    %cst = arith.constant 3.535160e-01 : bf16
    %9 = vector.broadcast %cst : bf16 to vector<16x32xbf16>
    %10 = arith.mulf %8, %9 : vector<16x32xbf16>
    %c0_3 = arith.constant 0 : index
    %c0_4 = arith.constant 0 : index
    %c0_5 = arith.constant 0 : index
    %11 = vector.load %arg5[%c0_3, %c0_4, %c0_5] : memref<1x16x32xbf16, #tpu.memory_space<vmem>>, vector<1x16x32xbf16>
    %12 = vector.shape_cast %11 : vector<1x16x32xbf16> to vector<16x32xbf16>
    %c0_6 = arith.constant 0 : index
    %c0_7 = arith.constant 0 : index
    %c0_8 = arith.constant 0 : index
    %13 = vector.load %arg6[%c0_6, %c0_7, %c0_8] : memref<1x16x32xbf16, #tpu.memory_space<vmem>>, vector<1x16x32xbf16>
    %14 = vector.shape_cast %13 : vector<1x16x32xbf16> to vector<16x32xbf16>
    %15 = arith.cmpi slt, %3, %1 : i32
    %16 = arith.extui %15 : i1 to i32
    %c0_i32_9 = arith.constant 0 : i32
    %17 = arith.cmpi ne, %16, %c0_i32_9 : i32
    scf.if %17 {
      %21 = vector.extract_strided_slice %10 {offsets = [0, 0], sizes = [16, 8], strides = [1, 1]} : vector<16x32xbf16> to vector<16x8xbf16>
      %22 = vector.extract_strided_slice %12 {offsets = [0, 0], sizes = [16, 8], strides = [1, 1]} : vector<16x32xbf16> to vector<16x8xbf16>
      %cst_11 = arith.constant dense<0.000000e+00> : vector<16x16xf32>
      %23 = tpu.matmul %21, %22, %cst_11 {dimension_numbers = #tpu.dot_dimension_numbers<[1], [1], [0], [0], [0, 0, 1, 0], [], []>} : vector<16x8xbf16>, vector<16x8xbf16>, vector<16x16xf32> -> vector<16x16xf32>
      %c0_12 = arith.constant 0 : index
      %c0_13 = arith.constant 0 : index
      %24 = vector.load %arg8[%c0_12, %c0_13] : memref<16x4xf32, #tpu.memory_space<vmem>>, vector<16x1xf32>
      %c0_14 = arith.constant 0 : index
      %c0_15 = arith.constant 0 : index
      %25 = vector.load %arg9[%c0_14, %c0_15] : memref<16x4xf32, #tpu.memory_space<vmem>>, vector<16x1xf32>
      %cst_16 = arith.constant dense<0xFF800000> : vector<16xf32>
      %26 = vector.multi_reduction <maximumf>, %23, %cst_16 [1] : vector<16x16xf32> to vector<16xf32>
      %27 = vector.shape_cast %26 : vector<16xf32> to vector<16x1xf32>
      %28 = arith.maximumf %24, %27 : vector<16x1xf32>
      %29 = arith.subf %24, %28 : vector<16x1xf32>
      %30 = math.exp %29 : vector<16x1xf32>
      %31 = vector.broadcast %28 : vector<16x1xf32> to vector<16x16xf32>
      %32 = arith.subf %23, %31 : vector<16x16xf32>
      %33 = math.exp %32 : vector<16x16xf32>
      %34 = arith.mulf %30, %25 : vector<16x1xf32>
      %cst_17 = arith.constant dense<0.000000e+00> : vector<16xf32>
      %35 = vector.multi_reduction <add>, %33, %cst_17 [1] : vector<16x16xf32> to vector<16xf32>
      %36 = vector.shape_cast %35 : vector<16xf32> to vector<16x1xf32>
      %37 = arith.addf %34, %36 : vector<16x1xf32>
      %c0_18 = arith.constant 0 : index
      %c0_19 = arith.constant 0 : index
      %38 = vector.load %arg9[%c0_18, %c0_19] : memref<16x4xf32, #tpu.memory_space<vmem>>, vector<16x1xf32>
      tpu.vector_store %arg9[%c0_18, %c0_19], %37 {strides = array<i32>} : memref<16x4xf32, #tpu.memory_space<vmem>>, vector<16x1xf32>,
      %c0_20 = arith.constant 0 : index
      %c0_21 = arith.constant 0 : index
      %39 = vector.load %arg10[%c0_20, %c0_21] : memref<16x32xf32, #tpu.memory_space<vmem>>, vector<16x8xf32>
      %40 = vector.broadcast %30 : vector<16x1xf32> to vector<16x8xf32>
      %41 = arith.mulf %40, %39 : vector<16x8xf32>
      %42 = arith.truncf %33 : vector<16x16xf32> to vector<16x16xbf16>
      %43 = vector.extract_strided_slice %14 {offsets = [0, 0], sizes = [16, 8], strides = [1, 1]} : vector<16x32xbf16> to vector<16x8xbf16>
      %cst_22 = arith.constant dense<0.000000e+00> : vector<16x8xf32>
      %44 = tpu.matmul %42, %43, %cst_22 {dimension_numbers = #tpu.dot_dimension_numbers<[1], [0], [0], [1], [0, 0, 1, 1], [], []>} : vector<16x16xbf16>, vector<16x8xbf16>, vector<16x8xf32> -> vector<16x8xf32>
      %45 = arith.addf %41, %44 : vector<16x8xf32>
      %c0_23 = arith.constant 0 : index
      %c0_24 = arith.constant 0 : index
      %46 = vector.load %arg10[%c0_23, %c0_24] : memref<16x32xf32, #tpu.memory_space<vmem>>, vector<16x8xf32>
      tpu.vector_store %arg10[%c0_23, %c0_24], %45 {strides = array<i32>} : memref<16x32xf32, #tpu.memory_space<vmem>>, vector<16x8xf32>,
      %c0_25 = arith.constant 0 : index
      %c0_26 = arith.constant 0 : index
      %47 = vector.load %arg8[%c0_25, %c0_26] : memref<16x4xf32, #tpu.memory_space<vmem>>, vector<16x1xf32>
      tpu.vector_store %arg8[%c0_25, %c0_26], %28 {strides = array<i32>} : memref<16x4xf32, #tpu.memory_space<vmem>>, vector<16x1xf32>,
      %48 = vector.extract_strided_slice %10 {offsets = [0, 8], sizes = [16, 8], strides = [1, 1]} : vector<16x32xbf16> to vector<16x8xbf16>
      %49 = vector.extract_strided_slice %12 {offsets = [0, 8], sizes = [16, 8], strides = [1, 1]} : vector<16x32xbf16> to vector<16x8xbf16>
      %cst_27 = arith.constant dense<0.000000e+00> : vector<16x16xf32>
      %50 = tpu.matmul %48, %49, %cst_27 {dimension_numbers = #tpu.dot_dimension_numbers<[1], [1], [0], [0], [0, 0, 1, 0], [], []>} : vector<16x8xbf16>, vector<16x8xbf16>, vector<16x16xf32> -> vector<16x16xf32>
      %c0_28 = arith.constant 0 : index
      %c1 = arith.constant 1 : index
      %51 = vector.load %arg8[%c0_28, %c1] : memref<16x4xf32, #tpu.memory_space<vmem>>, vector<16x1xf32>
      %c0_29 = arith.constant 0 : index
      %c1_30 = arith.constant 1 : index
      %52 = vector.load %arg9[%c0_29, %c1_30] : memref<16x4xf32, #tpu.memory_space<vmem>>, vector<16x1xf32>
      %cst_31 = arith.constant dense<0xFF800000> : vector<16xf32>
      %53 = vector.multi_reduction <maximumf>, %50, %cst_31 [1] : vector<16x16xf32> to vector<16xf32>
      %54 = vector.shape_cast %53 : vector<16xf32> to vector<16x1xf32>
      %55 = arith.maximumf %51, %54 : vector<16x1xf32>
      %56 = arith.subf %51, %55 : vector<16x1xf32>
      %57 = math.exp %56 : vector<16x1xf32>
      %58 = vector.broadcast %55 : vector<16x1xf32> to vector<16x16xf32>
      %59 = arith.subf %50, %58 : vector<16x16xf32>
      %60 = math.exp %59 : vector<16x16xf32>
      %61 = arith.mulf %57, %52 : vector<16x1xf32>
      %cst_32 = arith.constant dense<0.000000e+00> : vector<16xf32>
      %62 = vector.multi_reduction <add>, %60, %cst_32 [1] : vector<16x16xf32> to vector<16xf32>
      %63 = vector.shape_cast %62 : vector<16xf32> to vector<16x1xf32>
      %64 = arith.addf %61, %63 : vector<16x1xf32>
      %c0_33 = arith.constant 0 : index
      %c1_34 = arith.constant 1 : index
      %65 = vector.load %arg9[%c0_33, %c1_34] : memref<16x4xf32, #tpu.memory_space<vmem>>, vector<16x1xf32>
      tpu.vector_store %arg9[%c0_33, %c1_34], %64 {strides = array<i32>} : memref<16x4xf32, #tpu.memory_space<vmem>>, vector<16x1xf32>,
      %c0_35 = arith.constant 0 : index
      %c8 = arith.constant 8 : index
      %66 = vector.load %arg10[%c0_35, %c8] : memref<16x32xf32, #tpu.memory_space<vmem>>, vector<16x8xf32>
      %67 = vector.broadcast %57 : vector<16x1xf32> to vector<16x8xf32>
      %68 = arith.mulf %67, %66 : vector<16x8xf32>
      %69 = arith.truncf %60 : vector<16x16xf32> to vector<16x16xbf16>
      %70 = vector.extract_strided_slice %14 {offsets = [0, 8], sizes = [16, 8], strides = [1, 1]} : vector<16x32xbf16> to vector<16x8xbf16>
      %cst_36 = arith.constant dense<0.000000e+00> : vector<16x8xf32>
      %71 = tpu.matmul %69, %70, %cst_36 {dimension_numbers = #tpu.dot_dimension_numbers<[1], [0], [0], [1], [0, 0, 1, 1], [], []>} : vector<16x16xbf16>, vector<16x8xbf16>, vector<16x8xf32> -> vector<16x8xf32>
      %72 = arith.addf %68, %71 : vector<16x8xf32>
      %c0_37 = arith.constant 0 : index
      %c8_38 = arith.constant 8 : index
      %73 = vector.load %arg10[%c0_37, %c8_38] : memref<16x32xf32, #tpu.memory_space<vmem>>, vector<16x8xf32>
      tpu.vector_store %arg10[%c0_37, %c8_38], %72 {strides = array<i32>} : memref<16x32xf32, #tpu.memory_space<vmem>>, vector<16x8xf32>,
      %c0_39 = arith.constant 0 : index
      %c1_40 = arith.constant 1 : index
      %74 = vector.load %arg8[%c0_39, %c1_40] : memref<16x4xf32, #tpu.memory_space<vmem>>, vector<16x1xf32>
      tpu.vector_store %arg8[%c0_39, %c1_40], %55 {strides = array<i32>} : memref<16x4xf32, #tpu.memory_space<vmem>>, vector<16x1xf32>,
      %75 = vector.extract_strided_slice %10 {offsets = [0, 16], sizes = [16, 8], strides = [1, 1]} : vector<16x32xbf16> to vector<16x8xbf16>
      %76 = vector.extract_strided_slice %12 {offsets = [0, 16], sizes = [16, 8], strides = [1, 1]} : vector<16x32xbf16> to vector<16x8xbf16>
      %cst_41 = arith.constant dense<0.000000e+00> : vector<16x16xf32>
      %77 = tpu.matmul %75, %76, %cst_41 {dimension_numbers = #tpu.dot_dimension_numbers<[1], [1], [0], [0], [0, 0, 1, 0], [], []>} : vector<16x8xbf16>, vector<16x8xbf16>, vector<16x16xf32> -> vector<16x16xf32>
      %c0_42 = arith.constant 0 : index
      %c2 = arith.constant 2 : index
      %78 = vector.load %arg8[%c0_42, %c2] : memref<16x4xf32, #tpu.memory_space<vmem>>, vector<16x1xf32>
      %c0_43 = arith.constant 0 : index
      %c2_44 = arith.constant 2 : index
      %79 = vector.load %arg9[%c0_43, %c2_44] : memref<16x4xf32, #tpu.memory_space<vmem>>, vector<16x1xf32>
      %cst_45 = arith.constant dense<0xFF800000> : vector<16xf32>
      %80 = vector.multi_reduction <maximumf>, %77, %cst_45 [1] : vector<16x16xf32> to vector<16xf32>
      %81 = vector.shape_cast %80 : vector<16xf32> to vector<16x1xf32>
      %82 = arith.maximumf %78, %81 : vector<16x1xf32>
      %83 = arith.subf %78, %82 : vector<16x1xf32>
      %84 = math.exp %83 : vector<16x1xf32>
      %85 = vector.broadcast %82 : vector<16x1xf32> to vector<16x16xf32>
      %86 = arith.subf %77, %85 : vector<16x16xf32>
      %87 = math.exp %86 : vector<16x16xf32>
      %88 = arith.mulf %84, %79 : vector<16x1xf32>
      %cst_46 = arith.constant dense<0.000000e+00> : vector<16xf32>
      %89 = vector.multi_reduction <add>, %87, %cst_46 [1] : vector<16x16xf32> to vector<16xf32>
      %90 = vector.shape_cast %89 : vector<16xf32> to vector<16x1xf32>
      %91 = arith.addf %88, %90 : vector<16x1xf32>
      %c0_47 = arith.constant 0 : index
      %c2_48 = arith.constant 2 : index
      %92 = vector.load %arg9[%c0_47, %c2_48] : memref<16x4xf32, #tpu.memory_space<vmem>>, vector<16x1xf32>
      tpu.vector_store %arg9[%c0_47, %c2_48], %91 {strides = array<i32>} : memref<16x4xf32, #tpu.memory_space<vmem>>, vector<16x1xf32>,
      %c0_49 = arith.constant 0 : index
      %c16 = arith.constant 16 : index
      %93 = vector.load %arg10[%c0_49, %c16] : memref<16x32xf32, #tpu.memory_space<vmem>>, vector<16x8xf32>
      %94 = vector.broadcast %84 : vector<16x1xf32> to vector<16x8xf32>
      %95 = arith.mulf %94, %93 : vector<16x8xf32>
      %96 = arith.truncf %87 : vector<16x16xf32> to vector<16x16xbf16>
      %97 = vector.extract_strided_slice %14 {offsets = [0, 16], sizes = [16, 8], strides = [1, 1]} : vector<16x32xbf16> to vector<16x8xbf16>
      %cst_50 = arith.constant dense<0.000000e+00> : vector<16x8xf32>
      %98 = tpu.matmul %96, %97, %cst_50 {dimension_numbers = #tpu.dot_dimension_numbers<[1], [0], [0], [1], [0, 0, 1, 1], [], []>} : vector<16x16xbf16>, vector<16x8xbf16>, vector<16x8xf32> -> vector<16x8xf32>
      %99 = arith.addf %95, %98 : vector<16x8xf32>
      %c0_51 = arith.constant 0 : index
      %c16_52 = arith.constant 16 : index
      %100 = vector.load %arg10[%c0_51, %c16_52] : memref<16x32xf32, #tpu.memory_space<vmem>>, vector<16x8xf32>
      tpu.vector_store %arg10[%c0_51, %c16_52], %99 {strides = array<i32>} : memref<16x32xf32, #tpu.memory_space<vmem>>, vector<16x8xf32>,
      %c0_53 = arith.constant 0 : index
      %c2_54 = arith.constant 2 : index
      %101 = vector.load %arg8[%c0_53, %c2_54] : memref<16x4xf32, #tpu.memory_space<vmem>>, vector<16x1xf32>
      tpu.vector_store %arg8[%c0_53, %c2_54], %82 {strides = array<i32>} : memref<16x4xf32, #tpu.memory_space<vmem>>, vector<16x1xf32>,
      %102 = vector.extract_strided_slice %10 {offsets = [0, 24], sizes = [16, 8], strides = [1, 1]} : vector<16x32xbf16> to vector<16x8xbf16>
      %103 = vector.extract_strided_slice %12 {offsets = [0, 24], sizes = [16, 8], strides = [1, 1]} : vector<16x32xbf16> to vector<16x8xbf16>
      %cst_55 = arith.constant dense<0.000000e+00> : vector<16x16xf32>
      %104 = tpu.matmul %102, %103, %cst_55 {dimension_numbers = #tpu.dot_dimension_numbers<[1], [1], [0], [0], [0, 0, 1, 0], [], []>} : vector<16x8xbf16>, vector<16x8xbf16>, vector<16x16xf32> -> vector<16x16xf32>
      %c0_56 = arith.constant 0 : index
      %c3 = arith.constant 3 : index
      %105 = vector.load %arg8[%c0_56, %c3] : memref<16x4xf32, #tpu.memory_space<vmem>>, vector<16x1xf32>
      %c0_57 = arith.constant 0 : index
      %c3_58 = arith.constant 3 : index
      %106 = vector.load %arg9[%c0_57, %c3_58] : memref<16x4xf32, #tpu.memory_space<vmem>>, vector<16x1xf32>
      %cst_59 = arith.constant dense<0xFF800000> : vector<16xf32>
      %107 = vector.multi_reduction <maximumf>, %104, %cst_59 [1] : vector<16x16xf32> to vector<16xf32>
      %108 = vector.shape_cast %107 : vector<16xf32> to vector<16x1xf32>
      %109 = arith.maximumf %105, %108 : vector<16x1xf32>
      %110 = arith.subf %105, %109 : vector<16x1xf32>
      %111 = math.exp %110 : vector<16x1xf32>
      %112 = vector.broadcast %109 : vector<16x1xf32> to vector<16x16xf32>
      %113 = arith.subf %104, %112 : vector<16x16xf32>
      %114 = math.exp %113 : vector<16x16xf32>
      %115 = arith.mulf %111, %106 : vector<16x1xf32>
      %cst_60 = arith.constant dense<0.000000e+00> : vector<16xf32>
      %116 = vector.multi_reduction <add>, %114, %cst_60 [1] : vector<16x16xf32> to vector<16xf32>
      %117 = vector.shape_cast %116 : vector<16xf32> to vector<16x1xf32>
      %118 = arith.addf %115, %117 : vector<16x1xf32>
      %c0_61 = arith.constant 0 : index
      %c3_62 = arith.constant 3 : index
      %119 = vector.load %arg9[%c0_61, %c3_62] : memref<16x4xf32, #tpu.memory_space<vmem>>, vector<16x1xf32>
      tpu.vector_store %arg9[%c0_61, %c3_62], %118 {strides = array<i32>} : memref<16x4xf32, #tpu.memory_space<vmem>>, vector<16x1xf32>,
      %c0_63 = arith.constant 0 : index
      %c24 = arith.constant 24 : index
      %120 = vector.load %arg10[%c0_63, %c24] : memref<16x32xf32, #tpu.memory_space<vmem>>, vector<16x8xf32>
      %121 = vector.broadcast %111 : vector<16x1xf32> to vector<16x8xf32>
      %122 = arith.mulf %121, %120 : vector<16x8xf32>
      %123 = arith.truncf %114 : vector<16x16xf32> to vector<16x16xbf16>
      %124 = vector.extract_strided_slice %14 {offsets = [0, 24], sizes = [16, 8], strides = [1, 1]} : vector<16x32xbf16> to vector<16x8xbf16>
      %cst_64 = arith.constant dense<0.000000e+00> : vector<16x8xf32>
      %125 = tpu.matmul %123, %124, %cst_64 {dimension_numbers = #tpu.dot_dimension_numbers<[1], [0], [0], [1], [0, 0, 1, 1], [], []>} : vector<16x16xbf16>, vector<16x8xbf16>, vector<16x8xf32> -> vector<16x8xf32>
      %126 = arith.addf %122, %125 : vector<16x8xf32>
      %c0_65 = arith.constant 0 : index
      %c24_66 = arith.constant 24 : index
      %127 = vector.load %arg10[%c0_65, %c24_66] : memref<16x32xf32, #tpu.memory_space<vmem>>, vector<16x8xf32>
      tpu.vector_store %arg10[%c0_65, %c24_66], %126 {strides = array<i32>} : memref<16x32xf32, #tpu.memory_space<vmem>>, vector<16x8xf32>,
      %c0_67 = arith.constant 0 : index
      %c3_68 = arith.constant 3 : index
      %128 = vector.load %arg8[%c0_67, %c3_68] : memref<16x4xf32, #tpu.memory_space<vmem>>, vector<16x1xf32>
      tpu.vector_store %arg8[%c0_67, %c3_68], %109 {strides = array<i32>} : memref<16x4xf32, #tpu.memory_space<vmem>>, vector<16x1xf32>,
    } else {
    }
    %18 = arith.cmpi eq, %3, %1 : i32
    %19 = arith.extui %18 : i1 to i32
    %c0_i32_10 = arith.constant 0 : i32
    %20 = arith.cmpi ne, %19, %c0_i32_10 : i32
    scf.if %20 {
      %21 = tpu.iota {dimensions = array<i32: 0>} : vector<16x16xi32>
      %22 = tpu.iota {dimensions = array<i32: 1>} : vector<16x16xi32>
      %23 = arith.cmpi sle, %22, %21 : vector<16x16xi32>
      %24 = vector.extract_strided_slice %10 {offsets = [0, 0], sizes = [16, 8], strides = [1, 1]} : vector<16x32xbf16> to vector<16x8xbf16>
      %25 = vector.extract_strided_slice %12 {offsets = [0, 0], sizes = [16, 8], strides = [1, 1]} : vector<16x32xbf16> to vector<16x8xbf16>
      %cst_11 = arith.constant dense<0.000000e+00> : vector<16x16xf32>
      %26 = tpu.matmul %24, %25, %cst_11 {dimension_numbers = #tpu.dot_dimension_numbers<[1], [1], [0], [0], [0, 0, 1, 0], [], []>} : vector<16x8xbf16>, vector<16x8xbf16>, vector<16x16xf32> -> vector<16x16xf32>
      %cst_12 = arith.constant -1.000000e+30 : f32
      %27 = vector.broadcast %cst_12 : f32 to vector<16x16xf32>
      %28 = arith.select %23, %26, %27 : vector<16x16xi1>, vector<16x16xf32>
      %c0_13 = arith.constant 0 : index
      %c0_14 = arith.constant 0 : index
      %29 = vector.load %arg8[%c0_13, %c0_14] : memref<16x4xf32, #tpu.memory_space<vmem>>, vector<16x1xf32>
      %c0_15 = arith.constant 0 : index
      %c0_16 = arith.constant 0 : index
      %30 = vector.load %arg9[%c0_15, %c0_16] : memref<16x4xf32, #tpu.memory_space<vmem>>, vector<16x1xf32>
      %cst_17 = arith.constant dense<0xFF800000> : vector<16xf32>
      %31 = vector.multi_reduction <maximumf>, %28, %cst_17 [1] : vector<16x16xf32> to vector<16xf32>
      %32 = vector.shape_cast %31 : vector<16xf32> to vector<16x1xf32>
      %33 = arith.maximumf %29, %32 : vector<16x1xf32>
      %34 = arith.subf %29, %33 : vector<16x1xf32>
      %35 = math.exp %34 : vector<16x1xf32>
      %36 = vector.broadcast %33 : vector<16x1xf32> to vector<16x16xf32>
      %37 = arith.subf %28, %36 : vector<16x16xf32>
      %38 = math.exp %37 : vector<16x16xf32>
      %39 = arith.mulf %35, %30 : vector<16x1xf32>
      %cst_18 = arith.constant dense<0.000000e+00> : vector<16xf32>
      %40 = vector.multi_reduction <add>, %38, %cst_18 [1] : vector<16x16xf32> to vector<16xf32>
      %41 = vector.shape_cast %40 : vector<16xf32> to vector<16x1xf32>
      %42 = arith.addf %39, %41 : vector<16x1xf32>
      %c0_19 = arith.constant 0 : index
      %c0_20 = arith.constant 0 : index
      %43 = vector.load %arg9[%c0_19, %c0_20] : memref<16x4xf32, #tpu.memory_space<vmem>>, vector<16x1xf32>
      tpu.vector_store %arg9[%c0_19, %c0_20], %42 {strides = array<i32>} : memref<16x4xf32, #tpu.memory_space<vmem>>, vector<16x1xf32>,
      %c0_21 = arith.constant 0 : index
      %c0_22 = arith.constant 0 : index
      %44 = vector.load %arg10[%c0_21, %c0_22] : memref<16x32xf32, #tpu.memory_space<vmem>>, vector<16x8xf32>
      %45 = vector.broadcast %35 : vector<16x1xf32> to vector<16x8xf32>
      %46 = arith.mulf %45, %44 : vector<16x8xf32>
      %47 = arith.truncf %38 : vector<16x16xf32> to vector<16x16xbf16>
      %48 = vector.extract_strided_slice %14 {offsets = [0, 0], sizes = [16, 8], strides = [1, 1]} : vector<16x32xbf16> to vector<16x8xbf16>
      %cst_23 = arith.constant dense<0.000000e+00> : vector<16x8xf32>
      %49 = tpu.matmul %47, %48, %cst_23 {dimension_numbers = #tpu.dot_dimension_numbers<[1], [0], [0], [1], [0, 0, 1, 1], [], []>} : vector<16x16xbf16>, vector<16x8xbf16>, vector<16x8xf32> -> vector<16x8xf32>
      %50 = arith.addf %46, %49 : vector<16x8xf32>
      %c0_24 = arith.constant 0 : index
      %c0_25 = arith.constant 0 : index
      %51 = vector.load %arg10[%c0_24, %c0_25] : memref<16x32xf32, #tpu.memory_space<vmem>>, vector<16x8xf32>
      tpu.vector_store %arg10[%c0_24, %c0_25], %50 {strides = array<i32>} : memref<16x32xf32, #tpu.memory_space<vmem>>, vector<16x8xf32>,
      %c0_26 = arith.constant 0 : index
      %c0_27 = arith.constant 0 : index
      %52 = vector.load %arg8[%c0_26, %c0_27] : memref<16x4xf32, #tpu.memory_space<vmem>>, vector<16x1xf32>
      tpu.vector_store %arg8[%c0_26, %c0_27], %33 {strides = array<i32>} : memref<16x4xf32, #tpu.memory_space<vmem>>, vector<16x1xf32>,
      %53 = vector.extract_strided_slice %10 {offsets = [0, 8], sizes = [16, 8], strides = [1, 1]} : vector<16x32xbf16> to vector<16x8xbf16>
      %54 = vector.extract_strided_slice %12 {offsets = [0, 8], sizes = [16, 8], strides = [1, 1]} : vector<16x32xbf16> to vector<16x8xbf16>
      %cst_28 = arith.constant dense<0.000000e+00> : vector<16x16xf32>
      %55 = tpu.matmul %53, %54, %cst_28 {dimension_numbers = #tpu.dot_dimension_numbers<[1], [1], [0], [0], [0, 0, 1, 0], [], []>} : vector<16x8xbf16>, vector<16x8xbf16>, vector<16x16xf32> -> vector<16x16xf32>
      %cst_29 = arith.constant -1.000000e+30 : f32
      %56 = vector.broadcast %cst_29 : f32 to vector<16x16xf32>
      %57 = arith.select %23, %55, %56 : vector<16x16xi1>, vector<16x16xf32>
      %c0_30 = arith.constant 0 : index
      %c1 = arith.constant 1 : index
      %58 = vector.load %arg8[%c0_30, %c1] : memref<16x4xf32, #tpu.memory_space<vmem>>, vector<16x1xf32>
      %c0_31 = arith.constant 0 : index
      %c1_32 = arith.constant 1 : index
      %59 = vector.load %arg9[%c0_31, %c1_32] : memref<16x4xf32, #tpu.memory_space<vmem>>, vector<16x1xf32>
      %cst_33 = arith.constant dense<0xFF800000> : vector<16xf32>
      %60 = vector.multi_reduction <maximumf>, %57, %cst_33 [1] : vector<16x16xf32> to vector<16xf32>
      %61 = vector.shape_cast %60 : vector<16xf32> to vector<16x1xf32>
      %62 = arith.maximumf %58, %61 : vector<16x1xf32>
      %63 = arith.subf %58, %62 : vector<16x1xf32>
      %64 = math.exp %63 : vector<16x1xf32>
      %65 = vector.broadcast %62 : vector<16x1xf32> to vector<16x16xf32>
      %66 = arith.subf %57, %65 : vector<16x16xf32>
      %67 = math.exp %66 : vector<16x16xf32>
      %68 = arith.mulf %64, %59 : vector<16x1xf32>
      %cst_34 = arith.constant dense<0.000000e+00> : vector<16xf32>
      %69 = vector.multi_reduction <add>, %67, %cst_34 [1] : vector<16x16xf32> to vector<16xf32>
      %70 = vector.shape_cast %69 : vector<16xf32> to vector<16x1xf32>
      %71 = arith.addf %68, %70 : vector<16x1xf32>
      %c0_35 = arith.constant 0 : index
      %c1_36 = arith.constant 1 : index
      %72 = vector.load %arg9[%c0_35, %c1_36] : memref<16x4xf32, #tpu.memory_space<vmem>>, vector<16x1xf32>
      tpu.vector_store %arg9[%c0_35, %c1_36], %71 {strides = array<i32>} : memref<16x4xf32, #tpu.memory_space<vmem>>, vector<16x1xf32>,
      %c0_37 = arith.constant 0 : index
      %c8 = arith.constant 8 : index
      %73 = vector.load %arg10[%c0_37, %c8] : memref<16x32xf32, #tpu.memory_space<vmem>>, vector<16x8xf32>
      %74 = vector.broadcast %64 : vector<16x1xf32> to vector<16x8xf32>
      %75 = arith.mulf %74, %73 : vector<16x8xf32>
      %76 = arith.truncf %67 : vector<16x16xf32> to vector<16x16xbf16>
      %77 = vector.extract_strided_slice %14 {offsets = [0, 8], sizes = [16, 8], strides = [1, 1]} : vector<16x32xbf16> to vector<16x8xbf16>
      %cst_38 = arith.constant dense<0.000000e+00> : vector<16x8xf32>
      %78 = tpu.matmul %76, %77, %cst_38 {dimension_numbers = #tpu.dot_dimension_numbers<[1], [0], [0], [1], [0, 0, 1, 1], [], []>} : vector<16x16xbf16>, vector<16x8xbf16>, vector<16x8xf32> -> vector<16x8xf32>
      %79 = arith.addf %75, %78 : vector<16x8xf32>
      %c0_39 = arith.constant 0 : index
      %c8_40 = arith.constant 8 : index
      %80 = vector.load %arg10[%c0_39, %c8_40] : memref<16x32xf32, #tpu.memory_space<vmem>>, vector<16x8xf32>
      tpu.vector_store %arg10[%c0_39, %c8_40], %79 {strides = array<i32>} : memref<16x32xf32, #tpu.memory_space<vmem>>, vector<16x8xf32>,
      %c0_41 = arith.constant 0 : index
      %c1_42 = arith.constant 1 : index
      %81 = vector.load %arg8[%c0_41, %c1_42] : memref<16x4xf32, #tpu.memory_space<vmem>>, vector<16x1xf32>
      tpu.vector_store %arg8[%c0_41, %c1_42], %62 {strides = array<i32>} : memref<16x4xf32, #tpu.memory_space<vmem>>, vector<16x1xf32>,
      %82 = vector.extract_strided_slice %10 {offsets = [0, 16], sizes = [16, 8], strides = [1, 1]} : vector<16x32xbf16> to vector<16x8xbf16>
      %83 = vector.extract_strided_slice %12 {offsets = [0, 16], sizes = [16, 8], strides = [1, 1]} : vector<16x32xbf16> to vector<16x8xbf16>
      %cst_43 = arith.constant dense<0.000000e+00> : vector<16x16xf32>
      %84 = tpu.matmul %82, %83, %cst_43 {dimension_numbers = #tpu.dot_dimension_numbers<[1], [1], [0], [0], [0, 0, 1, 0], [], []>} : vector<16x8xbf16>, vector<16x8xbf16>, vector<16x16xf32> -> vector<16x16xf32>
      %cst_44 = arith.constant -1.000000e+30 : f32
      %85 = vector.broadcast %cst_44 : f32 to vector<16x16xf32>
      %86 = arith.select %23, %84, %85 : vector<16x16xi1>, vector<16x16xf32>
      %c0_45 = arith.constant 0 : index
      %c2 = arith.constant 2 : index
      %87 = vector.load %arg8[%c0_45, %c2] : memref<16x4xf32, #tpu.memory_space<vmem>>, vector<16x1xf32>
      %c0_46 = arith.constant 0 : index
      %c2_47 = arith.constant 2 : index
      %88 = vector.load %arg9[%c0_46, %c2_47] : memref<16x4xf32, #tpu.memory_space<vmem>>, vector<16x1xf32>
      %cst_48 = arith.constant dense<0xFF800000> : vector<16xf32>
      %89 = vector.multi_reduction <maximumf>, %86, %cst_48 [1] : vector<16x16xf32> to vector<16xf32>
      %90 = vector.shape_cast %89 : vector<16xf32> to vector<16x1xf32>
      %91 = arith.maximumf %87, %90 : vector<16x1xf32>
      %92 = arith.subf %87, %91 : vector<16x1xf32>
      %93 = math.exp %92 : vector<16x1xf32>
      %94 = vector.broadcast %91 : vector<16x1xf32> to vector<16x16xf32>
      %95 = arith.subf %86, %94 : vector<16x16xf32>
      %96 = math.exp %95 : vector<16x16xf32>
      %97 = arith.mulf %93, %88 : vector<16x1xf32>
      %cst_49 = arith.constant dense<0.000000e+00> : vector<16xf32>
      %98 = vector.multi_reduction <add>, %96, %cst_49 [1] : vector<16x16xf32> to vector<16xf32>
      %99 = vector.shape_cast %98 : vector<16xf32> to vector<16x1xf32>
      %100 = arith.addf %97, %99 : vector<16x1xf32>
      %c0_50 = arith.constant 0 : index
      %c2_51 = arith.constant 2 : index
      %101 = vector.load %arg9[%c0_50, %c2_51] : memref<16x4xf32, #tpu.memory_space<vmem>>, vector<16x1xf32>
      tpu.vector_store %arg9[%c0_50, %c2_51], %100 {strides = array<i32>} : memref<16x4xf32, #tpu.memory_space<vmem>>, vector<16x1xf32>,
      %c0_52 = arith.constant 0 : index
      %c16 = arith.constant 16 : index
      %102 = vector.load %arg10[%c0_52, %c16] : memref<16x32xf32, #tpu.memory_space<vmem>>, vector<16x8xf32>
      %103 = vector.broadcast %93 : vector<16x1xf32> to vector<16x8xf32>
      %104 = arith.mulf %103, %102 : vector<16x8xf32>
      %105 = arith.truncf %96 : vector<16x16xf32> to vector<16x16xbf16>
      %106 = vector.extract_strided_slice %14 {offsets = [0, 16], sizes = [16, 8], strides = [1, 1]} : vector<16x32xbf16> to vector<16x8xbf16>
      %cst_53 = arith.constant dense<0.000000e+00> : vector<16x8xf32>
      %107 = tpu.matmul %105, %106, %cst_53 {dimension_numbers = #tpu.dot_dimension_numbers<[1], [0], [0], [1], [0, 0, 1, 1], [], []>} : vector<16x16xbf16>, vector<16x8xbf16>, vector<16x8xf32> -> vector<16x8xf32>
      %108 = arith.addf %104, %107 : vector<16x8xf32>
      %c0_54 = arith.constant 0 : index
      %c16_55 = arith.constant 16 : index
      %109 = vector.load %arg10[%c0_54, %c16_55] : memref<16x32xf32, #tpu.memory_space<vmem>>, vector<16x8xf32>
      tpu.vector_store %arg10[%c0_54, %c16_55], %108 {strides = array<i32>} : memref<16x32xf32, #tpu.memory_space<vmem>>, vector<16x8xf32>,
      %c0_56 = arith.constant 0 : index
      %c2_57 = arith.constant 2 : index
      %110 = vector.load %arg8[%c0_56, %c2_57] : memref<16x4xf32, #tpu.memory_space<vmem>>, vector<16x1xf32>
      tpu.vector_store %arg8[%c0_56, %c2_57], %91 {strides = array<i32>} : memref<16x4xf32, #tpu.memory_space<vmem>>, vector<16x1xf32>,
      %111 = vector.extract_strided_slice %10 {offsets = [0, 24], sizes = [16, 8], strides = [1, 1]} : vector<16x32xbf16> to vector<16x8xbf16>
      %112 = vector.extract_strided_slice %12 {offsets = [0, 24], sizes = [16, 8], strides = [1, 1]} : vector<16x32xbf16> to vector<16x8xbf16>
      %cst_58 = arith.constant dense<0.000000e+00> : vector<16x16xf32>
      %113 = tpu.matmul %111, %112, %cst_58 {dimension_numbers = #tpu.dot_dimension_numbers<[1], [1], [0], [0], [0, 0, 1, 0], [], []>} : vector<16x8xbf16>, vector<16x8xbf16>, vector<16x16xf32> -> vector<16x16xf32>
      %cst_59 = arith.constant -1.000000e+30 : f32
      %114 = vector.broadcast %cst_59 : f32 to vector<16x16xf32>
      %115 = arith.select %23, %113, %114 : vector<16x16xi1>, vector<16x16xf32>
      %c0_60 = arith.constant 0 : index
      %c3 = arith.constant 3 : index
      %116 = vector.load %arg8[%c0_60, %c3] : memref<16x4xf32, #tpu.memory_space<vmem>>, vector<16x1xf32>
      %c0_61 = arith.constant 0 : index
      %c3_62 = arith.constant 3 : index
      %117 = vector.load %arg9[%c0_61, %c3_62] : memref<16x4xf32, #tpu.memory_space<vmem>>, vector<16x1xf32>
      %cst_63 = arith.constant dense<0xFF800000> : vector<16xf32>
      %118 = vector.multi_reduction <maximumf>, %115, %cst_63 [1] : vector<16x16xf32> to vector<16xf32>
      %119 = vector.shape_cast %118 : vector<16xf32> to vector<16x1xf32>
      %120 = arith.maximumf %116, %119 : vector<16x1xf32>
      %121 = arith.subf %116, %120 : vector<16x1xf32>
      %122 = math.exp %121 : vector<16x1xf32>
      %123 = vector.broadcast %120 : vector<16x1xf32> to vector<16x16xf32>
      %124 = arith.subf %115, %123 : vector<16x16xf32>
      %125 = math.exp %124 : vector<16x16xf32>
      %126 = arith.mulf %122, %117 : vector<16x1xf32>
      %cst_64 = arith.constant dense<0.000000e+00> : vector<16xf32>
      %127 = vector.multi_reduction <add>, %125, %cst_64 [1] : vector<16x16xf32> to vector<16xf32>
      %128 = vector.shape_cast %127 : vector<16xf32> to vector<16x1xf32>
      %129 = arith.addf %126, %128 : vector<16x1xf32>
      %c0_65 = arith.constant 0 : index
      %c3_66 = arith.constant 3 : index
      %130 = vector.load %arg9[%c0_65, %c3_66] : memref<16x4xf32, #tpu.memory_space<vmem>>, vector<16x1xf32>
      tpu.vector_store %arg9[%c0_65, %c3_66], %129 {strides = array<i32>} : memref<16x4xf32, #tpu.memory_space<vmem>>, vector<16x1xf32>,
      %c0_67 = arith.constant 0 : index
      %c24 = arith.constant 24 : index
      %131 = vector.load %arg10[%c0_67, %c24] : memref<16x32xf32, #tpu.memory_space<vmem>>, vector<16x8xf32>
      %132 = vector.broadcast %122 : vector<16x1xf32> to vector<16x8xf32>
      %133 = arith.mulf %132, %131 : vector<16x8xf32>
      %134 = arith.truncf %125 : vector<16x16xf32> to vector<16x16xbf16>
      %135 = vector.extract_strided_slice %14 {offsets = [0, 24], sizes = [16, 8], strides = [1, 1]} : vector<16x32xbf16> to vector<16x8xbf16>
      %cst_68 = arith.constant dense<0.000000e+00> : vector<16x8xf32>
      %136 = tpu.matmul %134, %135, %cst_68 {dimension_numbers = #tpu.dot_dimension_numbers<[1], [0], [0], [1], [0, 0, 1, 1], [], []>} : vector<16x16xbf16>, vector<16x8xbf16>, vector<16x8xf32> -> vector<16x8xf32>
      %137 = arith.addf %133, %136 : vector<16x8xf32>
      %c0_69 = arith.constant 0 : index
      %c24_70 = arith.constant 24 : index
      %138 = vector.load %arg10[%c0_69, %c24_70] : memref<16x32xf32, #tpu.memory_space<vmem>>, vector<16x8xf32>
      tpu.vector_store %arg10[%c0_69, %c24_70], %137 {strides = array<i32>} : memref<16x32xf32, #tpu.memory_space<vmem>>, vector<16x8xf32>,
      %c0_71 = arith.constant 0 : index
      %c3_72 = arith.constant 3 : index
      %139 = vector.load %arg8[%c0_71, %c3_72] : memref<16x4xf32, #tpu.memory_space<vmem>>, vector<16x1xf32>
      tpu.vector_store %arg8[%c0_71, %c3_72], %120 {strides = array<i32>} : memref<16x4xf32, #tpu.memory_space<vmem>>, vector<16x1xf32>,
      %c0_73 = arith.constant 0 : index
      %c0_74 = arith.constant 0 : index
      %140 = vector.load %arg9[%c0_73, %c0_74] : memref<16x4xf32, #tpu.memory_space<vmem>>, vector<16x4xf32>
      %cst_75 = arith.constant 1.000000e+00 : f32
      %141 = vector.broadcast %cst_75 : f32 to vector<16x4xf32>
      %142 = arith.divf %141, %140 : vector<16x4xf32>
      %c0_76 = arith.constant 0 : index
      %c0_77 = arith.constant 0 : index
      %143 = vector.load %arg10[%c0_76, %c0_77] : memref<16x32xf32, #tpu.memory_space<vmem>>, vector<16x8xf32>
      %144 = vector.extract_strided_slice %142 {offsets = [0, 0], sizes = [16, 1], strides = [1, 1]} : vector<16x4xf32> to vector<16x1xf32>
      %145 = vector.broadcast %144 : vector<16x1xf32> to vector<16x8xf32>
      %146 = arith.mulf %143, %145 : vector<16x8xf32>
      %c0_78 = arith.constant 0 : index
      %c0_79 = arith.constant 0 : index
      %147 = vector.load %arg10[%c0_78, %c0_79] : memref<16x32xf32, #tpu.memory_space<vmem>>, vector<16x8xf32>
      tpu.vector_store %arg10[%c0_78, %c0_79], %146 {strides = array<i32>} : memref<16x32xf32, #tpu.memory_space<vmem>>, vector<16x8xf32>,
      %c0_80 = arith.constant 0 : index
      %c8_81 = arith.constant 8 : index
      %148 = vector.load %arg10[%c0_80, %c8_81] : memref<16x32xf32, #tpu.memory_space<vmem>>, vector<16x8xf32>
      %149 = vector.extract_strided_slice %142 {offsets = [0, 1], sizes = [16, 1], strides = [1, 1]} : vector<16x4xf32> to vector<16x1xf32>
      %150 = vector.broadcast %149 : vector<16x1xf32> to vector<16x8xf32>
      %151 = arith.mulf %148, %150 : vector<16x8xf32>
      %c0_82 = arith.constant 0 : index
      %c8_83 = arith.constant 8 : index
      %152 = vector.load %arg10[%c0_82, %c8_83] : memref<16x32xf32, #tpu.memory_space<vmem>>, vector<16x8xf32>
      tpu.vector_store %arg10[%c0_82, %c8_83], %151 {strides = array<i32>} : memref<16x32xf32, #tpu.memory_space<vmem>>, vector<16x8xf32>,
      %c0_84 = arith.constant 0 : index
      %c16_85 = arith.constant 16 : index
      %153 = vector.load %arg10[%c0_84, %c16_85] : memref<16x32xf32, #tpu.memory_space<vmem>>, vector<16x8xf32>
      %154 = vector.extract_strided_slice %142 {offsets = [0, 2], sizes = [16, 1], strides = [1, 1]} : vector<16x4xf32> to vector<16x1xf32>
      %155 = vector.broadcast %154 : vector<16x1xf32> to vector<16x8xf32>
      %156 = arith.mulf %153, %155 : vector<16x8xf32>
      %c0_86 = arith.constant 0 : index
      %c16_87 = arith.constant 16 : index
      %157 = vector.load %arg10[%c0_86, %c16_87] : memref<16x32xf32, #tpu.memory_space<vmem>>, vector<16x8xf32>
      tpu.vector_store %arg10[%c0_86, %c16_87], %156 {strides = array<i32>} : memref<16x32xf32, #tpu.memory_space<vmem>>, vector<16x8xf32>,
      %c0_88 = arith.constant 0 : index
      %c24_89 = arith.constant 24 : index
      %158 = vector.load %arg10[%c0_88, %c24_89] : memref<16x32xf32, #tpu.memory_space<vmem>>, vector<16x8xf32>
      %159 = vector.extract_strided_slice %142 {offsets = [0, 3], sizes = [16, 1], strides = [1, 1]} : vector<16x4xf32> to vector<16x1xf32>
      %160 = vector.broadcast %159 : vector<16x1xf32> to vector<16x8xf32>
      %161 = arith.mulf %158, %160 : vector<16x8xf32>
      %c0_90 = arith.constant 0 : index
      %c24_91 = arith.constant 24 : index
      %162 = vector.load %arg10[%c0_90, %c24_91] : memref<16x32xf32, #tpu.memory_space<vmem>>, vector<16x8xf32>
      tpu.vector_store %arg10[%c0_90, %c24_91], %161 {strides = array<i32>} : memref<16x32xf32, #tpu.memory_space<vmem>>, vector<16x8xf32>,
      %c0_92 = arith.constant 0 : index
      %c0_93 = arith.constant 0 : index
      %163 = vector.load %arg10[%c0_92, %c0_93] : memref<16x32xf32, #tpu.memory_space<vmem>>, vector<16x32xf32>
      %164 = arith.truncf %163 : vector<16x32xf32> to vector<16x32xbf16>
      %c0_94 = arith.constant 0 : index
      %c0_95 = arith.constant 0 : index
      %c0_96 = arith.constant 0 : index
      %165 = vector.load %arg7[%c0_94, %c0_95, %c0_96] : memref<1x16x32xbf16, #tpu.memory_space<vmem>>, vector<1x16x32xbf16>
      %166 = vector.shape_cast %165 : vector<1x16x32xbf16> to vector<16x32xbf16>
      %167 = vector.shape_cast %164 : vector<16x32xbf16> to vector<1x16x32xbf16>
      tpu.vector_store %arg7[%c0_94, %c0_95, %c0_96], %167 {strides = array<i32>} : memref<1x16x32xbf16, #tpu.memory_space<vmem>>, vector<1x16x32xbf16>,
    } else {
    }
    return
  }
  func.func @transform_0(%arg0: i32, %arg1: i32, %arg2: memref<1xi32, #tpu.memory_space<smem>>, %arg3: memref<1xi32, #tpu.memory_space<smem>>) -> (i32, i32, i32) {
    %0 = arith.index_cast %arg1 : i32 to index
    %1 = memref.load %arg2[%0] : memref<1xi32, #tpu.memory_space<smem>>
    %c0_i32 = arith.constant 0 : i32
    %c0_i32_0 = arith.constant 0 : i32
    return %arg0, %1, %c0_i32 : i32, i32, i32
  }
  func.func @transform_1(%arg0: i32, %arg1: i32, %arg2: memref<1xi32, #tpu.memory_space<smem>>, %arg3: memref<1xi32, #tpu.memory_space<smem>>) -> (i32, i32, i32) {
    %0 = arith.index_cast %arg1 : i32 to index
    %1 = memref.load %arg3[%0] : memref<1xi32, #tpu.memory_space<smem>>
    %c0_i32 = arith.constant 0 : i32
    %c0_i32_0 = arith.constant 0 : i32
    return %arg0, %1, %c0_i32 : i32, i32, i32
  }
  func.func @transform_2(%arg0: i32, %arg1: i32, %arg2: memref<1xi32, #tpu.memory_space<smem>>, %arg3: memref<1xi32, #tpu.memory_space<smem>>) -> (i32, i32, i32) {
    %0 = arith.index_cast %arg1 : i32 to index
    %1 = memref.load %arg3[%0] : memref<1xi32, #tpu.memory_space<smem>>
    %c0_i32 = arith.constant 0 : i32
    %c0_i32_0 = arith.constant 0 : i32
    return %arg0, %1, %c0_i32 : i32, i32, i32
  }
  func.func @transform_3(%arg0: i32, %arg1: i32, %arg2: memref<1xi32, #tpu.memory_space<smem>>, %arg3: memref<1xi32, #tpu.memory_space<smem>>) -> (i32, i32, i32) {
    %0 = arith.index_cast %arg1 : i32 to index
    %1 = memref.load %arg2[%0] : memref<1xi32, #tpu.memory_space<smem>>
    %c0_i32 = arith.constant 0 : i32
    %c0_i32_0 = arith.constant 0 : i32
    return %arg0, %1, %c0_i32 : i32, i32, i32
  }
}

</mosaic_0001>

<llo_original>
// kernel: causal_self_attention_forward.5
$region0: #{causal_self_attention_forward.5}
  #allocation0 [shape = 'u32[]', space=smem, size = 0x4, offset = 0x4, fixed_abs, tag = 'smem constant byte address 0x4 - core index']
  #allocation1 [shape = 'u32[144,128]{1,0:T(1,128)}', space=vmem, size = 0x12000, scoped, tag = 'internal scratch']
  #allocation2 [shape = 'f32[32,32]{1,0:T(8,128)}', space=vmem, size = 0x4000, scoped, tag = 'scratch operand']
  %s0 = inlined_call_operand.vmem [shape: bf16[32,32], index: 0, kind: input, shape index: {}]
  %s1 = inlined_call_operand.vmem [shape: bf16[32,32], index: 1, kind: input, shape index: {}]
  %s2 = inlined_call_operand.vmem [shape: f32[1,32], index: 2, kind: input, shape index: {}]
  %s3 = inlined_call_operand.hbm [shape: f32[32,32], index: 3, kind: output, shape index: {}]
  %s4 = sld [smem:[#allocation0]]
  $region30: #{causal_self_attention_forward.5} parent=0
    _
  %s6 = ssub.s32 1, %s4
  %s7 = scalar_select 0, %s6, %s4
  $region1: #{causal_self_attention_forward.5} parent=0
    #allocation3 [shape = 'u8[16384]{0}', space=vmem, size = 0x4000, scoped, tag = 'output window, operand 0, single buffered']
    #allocation4 [shape = 's32[1]{0}', space=sflag, size = 0x4, scoped, tag = 'scoped memory for causal_self_attention_forward.5']
    %8 = vsyncpa [#allocation4], 0
    // Predicated region
    $region2: #{causal_self_attention_forward.5} parent=1 // pred_check
      _
    $region3: #{causal_self_attention_forward.5} parent=1 // pred_check_branch
      %10 = sbr.rel (0) target = $region5
    $region4: #{causal_self_attention_forward.5} parent=1 // pred_region
      _
    $region5: #{causal_self_attention_forward.5} parent=1 // pred_fallthru
      _
    // Predicated region
    $region6: #{causal_self_attention_forward.5} parent=1 // pred_check
      _
    $region7: #{causal_self_attention_forward.5} parent=1 // pred_check_branch
      %12 = sbr.rel (0) target = $region9
    $region8: #{causal_self_attention_forward.5} parent=1 // pred_region
      _
    $region9: #{causal_self_attention_forward.5} parent=1 // pred_fallthru
      _
    // Predicated region
    $region10: #{causal_self_attention_forward.5} parent=1 // pred_check
      _
    $region11: #{causal_self_attention_forward.5} parent=1 // pred_check_branch
      %14 = sbr.rel (0) target = $region13
    $region12: #{causal_self_attention_forward.5} parent=1 // pred_region
      _
    $region13: #{causal_self_attention_forward.5} parent=1 // pred_fallthru
      _
    %p16 = scmp.eq.s32.totalorder 0, 0
    // Predicated region
    $region14: #{causal_self_attention_forward.5} parent=1 // pred_check
      %p17 = pneg %p16
    $region15: #{causal_self_attention_forward.5} parent=1 // pred_check_branch
      %19 = sbr.rel (%p17) target = $region17
    $region16: #{causal_self_attention_forward.5} parent=1 // pred_region
      %vm20 = vcmask 261120
      %21 = vst.msk [vmem:[#allocation2] sm:$0xff] %vm20, 0.0
      %22 = vst.msk [vmem:[#allocation2 + $0x8] sm:$0xff] %vm20, 0.0
      %23 = vst.msk [vmem:[#allocation2 + $0x10] sm:$0xff] %vm20, 0.0
      %24 = vst.msk [vmem:[#allocation2 + $0x18] sm:$0xff] %vm20, 0.0
    $region17: #{causal_self_attention_forward.5} parent=1 // pred_fallthru
      _
    %v25 = vld [vmem:[%s0] sm:$0xf]
    %v26 = vld [vmem:[%s0 + $0x4] sm:$0xf]
    %v27 = vld [vmem:[%s0 + $0x8] sm:$0xf]
    %v28 = vld [vmem:[%s0 + $0xc] sm:$0xf]
    %v29 = vld [vmem:[#allocation2] sm:$0xff]
    %v30 = vld [vmem:[#allocation2 + $0x8] sm:$0xff]
    %v31 = vld [vmem:[#allocation2 + $0x10] sm:$0xff]
    %v32 = vld [vmem:[#allocation2 + $0x18] sm:$0xff]
    %v33 = vld [vmem:[%s1] sm:$0xf]
    %v34 = vld [vmem:[%s1 + $0x4] sm:$0xf]
    %v35 = vld [vmem:[%s1 + $0x8] sm:$0xf]
    %v36 = vld [vmem:[%s1 + $0xc] sm:$0xf]
    %v41 = vunpack.c.l.b16 %v25
    %v42 = vunpack.c.l.b16 %v26
    %v43 = vunpack.c.l.b16 %v27
    %v44 = vunpack.c.l.b16 %v28
    %v45 = vpack.c.b16 %v42, %v41
    %v46 = vpack.c.b16 %v44, %v43
    %v51 = vunpack.c.l.b16 %v33
    %v52 = vunpack.c.l.b16 %v34
    %v53 = vunpack.c.l.b16 %v35
    %v54 = vunpack.c.l.b16 %v36
    %v55 = vpack.c.b16 %v52, %v51
    %v56 = vpack.c.b16 %v54, %v53
    %vm59 = vcmask 261120
    %v61 = vsel %vm59, %v45, 0
    %v64 = vsel %vm59, %v46, 0
    %66 = vmatprep.subr.bf16.mxu0 0
    %67 = vmatpush1.bf16.msra.mxu0 %v55
    %68 = vmatprep.subr.bf16.mxu0 0
    %69 = vmatpush1.bf16.msra.mxu0 %v56
    %70 = vmatprep.subr.bf16.mxu0 0
    %71 = vmatpush1.bf16.msra.mxu0 0
    %72 = vmatprep.subr.bf16.mxu0 0
    %73 = vmatpush1.bf16.msra.mxu0 0
    %74 = vmatprep.subr.bf16.mxu0 0
    %75 = vmatpush1.bf16.msra.mxu0 0
    %76 = vmatprep.subr.bf16.mxu0 0
    %77 = vmatpush1.bf16.msra.mxu0 0
    %78 = vmatprep.subr.bf16.mxu0 0
    %79 = vmatpush1.bf16.msra.mxu0 0
    %80 = vmatprep.subr.bf16.mxu0 0
    %81 = vmatpush1.bf16.msra.mxu0 0
    %82 = vmatprep.subr.bf16.mxu0 0
    %83 = vmatpush1.bf16.msra.mxu0 0
    %84 = vmatprep.subr.bf16.mxu0 0
    %85 = vmatpush1.bf16.msra.mxu0 0
    %86 = vmatprep.subr.bf16.mxu0 0
    %87 = vmatpush1.bf16.msra.mxu0 0
    %88 = vmatprep.subr.bf16.mxu0 0
    %89 = vmatpush1.bf16.msra.mxu0 0
    %90 = vmatprep.subr.bf16.mxu0 0
    %91 = vmatpush1.bf16.msra.mxu0 0
    %92 = vmatprep.subr.bf16.mxu0 0
    %93 = vmatpush1.bf16.msra.mxu0 0
    %94 = vmatprep.subr.bf16.mxu0 0
    %95 = vmatpush1.bf16.msra.mxu0 0
    %96 = vmatprep.subr.bf16.mxu0 0
    %97 = vmatpush1.bf16.msra.mxu0 0
    %98 = vmatprep.mubr.bf16.mxu0 0
    %99 = vmatmul.mubr.bf16.gmra.mrb[0].mxu0 %v61
    %v100 = vpop.f32.mrb[0].mxu0
    %v101 = vadd.f32 0.0, %v100
    %v102 = vpop.f32.mrb[0].mxu0
    %v103 = vpop.f32.mrb[0].mxu0
    %v104 = vadd.f32 0.0, %v103
    %v105 = vpop.f32.mrb[0].mxu0
    %106 = vmatprep.mubr.bf16.mxu0 0
    %107 = vmatmul.mubr.bf16.gmra.mrb[0].mxu0 %v64
    %v108 = vpop.f32.mrb[0].mxu0
    %v109 = vadd.f32 0.0, %v108
    %v110 = vpop.f32.mrb[0].mxu0
    %v111 = vpop.f32.mrb[0].mxu0
    %v112 = vadd.f32 0.0, %v111
    %v113 = vpop.f32.mrb[0].mxu0
    %114 = vdwg.mxu0
    %v115 = vadd.f32 %v29, %v101
    %v116 = vadd.f32 %v30, %v104
    %v117 = vadd.f32 %v31, %v109
    %v118 = vadd.f32 %v32, %v112
    %119 = vst.msk [vmem:[#allocation2] sm:$0xff] %vm59, %v115
    %120 = vst.msk [vmem:[#allocation2 + $0x8] sm:$0xff] %vm59, %v116
    %121 = vst.msk [vmem:[#allocation2 + $0x10] sm:$0xff] %vm59, %v117
    %122 = vst.msk [vmem:[#allocation2 + $0x18] sm:$0xff] %vm59, %v118
    // Predicated region
    $region18: #{causal_self_attention_forward.5} parent=1 // pred_check
      %p123 = pneg %p16
    $region19: #{causal_self_attention_forward.5} parent=1 // pred_check_branch
      %125 = sbr.rel (%p123) target = $region21
    $region20: #{causal_self_attention_forward.5} parent=1 // pred_region
      %v126 = vld [vmem:[#allocation2] sm:$0xff]
      %v127 = vld [vmem:[#allocation2 + $0x8] sm:$0xff]
      %v128 = vld [vmem:[#allocation2 + $0x10] sm:$0xff]
      %v129 = vld [vmem:[#allocation2 + $0x18] sm:$0xff]
      %v130 = vld [vmem:[%s2] sm:$0x1]
      %v132 = vlaneseq
      %v133 = vshrl.u32 %v132, 7
      %v134 = vsub.s32 0, %v133
      %v135 = vrot.slane %v130, %v134
      %v137 = vadd.f32 %v126, %v135
      %v138 = vadd.f32 %v127, %v135
      %v139 = vadd.f32 %v128, %v135
      %v140 = vadd.f32 %v129, %v135
      %141 = vst.msk [vmem:[#allocation3] sm:$0xff] %vm59, %v137
      %142 = vst.msk [vmem:[#allocation3 + $0x8] sm:$0xff] %vm59, %v138
      %143 = vst.msk [vmem:[#allocation3 + $0x10] sm:$0xff] %vm59, %v139
      %144 = vst.msk [vmem:[#allocation3 + $0x18] sm:$0xff] %vm59, %v140
    $region21: #{causal_self_attention_forward.5} parent=1 // pred_fallthru
      _
    // Predicated region
    $region22: #{causal_self_attention_forward.5} parent=1 // pred_check
      _
    $region23: #{causal_self_attention_forward.5} parent=1 // pred_check_branch
      %146 = sbr.rel (0) target = $region25
    $region24: #{causal_self_attention_forward.5} parent=1 // pred_region
      %s148 = ssub.s32 512, 512
      %149 = vsyncadd [#allocation4], %s148
      %s150 = sshll.u32 [#allocation3], 4
      %s151 = int_to_ptr.vmem [resolvable:$true] %s150
      %156 = dma.vmem_to_hbm [thread:$0]  %s151, 512, %s3, [#allocation4], 128, 128, 8
    $region25: #{causal_self_attention_forward.5} parent=1 // pred_fallthru
      _
    // Predicated region
    $region26: #{causal_self_attention_forward.5} parent=1 // pred_check
      _
    $region27: #{causal_self_attention_forward.5} parent=1 // pred_check_branch
      %158 = sbr.rel (0) target = $region29
    $region28: #{causal_self_attention_forward.5} parent=1 // pred_region
      %159 = dma.done [#allocation4], 512
    $region29: #{causal_self_attention_forward.5} parent=1 // pred_fallthru
      _
    %160 = vsyncpa [#allocation4], 1

// kernel: causal_self_attention_forward.3
$region0: #{causal_self_attention_forward.3}
  #allocation0 [shape = 'u32[]', space=smem, size = 0x4, offset = 0x4, fixed_abs, tag = 'smem constant byte address 0x4 - core index']
  #allocation1 [shape = 'u32[144,128]{1,0:T(1,128)}', space=vmem, size = 0x12000, scoped, tag = 'internal scratch']
  #allocation2 [shape = 'f32[32,32]{1,0:T(8,128)}', space=vmem, size = 0x4000, scoped, tag = 'scratch operand']
  #allocation3 [shape = 'f32[32,32]{1,0:T(8,128)}', space=vmem, size = 0x4000, scoped, tag = 'scratch operand']
  #allocation4 [shape = 'f32[32,32]{1,0:T(8,128)}', space=vmem, size = 0x4000, scoped, tag = 'scratch operand']
  %s0 = inlined_call_operand.hbm [shape: f32[32,32], index: 0, kind: input, shape index: {}]
  %s1 = inlined_call_operand.vmem [shape: bf16[32,32], index: 1, kind: input, shape index: {}]
  %s2 = inlined_call_operand.hbm [shape: bf16[32,32], index: 2, kind: input, shape index: {}]
  %s3 = inlined_call_operand.vmem [shape: bf16[32,32], index: 3, kind: input, shape index: {}]
  %s4 = inlined_call_operand.vmem [shape: f32[1,32], index: 4, kind: input, shape index: {}]
  %s5 = inlined_call_operand.vmem [shape: f32[1,32], index: 5, kind: input, shape index: {}]
  %s6 = inlined_call_operand.hbm [shape: f32[1,32], index: 6, kind: input, shape index: {}]
  %s7 = inlined_call_operand.vmem [shape: bf16[32,32], index: 7, kind: output, shape index: {0}]
  %s8 = inlined_call_operand.vmem [shape: bf16[32,32], index: 8, kind: output, shape index: {1}]
  %s9 = inlined_call_operand.vmem [shape: bf16[32,32], index: 9, kind: output, shape index: {2}]
  %10 = xla_tuple %s7, %s8, %s9
  %s11 = sld [smem:[#allocation0]]
  $region74: #{causal_self_attention_forward.3} parent=0
    _
  %s13 = ssub.s32 1, %s11
  %s14 = scalar_select 0, %s13, %s11
  $region1: #{causal_self_attention_forward.3} parent=0
    #allocation5 [shape = 'u8[16384]{0}', space=vmem, size = 0x4000, scoped, tag = 'input window, operand 0, single buffered']
    #allocation6 [shape = 's32[1]{0}', space=sflag, size = 0x4, scoped, tag = 'scoped memory for causal_self_attention_forward.3']
    #allocation7 [shape = 'u8[8192]{0}', space=vmem, size = 0x2000, scoped, tag = 'input window, operand 2, single buffered']
    #allocation8 [shape = 's32[1]{0}', space=sflag, size = 0x4, scoped, tag = 'scoped memory for causal_self_attention_forward.3']
    #allocation9 [shape = 'u8[512]{0}', space=vmem, size = 0x400, scoped, tag = 'input window, operand 6, single buffered']
    %15 = vsyncpa [#allocation6], 0
    %16 = vsyncpa [#allocation8], 0
    // Predicated region
    $region2: #{causal_self_attention_forward.3} parent=1 // pred_check
      _
    $region3: #{causal_self_attention_forward.3} parent=1 // pred_check_branch
      %18 = sbr.rel (0) target = $region5
    $region4: #{causal_self_attention_forward.3} parent=1 // pred_region
      %s20 = ssub.s32 512, 512
      %21 = vsyncadd [#allocation6], %s20
      %s22 = sshll.u32 [#allocation5], 4
      %s23 = int_to_ptr.vmem [resolvable:$true] %s22
      %28 = dma.hbm_to_vmem [thread:$0]  %s0, 512, %s23, [#allocation6], 128, 128, 8
    $region5: #{causal_self_attention_forward.3} parent=1 // pred_fallthru
      _
    // Predicated region
    $region6: #{causal_self_attention_forward.3} parent=1 // pred_check
      _
    $region7: #{causal_self_attention_forward.3} parent=1 // pred_check_branch
      %30 = sbr.rel (0) target = $region9
    $region8: #{causal_self_attention_forward.3} parent=1 // pred_region
      _
    $region9: #{causal_self_attention_forward.3} parent=1 // pred_fallthru
      _
    // Predicated region
    $region10: #{causal_self_attention_forward.3} parent=1 // pred_check
      _
    $region11: #{causal_self_attention_forward.3} parent=1 // pred_check_branch
      %32 = sbr.rel (0) target = $region13
    $region12: #{causal_self_attention_forward.3} parent=1 // pred_region
      %s34 = ssub.s32 256, 256
      %35 = vsyncadd [#allocation8], %s34
      %s36 = sshll.u32 [#allocation7], 4
      %s37 = int_to_ptr.vmem [resolvable:$true] %s36
      %42 = dma.hbm_to_vmem [thread:$0]  %s2, 256, %s37, [#allocation8], 64, 64, 4
    $region13: #{causal_self_attention_forward.3} parent=1 // pred_fallthru
      _
    // Predicated region
    $region14: #{causal_self_attention_forward.3} parent=1 // pred_check
      _
    $region15: #{causal_self_attention_forward.3} parent=1 // pred_check_branch
      %44 = sbr.rel (0) target = $region17
    $region16: #{causal_self_attention_forward.3} parent=1 // pred_region
      _
    $region17: #{causal_self_attention_forward.3} parent=1 // pred_fallthru
      _
    // Predicated region
    $region18: #{causal_self_attention_forward.3} parent=1 // pred_check
      _
    $region19: #{causal_self_attention_forward.3} parent=1 // pred_check_branch
      %46 = sbr.rel (0) target = $region21
    $region20: #{causal_self_attention_forward.3} parent=1 // pred_region
      _
    $region21: #{causal_self_attention_forward.3} parent=1 // pred_fallthru
      _
    // Predicated region
    $region22: #{causal_self_attention_forward.3} parent=1 // pred_check
      _
    $region23: #{causal_self_attention_forward.3} parent=1 // pred_check_branch
      %48 = sbr.rel (0) target = $region25
    $region24: #{causal_self_attention_forward.3} parent=1 // pred_region
      _
    $region25: #{causal_self_attention_forward.3} parent=1 // pred_fallthru
      _
    // Predicated region
    $region26: #{causal_self_attention_forward.3} parent=1 // pred_check
      _
    $region27: #{causal_self_attention_forward.3} parent=1 // pred_check_branch
      %50 = sbr.rel (0) target = $region29
    $region28: #{causal_self_attention_forward.3} parent=1 // pred_region
      %s52 = ssub.s32 16, 16
      %53 = vsyncadd [#allocation8], %s52
      %s55 = sshll.u32 [#allocation9], 4
      %s56 = int_to_ptr.vmem [resolvable:$true] %s55
      %58 = dma.hbm_to_vmem [thread:$0]  %s6, 16, %s56, [#allocation8]
    $region29: #{causal_self_attention_forward.3} parent=1 // pred_fallthru
      _
    // Predicated region
    $region30: #{causal_self_attention_forward.3} parent=1 // pred_check
      _
    $region31: #{causal_self_attention_forward.3} parent=1 // pred_check_branch
      %60 = sbr.rel (0) target = $region33
    $region32: #{causal_self_attention_forward.3} parent=1 // pred_region
      %61 = dma.done [#allocation6], 512
    $region33: #{causal_self_attention_forward.3} parent=1 // pred_fallthru
      _
    // Predicated region
    $region34: #{causal_self_attention_forward.3} parent=1 // pred_check
      _
    $region35: #{causal_self_attention_forward.3} parent=1 // pred_check_branch
      %63 = sbr.rel (0) target = $region37
    $region36: #{causal_self_attention_forward.3} parent=1 // pred_region
      %64 = dma.done [#allocation8], 256
    $region37: #{causal_self_attention_forward.3} parent=1 // pred_fallthru
      _
    // Predicated region
    $region38: #{causal_self_attention_forward.3} parent=1 // pred_check
      _
    $region39: #{causal_self_attention_forward.3} parent=1 // pred_check_branch
      %66 = sbr.rel (0) target = $region41
    $region40: #{causal_self_attention_forward.3} parent=1 // pred_region
      %67 = dma.done [#allocation8], 16
    $region41: #{causal_self_attention_forward.3} parent=1 // pred_fallthru
      _
    %p69 = scmp.eq.s32.totalorder 0, 0
    // Predicated region
    $region42: #{causal_self_attention_forward.3} parent=1 // pred_check
      %p70 = pneg %p69
    $region43: #{causal_self_attention_forward.3} parent=1 // pred_check_branch
      %72 = sbr.rel (%p70) target = $region45
    $region44: #{causal_self_attention_forward.3} parent=1 // pred_region
      %vm73 = vcmask 261120
      %74 = vst.msk [vmem:[#allocation2] sm:$0xff] %vm73, 0.0
      %75 = vst.msk [vmem:[#allocation2 + $0x8] sm:$0xff] %vm73, 0.0
      %76 = vst.msk [vmem:[#allocation2 + $0x10] sm:$0xff] %vm73, 0.0
      %77 = vst.msk [vmem:[#allocation2 + $0x18] sm:$0xff] %vm73, 0.0
      %78 = vst.msk [vmem:[#allocation3] sm:$0xff] %vm73, 0.0
      %79 = vst.msk [vmem:[#allocation3 + $0x8] sm:$0xff] %vm73, 0.0
      %80 = vst.msk [vmem:[#allocation3 + $0x10] sm:$0xff] %vm73, 0.0
      %81 = vst.msk [vmem:[#allocation3 + $0x18] sm:$0xff] %vm73, 0.0
      %82 = vst.msk [vmem:[#allocation4] sm:$0xff] %vm73, 0.0
      %83 = vst.msk [vmem:[#allocation4 + $0x8] sm:$0xff] %vm73, 0.0
      %84 = vst.msk [vmem:[#allocation4 + $0x10] sm:$0xff] %vm73, 0.0
      %85 = vst.msk [vmem:[#allocation4 + $0x18] sm:$0xff] %vm73, 0.0
    $region45: #{causal_self_attention_forward.3} parent=1 // pred_fallthru
      _
    %v86 = vld [vmem:[#allocation5] sm:$0xff]
    %v87 = vld [vmem:[#allocation5 + $0x8] sm:$0xff]
    %v88 = vld [vmem:[#allocation5 + $0x10] sm:$0xff]
    %v89 = vld [vmem:[#allocation5 + $0x18] sm:$0xff]
    %v90 = vpack.c.bf16 %v87, %v86
    %v91 = vpack.c.bf16 %v89, %v88
    %v92 = vld [vmem:[#allocation2] sm:$0xff]
    %v93 = vld [vmem:[#allocation2 + $0x8] sm:$0xff]
    %v94 = vld [vmem:[#allocation2 + $0x10] sm:$0xff]
    %v95 = vld [vmem:[#allocation2 + $0x18] sm:$0xff]
    %v96 = vld [vmem:[%s1] sm:$0xf]
    %v97 = vld [vmem:[%s1 + $0x4] sm:$0xf]
    %v98 = vld [vmem:[%s1 + $0x8] sm:$0xf]
    %v99 = vld [vmem:[%s1 + $0xc] sm:$0xf]
    %v104 = vunpack.c.l.b16 %v96
    %v105 = vunpack.c.l.b16 %v97
    %v106 = vunpack.c.l.b16 %v98
    %v107 = vunpack.c.l.b16 %v99
    %v108 = vpack.c.b16 %v105, %v104
    %v109 = vpack.c.b16 %v107, %v106
    %vm112 = vcmask 261120
    %v114 = vsel %vm112, %v90, 0
    %v117 = vsel %vm112, %v91, 0
    %119 = vmatprep.subr.bf16.mxu0 0
    %120 = vmatpush1.bf16.msra.mxu0 %v108
    %121 = vmatprep.subr.bf16.mxu0 0
    %122 = vmatpush1.bf16.msra.mxu0 %v109
    %123 = vmatprep.subr.bf16.mxu0 0
    %124 = vmatpush1.bf16.msra.mxu0 0
    %125 = vmatprep.subr.bf16.mxu0 0
    %126 = vmatpush1.bf16.msra.mxu0 0
    %127 = vmatprep.subr.bf16.mxu0 0
    %128 = vmatpush1.bf16.msra.mxu0 0
    %129 = vmatprep.subr.bf16.mxu0 0
    %130 = vmatpush1.bf16.msra.mxu0 0
    %131 = vmatprep.subr.bf16.mxu0 0
    %132 = vmatpush1.bf16.msra.mxu0 0
    %133 = vmatprep.subr.bf16.mxu0 0
    %134 = vmatpush1.bf16.msra.mxu0 0
    %135 = vmatprep.subr.bf16.mxu0 0
    %136 = vmatpush1.bf16.msra.mxu0 0
    %137 = vmatprep.subr.bf16.mxu0 0
    %138 = vmatpush1.bf16.msra.mxu0 0
    %139 = vmatprep.subr.bf16.mxu0 0
    %140 = vmatpush1.bf16.msra.mxu0 0
    %141 = vmatprep.subr.bf16.mxu0 0
    %142 = vmatpush1.bf16.msra.mxu0 0
    %143 = vmatprep.subr.bf16.mxu0 0
    %144 = vmatpush1.bf16.msra.mxu0 0
    %145 = vmatprep.subr.bf16.mxu0 0
    %146 = vmatpush1.bf16.msra.mxu0 0
    %147 = vmatprep.subr.bf16.mxu0 0
    %148 = vmatpush1.bf16.msra.mxu0 0
    %149 = vmatprep.subr.bf16.mxu0 0
    %150 = vmatpush1.bf16.msra.mxu0 0
    %151 = vmatprep.mubr.bf16.mxu0 0
    %152 = vmatmul.mubr.bf16.gmra.mrb[0].mxu0 %v114
    %v153 = vpop.f32.mrb[0].mxu0
    %v154 = vadd.f32 0.0, %v153
    %v155 = vpop.f32.mrb[0].mxu0
    %v156 = vpop.f32.mrb[0].mxu0
    %v157 = vadd.f32 0.0, %v156
    %v158 = vpop.f32.mrb[0].mxu0
    %159 = vmatprep.mubr.bf16.mxu0 0
    %160 = vmatmul.mubr.bf16.gmra.mrb[0].mxu0 %v117
    %v161 = vpop.f32.mrb[0].mxu0
    %v162 = vadd.f32 0.0, %v161
    %v163 = vpop.f32.mrb[0].mxu0
    %v164 = vpop.f32.mrb[0].mxu0
    %v165 = vadd.f32 0.0, %v164
    %v166 = vpop.f32.mrb[0].mxu0
    %167 = vdwg.mxu0
    %v168 = vadd.f32 %v92, %v154
    %v169 = vadd.f32 %v93, %v157
    %v170 = vadd.f32 %v94, %v162
    %v171 = vadd.f32 %v95, %v165
    %172 = vst.msk [vmem:[#allocation2] sm:$0xff] %vm112, %v168
    %173 = vst.msk [vmem:[#allocation2 + $0x8] sm:$0xff] %vm112, %v169
    %174 = vst.msk [vmem:[#allocation2 + $0x10] sm:$0xff] %vm112, %v170
    %175 = vst.msk [vmem:[#allocation2 + $0x18] sm:$0xff] %vm112, %v171
    %v176 = vld [vmem:[#allocation3] sm:$0xff]
    %v177 = vld [vmem:[#allocation3 + $0x8] sm:$0xff]
    %v178 = vld [vmem:[#allocation3 + $0x10] sm:$0xff]
    %v179 = vld [vmem:[#allocation3 + $0x18] sm:$0xff]
    %v180 = vld [vmem:[#allocation7] sm:$0xf]
    %v181 = vld [vmem:[#allocation7 + $0x4] sm:$0xf]
    %v182 = vld [vmem:[#allocation7 + $0x8] sm:$0xf]
    %v183 = vld [vmem:[#allocation7 + $0xc] sm:$0xf]
    %v188 = vunpack.c.l.b16 %v180
    %v189 = vunpack.c.l.b16 %v181
    %v190 = vunpack.c.l.b16 %v182
    %v191 = vunpack.c.l.b16 %v183
    %v192 = vpack.c.b16 %v189, %v188
    %v193 = vpack.c.b16 %v191, %v190
    %196 = vmatprep.subr.bf16.mxu0 0
    %197 = vmatpush1.bf16.msra.mxu0 %v192
    %198 = vmatprep.subr.bf16.mxu0 0
    %199 = vmatpush1.bf16.msra.mxu0 %v193
    %200 = vmatprep.subr.bf16.mxu0 0
    %201 = vmatpush1.bf16.msra.mxu0 0
    %202 = vmatprep.subr.bf16.mxu0 0
    %203 = vmatpush1.bf16.msra.mxu0 0
    %204 = vmatprep.subr.bf16.mxu0 0
    %205 = vmatpush1.bf16.msra.mxu0 0
    %206 = vmatprep.subr.bf16.mxu0 0
    %207 = vmatpush1.bf16.msra.mxu0 0
    %208 = vmatprep.subr.bf16.mxu0 0
    %209 = vmatpush1.bf16.msra.mxu0 0
    %210 = vmatprep.subr.bf16.mxu0 0
    %211 = vmatpush1.bf16.msra.mxu0 0
    %212 = vmatprep.subr.bf16.mxu0 0
    %213 = vmatpush1.bf16.msra.mxu0 0
    %214 = vmatprep.subr.bf16.mxu0 0
    %215 = vmatpush1.bf16.msra.mxu0 0
    %216 = vmatprep.subr.bf16.mxu0 0
    %217 = vmatpush1.bf16.msra.mxu0 0
    %218 = vmatprep.subr.bf16.mxu0 0
    %219 = vmatpush1.bf16.msra.mxu0 0
    %220 = vmatprep.subr.bf16.mxu0 0
    %221 = vmatpush1.bf16.msra.mxu0 0
    %222 = vmatprep.subr.bf16.mxu0 0
    %223 = vmatpush1.bf16.msra.mxu0 0
    %224 = vmatprep.subr.bf16.mxu0 0
    %225 = vmatpush1.bf16.msra.mxu0 0
    %226 = vmatprep.subr.bf16.mxu0 0
    %227 = vmatpush1.bf16.msra.mxu0 0
    %228 = vmatprep.mubr.bf16.mxu0 0
    %229 = vmatmul.mubr.bf16.gmra.mrb[0].mxu0 %v114
    %v230 = vpop.f32.mrb[0].mxu0
    %v231 = vadd.f32 0.0, %v230
    %v232 = vpop.f32.mrb[0].mxu0
    %v233 = vpop.f32.mrb[0].mxu0
    %v234 = vadd.f32 0.0, %v233
    %v235 = vpop.f32.mrb[0].mxu0
    %236 = vmatprep.mubr.bf16.mxu0 0
    %237 = vmatmul.mubr.bf16.gmra.mrb[0].mxu0 %v117
    %v238 = vpop.f32.mrb[0].mxu0
    %v239 = vadd.f32 0.0, %v238
    %v240 = vpop.f32.mrb[0].mxu0
    %v241 = vpop.f32.mrb[0].mxu0
    %v242 = vadd.f32 0.0, %v241
    %v243 = vpop.f32.mrb[0].mxu0
    %244 = vdwg.mxu0
    %v245 = vadd.f32 %v176, %v231
    %v246 = vadd.f32 %v177, %v234
    %v247 = vadd.f32 %v178, %v239
    %v248 = vadd.f32 %v179, %v242
    %249 = vst.msk [vmem:[#allocation3] sm:$0xff] %vm112, %v245
    %250 = vst.msk [vmem:[#allocation3 + $0x8] sm:$0xff] %vm112, %v246
    %251 = vst.msk [vmem:[#allocation3 + $0x10] sm:$0xff] %vm112, %v247
    %252 = vst.msk [vmem:[#allocation3 + $0x18] sm:$0xff] %vm112, %v248
    %v253 = vld [vmem:[#allocation4] sm:$0xff]
    %v254 = vld [vmem:[#allocation4 + $0x8] sm:$0xff]
    %v255 = vld [vmem:[#allocation4 + $0x10] sm:$0xff]
    %v256 = vld [vmem:[#allocation4 + $0x18] sm:$0xff]
    %v257 = vld [vmem:[%s3] sm:$0xf]
    %v258 = vld [vmem:[%s3 + $0x4] sm:$0xf]
    %v259 = vld [vmem:[%s3 + $0x8] sm:$0xf]
    %v260 = vld [vmem:[%s3 + $0xc] sm:$0xf]
    %v265 = vunpack.c.l.b16 %v257
    %v266 = vunpack.c.l.b16 %v258
    %v267 = vunpack.c.l.b16 %v259
    %v268 = vunpack.c.l.b16 %v260
    %v269 = vpack.c.b16 %v266, %v265
    %v270 = vpack.c.b16 %v268, %v267
    %273 = vmatprep.subr.bf16.mxu0 0
    %274 = vmatpush1.bf16.msra.mxu0 %v269
    %275 = vmatprep.subr.bf16.mxu0 0
    %276 = vmatpush1.bf16.msra.mxu0 %v270
    %277 = vmatprep.subr.bf16.mxu0 0
    %278 = vmatpush1.bf16.msra.mxu0 0
    %279 = vmatprep.subr.bf16.mxu0 0
    %280 = vmatpush1.bf16.msra.mxu0 0
    %281 = vmatprep.subr.bf16.mxu0 0
    %282 = vmatpush1.bf16.msra.mxu0 0
    %283 = vmatprep.subr.bf16.mxu0 0
    %284 = vmatpush1.bf16.msra.mxu0 0
    %285 = vmatprep.subr.bf16.mxu0 0
    %286 = vmatpush1.bf16.msra.mxu0 0
    %287 = vmatprep.subr.bf16.mxu0 0
    %288 = vmatpush1.bf16.msra.mxu0 0
    %289 = vmatprep.subr.bf16.mxu0 0
    %290 = vmatpush1.bf16.msra.mxu0 0
    %291 = vmatprep.subr.bf16.mxu0 0
    %292 = vmatpush1.bf16.msra.mxu0 0
    %293 = vmatprep.subr.bf16.mxu0 0
    %294 = vmatpush1.bf16.msra.mxu0 0
    %295 = vmatprep.subr.bf16.mxu0 0
    %296 = vmatpush1.bf16.msra.mxu0 0
    %297 = vmatprep.subr.bf16.mxu0 0
    %298 = vmatpush1.bf16.msra.mxu0 0
    %299 = vmatprep.subr.bf16.mxu0 0
    %300 = vmatpush1.bf16.msra.mxu0 0
    %301 = vmatprep.subr.bf16.mxu0 0
    %302 = vmatpush1.bf16.msra.mxu0 0
    %303 = vmatprep.subr.bf16.mxu0 0
    %304 = vmatpush1.bf16.msra.mxu0 0
    %305 = vmatprep.mubr.bf16.mxu0 0
    %306 = vmatmul.mubr.bf16.gmra.mrb[0].mxu0 %v114
    %v307 = vpop.f32.mrb[0].mxu0
    %v308 = vadd.f32 0.0, %v307
    %v309 = vpop.f32.mrb[0].mxu0
    %v310 = vpop.f32.mrb[0].mxu0
    %v311 = vadd.f32 0.0, %v310
    %v312 = vpop.f32.mrb[0].mxu0
    %313 = vmatprep.mubr.bf16.mxu0 0
    %314 = vmatmul.mubr.bf16.gmra.mrb[0].mxu0 %v117
    %v315 = vpop.f32.mrb[0].mxu0
    %v316 = vadd.f32 0.0, %v315
    %v317 = vpop.f32.mrb[0].mxu0
    %v318 = vpop.f32.mrb[0].mxu0
    %v319 = vadd.f32 0.0, %v318
    %v320 = vpop.f32.mrb[0].mxu0
    %321 = vdwg.mxu0
    %v322 = vadd.f32 %v253, %v308
    %v323 = vadd.f32 %v254, %v311
    %v324 = vadd.f32 %v255, %v316
    %v325 = vadd.f32 %v256, %v319
    %326 = vst.msk [vmem:[#allocation4] sm:$0xff] %vm112, %v322
    %327 = vst.msk [vmem:[#allocation4 + $0x8] sm:$0xff] %vm112, %v323
    %328 = vst.msk [vmem:[#allocation4 + $0x10] sm:$0xff] %vm112, %v324
    %329 = vst.msk [vmem:[#allocation4 + $0x18] sm:$0xff] %vm112, %v325
    // Predicated region
    $region46: #{causal_self_attention_forward.3} parent=1 // pred_check
      %p330 = pneg %p69
    $region47: #{causal_self_attention_forward.3} parent=1 // pred_check_branch
      %332 = sbr.rel (%p330) target = $region49
    $region48: #{causal_self_attention_forward.3} parent=1 // pred_region
      %v333 = vld [vmem:[#allocation2] sm:$0xff]
      %v334 = vld [vmem:[#allocation2 + $0x8] sm:$0xff]
      %v335 = vld [vmem:[#allocation2 + $0x10] sm:$0xff]
      %v336 = vld [vmem:[#allocation2 + $0x18] sm:$0xff]
      %v337 = vld [vmem:[%s4] sm:$0x1]
      %v339 = vlaneseq
      %v340 = vshrl.u32 %v339, 7
      %v341 = vsub.s32 0, %v340
      %v342 = vrot.slane %v337, %v341
      %v344 = vadd.f32 %v333, %v342
      %v345 = vadd.f32 %v334, %v342
      %v346 = vadd.f32 %v335, %v342
      %v347 = vadd.f32 %v336, %v342
      %v348 = vpack.c.bf16 %v345, %v344
      %v349 = vpack.c.bf16 %v347, %v346
      %v352 = vunpack.c.l.b16 %v348
      %v353 = vunpack.c.h.b16 %v348
      %v354 = vunpack.c.l.b16 %v349
      %v355 = vunpack.c.h.b16 %v349
      %v356 = vpack.c.b16 %v352, %v352
      %v357 = vpack.c.b16 %v353, %v353
      %v358 = vpack.c.b16 %v354, %v354
      %v359 = vpack.c.b16 %v355, %v355
      %vm364 = vcmask 257024
      %365 = vst.msk [vmem:[%s7] sm:$0xf] %vm364, %v356
      %366 = vst.msk [vmem:[%s7 + $0x4] sm:$0xf] %vm364, %v357
      %367 = vst.msk [vmem:[%s7 + $0x8] sm:$0xf] %vm364, %v358
      %368 = vst.msk [vmem:[%s7 + $0xc] sm:$0xf] %vm364, %v359
      %v369 = vld [vmem:[#allocation3] sm:$0xff]
      %v370 = vld [vmem:[#allocation3 + $0x8] sm:$0xff]
      %v371 = vld [vmem:[#allocation3 + $0x10] sm:$0xff]
      %v372 = vld [vmem:[#allocation3 + $0x18] sm:$0xff]
      %v373 = vld [vmem:[%s5] sm:$0x1]
      %v375 = vlaneseq
      %v376 = vshrl.u32 %v375, 7
      %v377 = vsub.s32 0, %v376
      %v378 = vrot.slane %v373, %v377
      %v380 = vadd.f32 %v369, %v378
      %v381 = vadd.f32 %v370, %v378
      %v382 = vadd.f32 %v371, %v378
      %v383 = vadd.f32 %v372, %v378
      %v384 = vpack.c.bf16 %v381, %v380
      %v385 = vpack.c.bf16 %v383, %v382
      %v388 = vunpack.c.l.b16 %v384
      %v389 = vunpack.c.h.b16 %v384
      %v390 = vunpack.c.l.b16 %v385
      %v391 = vunpack.c.h.b16 %v385
      %v392 = vpack.c.b16 %v388, %v388
      %v393 = vpack.c.b16 %v389, %v389
      %v394 = vpack.c.b16 %v390, %v390
      %v395 = vpack.c.b16 %v391, %v391
      %400 = vst.msk [vmem:[%s8] sm:$0xf] %vm364, %v392
      %401 = vst.msk [vmem:[%s8 + $0x4] sm:$0xf] %vm364, %v393
      %402 = vst.msk [vmem:[%s8 + $0x8] sm:$0xf] %vm364, %v394
      %403 = vst.msk [vmem:[%s8 + $0xc] sm:$0xf] %vm364, %v395
      %v404 = vld [vmem:[#allocation4] sm:$0xff]
      %v405 = vld [vmem:[#allocation4 + $0x8] sm:$0xff]
      %v406 = vld [vmem:[#allocation4 + $0x10] sm:$0xff]
      %v407 = vld [vmem:[#allocation4 + $0x18] sm:$0xff]
      %v408 = vld [vmem:[#allocation9] sm:$0x1]
      %v410 = vlaneseq
      %v411 = vshrl.u32 %v410, 7
      %v412 = vsub.s32 0, %v411
      %v413 = vrot.slane %v408, %v412
      %v415 = vadd.f32 %v404, %v413
      %v416 = vadd.f32 %v405, %v413
      %v417 = vadd.f32 %v406, %v413
      %v418 = vadd.f32 %v407, %v413
      %v419 = vpack.c.bf16 %v416, %v415
      %v420 = vpack.c.bf16 %v418, %v417
      %v423 = vunpack.c.l.b16 %v419
      %v424 = vunpack.c.h.b16 %v419
      %v425 = vunpack.c.l.b16 %v420
      %v426 = vunpack.c.h.b16 %v420
      %v427 = vpack.c.b16 %v423, %v423
      %v428 = vpack.c.b16 %v424, %v424
      %v429 = vpack.c.b16 %v425, %v425
      %v430 = vpack.c.b16 %v426, %v426
      %435 = vst.msk [vmem:[%s9] sm:$0xf] %vm364, %v427
      %436 = vst.msk [vmem:[%s9 + $0x4] sm:$0xf] %vm364, %v428
      %437 = vst.msk [vmem:[%s9 + $0x8] sm:$0xf] %vm364, %v429
      %438 = vst.msk [vmem:[%s9 + $0xc] sm:$0xf] %vm364, %v430
    $region49: #{causal_self_attention_forward.3} parent=1 // pred_fallthru
      _
    // Predicated region
    $region50: #{causal_self_attention_forward.3} parent=1 // pred_check
      _
    $region51: #{causal_self_attention_forward.3} parent=1 // pred_check_branch
      %440 = sbr.rel (0) target = $region53
    $region52: #{causal_self_attention_forward.3} parent=1 // pred_region
      _
    $region53: #{causal_self_attention_forward.3} parent=1 // pred_fallthru
      _
    // Predicated region
    $region54: #{causal_self_attention_forward.3} parent=1 // pred_check
      _
    $region55: #{causal_self_attention_forward.3} parent=1 // pred_check_branch
      %442 = sbr.rel (0) target = $region57
    $region56: #{causal_self_attention_forward.3} parent=1 // pred_region
      _
    $region57: #{causal_self_attention_forward.3} parent=1 // pred_fallthru
      _
    // Predicated region
    $region58: #{causal_self_attention_forward.3} parent=1 // pred_check
      _
    $region59: #{causal_self_attention_forward.3} parent=1 // pred_check_branch
      %444 = sbr.rel (0) target = $region61
    $region60: #{causal_self_attention_forward.3} parent=1 // pred_region
      _
    $region61: #{causal_self_attention_forward.3} parent=1 // pred_fallthru
      _
    // Predicated region
    $region62: #{causal_self_attention_forward.3} parent=1 // pred_check
      _
    $region63: #{causal_self_attention_forward.3} parent=1 // pred_check_branch
      %446 = sbr.rel (0) target = $region65
    $region64: #{causal_self_attention_forward.3} parent=1 // pred_region
      _
    $region65: #{causal_self_attention_forward.3} parent=1 // pred_fallthru
      _
    // Predicated region
    $region66: #{causal_self_attention_forward.3} parent=1 // pred_check
      _
    $region67: #{causal_self_attention_forward.3} parent=1 // pred_check_branch
      %448 = sbr.rel (0) target = $region69
    $region68: #{causal_self_attention_forward.3} parent=1 // pred_region
      _
    $region69: #{causal_self_attention_forward.3} parent=1 // pred_fallthru
      _
    // Predicated region
    $region70: #{causal_self_attention_forward.3} parent=1 // pred_check
      _
    $region71: #{causal_self_attention_forward.3} parent=1 // pred_check_branch
      %450 = sbr.rel (0) target = $region73
    $region72: #{causal_self_attention_forward.3} parent=1 // pred_region
      _
    $region73: #{causal_self_attention_forward.3} parent=1 // pred_fallthru
      _
    %451 = vsyncpa [#allocation6], 1
    %452 = vsyncpa [#allocation8], 1

// kernel: causal_self_attention_forward.4
$region0: #{causal_self_attention_forward.4}
  #allocation0 [shape = 'u32[]', space=smem, size = 0x4, offset = 0x4, fixed_abs, tag = 'smem constant byte address 0x4 - core index']
  #allocation1 [shape = 'u32[144,128]{1,0:T(1,128)}', space=vmem, size = 0x12000, scoped, tag = 'internal scratch']
  #allocation2 [shape = 'f32[16,4]{1,0:T(8,128)}', space=vmem, size = 0x2000, scoped, tag = 'scratch operand']
  #allocation3 [shape = 'f32[16,4]{1,0:T(8,128)}', space=vmem, size = 0x2000, scoped, tag = 'scratch operand']
  #allocation4 [shape = 'f32[16,32]{1,0:T(8,128)}', space=vmem, size = 0x2000, scoped, tag = 'scratch operand']
  #allocation5 [shape = 's32[1]{0}', space=sflag, size = 0x4, scoped, tag = 'scoped memory for causal_self_attention_forward.4']
  #allocation6 [shape = 's32[1]{0:T(128)S(6)}', space=smem, size = 0x200, scoped, tag = 'prefetched SMEM operand 0']
  #allocation7 [shape = 's32[1]{0:T(128)S(6)}', space=smem, size = 0x200, scoped, tag = 'prefetched SMEM operand 1']
  %s0 = inlined_call_operand.<no memory space> [shape: s32[1], index: 0, kind: input, shape index: {}, may-alias: {0,1}]
  %s1 = inlined_call_operand.<no memory space> [shape: s32[1], index: 1, kind: input, shape index: {}, may-alias: {0,1}]
  %s2 = inlined_call_operand.vmem [shape: bf16[2,16,32], index: 2, kind: input, shape index: {}]
  %s3 = inlined_call_operand.vmem [shape: bf16[2,16,32], index: 3, kind: input, shape index: {}]
  %s4 = inlined_call_operand.vmem [shape: bf16[2,16,32], index: 4, kind: input, shape index: {}]
  %s5 = inlined_call_operand.vmem [shape: bf16[2,16,32], index: 5, kind: output, shape index: {}]
  %s6 = sld [smem:[#allocation0]]
  $region57: #{causal_self_attention_forward.4} parent=0
    _
  %s8 = ssub.s32 1, %s6
  %s9 = scalar_select 0, %s8, %s6
  %10 = sst [smem:[#allocation6]] %s0
  %11 = sst [smem:[#allocation7]] %s1
  loop: start=0, step=1, limit=4
  $region2: #{causal_self_attention_forward.4} parent=0 // loop_pre_header
    _
  $region3: #{causal_self_attention_forward.4} parent=0 // loop_header
    %s13 = sphi 0, %s17
    %p14 = scmp.ge.s32.totalorder %s13, 4
    %s20 = sphi 0, %s32
    %s21 = sphi 0, %s28
    %s22 = sphi 0, %s20
    %s23 = sphi 0, %s21
    %s24 = sphi 0, %s22
    %s25 = sphi 0, %s23
    %s39 = sphi 0, %s41
    %s42 = sphi 0, %s39
    %s43 = sphi 0, %s42
    %s59 = sphi 0, %s43
    %s69 = sphi 0, %s71
    %s72 = sphi 0, %s69
    %s73 = sphi 0, %s72
    %s89 = sphi 0, %s73
    %s99 = sphi 0, %s101
    %s102 = sphi 0, %s99
    %s103 = sphi 0, %s102
    %s119 = sphi 0, %s103
    %s129 = sphi 0, %s131
    %s132 = sphi 0, %s129
    %s133 = sphi 0, %s132
    %s149 = sphi 0, %s133
  $region4: #{causal_self_attention_forward.4} parent=0 // loop_header_branch
    %16 = sbr.rel (%p14) target = $region8
  $region5: #{causal_self_attention_forward.4} parent=0 // loop_body
    %s18 = ssub.s32 %s13, 1
    %s19 = ssub.s32 %s13, 2
    %s26 = sadd.s32 1, %s21
    %p27 = scmp.ge.s32.totalorder %s26, 1
    %s28 = scalar_select %p27, 0, %s26
    %s29 = sadd.s32 1, %s20
    %s30 = scalar_select %p27, %s29, %s20
    %p31 = scmp.ge.s32.totalorder %s30, 2
    %s32 = scalar_select %p31, 0, %s30
    %s33 = sld [smem:[#allocation6 + %s21]]
    %s34 = sld [smem:[#allocation6 + %s28]]
    %s35 = ssub.s32 %s20, %s32
    %s36 = ssub.s32 %s33, %s34
    %s37 = sor.u32 %s35, %s36
    %p38 = scmp.eq.s32.totalorder %s37, 0
    %s40 = sadd.s32 %s39, 1
    %s41 = scalar_select %p38, %s39, %s40
    %p44 = pneg %p38
    %p45 = scmp.eq.s32.totalorder %s13, 1
    %p46 = por %p44, %p45
    %p47 = scmp.ne.s32.totalorder %s39, %s42
    %p48 = scmp.eq.s32.totalorder %s13, 0
    %p49 = por %p47, %p48
    %p50 = scmp.ne.s32.totalorder %s39, %s42
    %p51 = scmp.eq.s32.totalorder %s18, 1
    %p52 = por %p50, %p51
    %p53 = scmp.ne.s32.totalorder %s42, %s43
    %p54 = scmp.eq.s32.totalorder %s18, 0
    %p55 = por %p53, %p54
    %p56 = scmp.ne.s32.totalorder %s42, %s43
    %p57 = scmp.eq.s32.totalorder %s19, 1
    %p58 = por %p56, %p57
    %p60 = scmp.ne.s32.totalorder %s43, %s59
    %p61 = scmp.eq.s32.totalorder %s19, 0
    %p62 = por %p60, %p61
    %s63 = sld [smem:[#allocation7 + %s21]]
    %s64 = sld [smem:[#allocation7 + %s28]]
    %s65 = ssub.s32 %s20, %s32
    %s66 = ssub.s32 %s63, %s64
    %s67 = sor.u32 %s65, %s66
    %p68 = scmp.eq.s32.totalorder %s67, 0
    %s70 = sadd.s32 %s69, 1
    %s71 = scalar_select %p68, %s69, %s70
    %p74 = pneg %p68
    %p75 = scmp.eq.s32.totalorder %s13, 1
    %p76 = por %p74, %p75
    %p77 = scmp.ne.s32.totalorder %s69, %s72
    %p78 = scmp.eq.s32.totalorder %s13, 0
    %p79 = por %p77, %p78
    %p80 = scmp.ne.s32.totalorder %s69, %s72
    %p81 = scmp.eq.s32.totalorder %s18, 1
    %p82 = por %p80, %p81
    %p83 = scmp.ne.s32.totalorder %s72, %s73
    %p84 = scmp.eq.s32.totalorder %s18, 0
    %p85 = por %p83, %p84
    %p86 = scmp.ne.s32.totalorder %s72, %s73
    %p87 = scmp.eq.s32.totalorder %s19, 1
    %p88 = por %p86, %p87
    %p90 = scmp.ne.s32.totalorder %s73, %s89
    %p91 = scmp.eq.s32.totalorder %s19, 0
    %p92 = por %p90, %p91
    %s93 = sld [smem:[#allocation7 + %s21]]
    %s94 = sld [smem:[#allocation7 + %s28]]
    %s95 = ssub.s32 %s20, %s32
    %s96 = ssub.s32 %s93, %s94
    %s97 = sor.u32 %s95, %s96
    %p98 = scmp.eq.s32.totalorder %s97, 0
    %s100 = sadd.s32 %s99, 1
    %s101 = scalar_select %p98, %s99, %s100
    %p104 = pneg %p98
    %p105 = scmp.eq.s32.totalorder %s13, 1
    %p106 = por %p104, %p105
    %p107 = scmp.ne.s32.totalorder %s99, %s102
    %p108 = scmp.eq.s32.totalorder %s13, 0
    %p109 = por %p107, %p108
    %p110 = scmp.ne.s32.totalorder %s99, %s102
    %p111 = scmp.eq.s32.totalorder %s18, 1
    %p112 = por %p110, %p111
    %p113 = scmp.ne.s32.totalorder %s102, %s103
    %p114 = scmp.eq.s32.totalorder %s18, 0
    %p115 = por %p113, %p114
    %p116 = scmp.ne.s32.totalorder %s102, %s103
    %p117 = scmp.eq.s32.totalorder %s19, 1
    %p118 = por %p116, %p117
    %p120 = scmp.ne.s32.totalorder %s103, %s119
    %p121 = scmp.eq.s32.totalorder %s19, 0
    %p122 = por %p120, %p121
    %s123 = sld [smem:[#allocation6 + %s21]]
    %s124 = sld [smem:[#allocation6 + %s28]]
    %s125 = ssub.s32 %s20, %s32
    %s126 = ssub.s32 %s123, %s124
    %s127 = sor.u32 %s125, %s126
    %p128 = scmp.eq.s32.totalorder %s127, 0
    %s130 = sadd.s32 %s129, 1
    %s131 = scalar_select %p128, %s129, %s130
    %p134 = pneg %p128
    %p135 = scmp.eq.s32.totalorder %s13, 1
    %p136 = por %p134, %p135
    %p137 = scmp.ne.s32.totalorder %s129, %s132
    %p138 = scmp.eq.s32.totalorder %s13, 0
    %p139 = por %p137, %p138
    %p140 = scmp.ne.s32.totalorder %s129, %s132
    %p141 = scmp.eq.s32.totalorder %s18, 1
    %p142 = por %p140, %p141
    %p143 = scmp.ne.s32.totalorder %s132, %s133
    %p144 = scmp.eq.s32.totalorder %s18, 0
    %p145 = por %p143, %p144
    %p146 = scmp.ne.s32.totalorder %s132, %s133
    %p147 = scmp.eq.s32.totalorder %s19, 1
    %p148 = por %p146, %p147
    %p150 = scmp.ne.s32.totalorder %s133, %s149
    %p151 = scmp.eq.s32.totalorder %s19, 0
    %p152 = por %p150, %p151
    %p153 = scmp.le.s32.totalorder 1, %s13
    %p154 = scmp.lt.s32.totalorder %s13, 3
    %p155 = pnand %p153, %p154
    %p156 = pneg %p155
    // Predicated region
    $region9: #{causal_self_attention_forward.4} parent=5 // pred_check
      _
    $region10: #{causal_self_attention_forward.4} parent=5 // pred_check_branch
      %158 = sbr.rel (%p155) target = $region12
    $region11: #{causal_self_attention_forward.4} parent=5 // pred_region
      %s159 = ssub.s32 %s13, 1
    $region12: #{causal_self_attention_forward.4} parent=5 // pred_fallthru
      _
    %p160 = scmp.lt.s32.totalorder %s13, 2
    // Predicated region
    $region13: #{causal_self_attention_forward.4} parent=5 // pred_check
      %p161 = pneg %p160
    $region14: #{causal_self_attention_forward.4} parent=5 // pred_check_branch
      %163 = sbr.rel (%p161) target = $region16
    $region15: #{causal_self_attention_forward.4} parent=5 // pred_region
      // Predicated region
      $region17: #{causal_self_attention_forward.4} parent=15 // pred_check
        %p164 = pneg %p49
      $region18: #{causal_self_attention_forward.4} parent=15 // pred_check_branch
        %166 = sbr.rel (%p164) target = $region20
      $region19: #{causal_self_attention_forward.4} parent=15 // pred_region
        %s167 = sld [smem:[#allocation6 + %s21]]
        %s168 = smul.u32 2, %s167
        %p169 = scmp.lt.s32.totalorder %s20, 1
        %s170 = scalar_select %p169, %s20, 1
        %p171 = scmp.lt.s32.totalorder %s168, 1
        %s172 = scalar_select %p171, %s168, 1
        %s173 = smul.addr %s170, 2
        %s174 = sadd.s32 %s172, %s173
        %s175 = smul.addr %s174, 4
        %s176 = scalar_lea.vmem %s2, %s175
        %s177 = sld [smem:[#allocation6 + %s21]]
        %s178 = smul.u32 2, %s177
      $region20: #{causal_self_attention_forward.4} parent=15 // pred_fallthru
        _
      // Predicated region
      $region21: #{causal_self_attention_forward.4} parent=15 // pred_check
        %p179 = pneg %p79
      $region22: #{causal_self_attention_forward.4} parent=15 // pred_check_branch
        %181 = sbr.rel (%p179) target = $region24
      $region23: #{causal_self_attention_forward.4} parent=15 // pred_region
        %s182 = sld [smem:[#allocation7 + %s21]]
        %s183 = smul.u32 2, %s182
        %p184 = scmp.lt.s32.totalorder %s20, 1
        %s185 = scalar_select %p184, %s20, 1
        %p186 = scmp.lt.s32.totalorder %s183, 1
        %s187 = scalar_select %p186, %s183, 1
        %s188 = smul.addr %s185, 2
        %s189 = sadd.s32 %s187, %s188
        %s190 = smul.addr %s189, 4
        %s191 = scalar_lea.vmem %s3, %s190
        %s192 = sld [smem:[#allocation7 + %s21]]
        %s193 = smul.u32 2, %s192
      $region24: #{causal_self_attention_forward.4} parent=15 // pred_fallthru
        _
      // Predicated region
      $region25: #{causal_self_attention_forward.4} parent=15 // pred_check
        %p194 = pneg %p109
      $region26: #{causal_self_attention_forward.4} parent=15 // pred_check_branch
        %196 = sbr.rel (%p194) target = $region28
      $region27: #{causal_self_attention_forward.4} parent=15 // pred_region
        %s197 = sld [smem:[#allocation7 + %s21]]
        %s198 = smul.u32 2, %s197
        %p199 = scmp.lt.s32.totalorder %s20, 1
        %s200 = scalar_select %p199, %s20, 1
        %p201 = scmp.lt.s32.totalorder %s198, 1
        %s202 = scalar_select %p201, %s198, 1
        %s203 = smul.addr %s200, 2
        %s204 = sadd.s32 %s202, %s203
        %s205 = smul.addr %s204, 4
        %s206 = scalar_lea.vmem %s4, %s205
        %s207 = sld [smem:[#allocation7 + %s21]]
        %s208 = smul.u32 2, %s207
      $region28: #{causal_self_attention_forward.4} parent=15 // pred_fallthru
        _
    $region16: #{causal_self_attention_forward.4} parent=5 // pred_fallthru
      _
    %p209 = scmp.le.s32.totalorder 1, %s13
    %p210 = scmp.lt.s32.totalorder %s13, 3
    %p211 = pnand %p209, %p210
    %p212 = pneg %p211
    // Predicated region
    $region29: #{causal_self_attention_forward.4} parent=5 // pred_check
      _
    $region30: #{causal_self_attention_forward.4} parent=5 // pred_check_branch
      %214 = sbr.rel (%p211) target = $region32
    $region31: #{causal_self_attention_forward.4} parent=5 // pred_region
      %s215 = ssub.s32 %s13, 1
      %s216 = sld [smem:[#allocation6 + %s23]]
      %s217 = smul.u32 2, %s216
      %p218 = scmp.lt.s32.totalorder %s22, 1
      %s219 = scalar_select %p218, %s22, 1
      %p220 = scmp.lt.s32.totalorder %s217, 1
      %s221 = scalar_select %p220, %s217, 1
      %s222 = smul.addr %s219, 2
      %s223 = sadd.s32 %s221, %s222
      %s224 = smul.addr %s223, 4
      %s225 = scalar_lea.vmem %s2, %s224
      %p226 = pneg %p55
      %p227 = pneg %p52
      %s228 = sld [smem:[#allocation7 + %s23]]
      %s229 = smul.u32 2, %s228
      %p230 = scmp.lt.s32.totalorder %s22, 1
      %s231 = scalar_select %p230, %s22, 1
      %p232 = scmp.lt.s32.totalorder %s229, 1
      %s233 = scalar_select %p232, %s229, 1
      %s234 = smul.addr %s231, 2
      %s235 = sadd.s32 %s233, %s234
      %s236 = smul.addr %s235, 4
      %s237 = scalar_lea.vmem %s3, %s236
      %p238 = pneg %p85
      %p239 = pneg %p82
      %s240 = sld [smem:[#allocation7 + %s23]]
      %s241 = smul.u32 2, %s240
      %p242 = scmp.lt.s32.totalorder %s22, 1
      %s243 = scalar_select %p242, %s22, 1
      %p244 = scmp.lt.s32.totalorder %s241, 1
      %s245 = scalar_select %p244, %s241, 1
      %s246 = smul.addr %s243, 2
      %s247 = sadd.s32 %s245, %s246
      %s248 = smul.addr %s247, 4
      %s249 = scalar_lea.vmem %s4, %s248
      %p250 = pneg %p115
      %p251 = pneg %p112
      %p252 = pneg %p145
      %p253 = pneg %p142
      %s254 = sld [smem:[#allocation6 + %s23]]
      %s255 = smul.u32 2, %s254
      %p256 = scmp.lt.s32.totalorder %s22, 1
      %s257 = scalar_select %p256, %s22, 1
      %p258 = scmp.lt.s32.totalorder %s255, 1
      %s259 = scalar_select %p258, %s255, 1
      %s260 = smul.addr %s257, 2
      %s261 = sadd.s32 %s259, %s260
      %s262 = smul.addr %s261, 4
      %s263 = scalar_lea.vmem %s5, %s262
      %s264 = sld [smem:[#allocation6 + %s23]]
      %s265 = smul.u32 2, %s264
      %p266 = scmp.lt.s32.totalorder %s22, 1
      %s267 = scalar_select %p266, %s22, 1
      %p268 = scmp.lt.s32.totalorder %s265, 1
      %s269 = scalar_select %p268, %s265, 1
      %s270 = smul.addr %s267, 2
      %s271 = sadd.s32 %s269, %s270
      %s272 = smul.addr %s271, 4
      %s273 = scalar_lea.vmem %s2, %s272
      %s274 = sld [smem:[#allocation6 + %s23]]
      %s275 = smul.u32 2, %s274
      %s276 = sld [smem:[#allocation7 + %s23]]
      %s277 = smul.u32 2, %s276
      %p278 = scmp.lt.s32.totalorder %s22, 1
      %s279 = scalar_select %p278, %s22, 1
      %p280 = scmp.lt.s32.totalorder %s277, 1
      %s281 = scalar_select %p280, %s277, 1
      %s282 = smul.addr %s279, 2
      %s283 = sadd.s32 %s281, %s282
      %s284 = smul.addr %s283, 4
      %s285 = scalar_lea.vmem %s3, %s284
      %s286 = sld [smem:[#allocation7 + %s23]]
      %s287 = smul.u32 2, %s286
      %s288 = sld [smem:[#allocation7 + %s23]]
      %s289 = smul.u32 2, %s288
      %p290 = scmp.lt.s32.totalorder %s22, 1
      %s291 = scalar_select %p290, %s22, 1
      %p292 = scmp.lt.s32.totalorder %s289, 1
      %s293 = scalar_select %p292, %s289, 1
      %s294 = smul.addr %s291, 2
      %s295 = sadd.s32 %s293, %s294
      %s296 = smul.addr %s295, 4
      %s297 = scalar_lea.vmem %s4, %s296
      %s298 = sld [smem:[#allocation7 + %s23]]
      %s299 = smul.u32 2, %s298
      %s300 = sld [smem:[#allocation6 + %s23]]
      %s301 = smul.u32 2, %s300
      %p302 = scmp.lt.s32.totalorder %s22, 1
      %s303 = scalar_select %p302, %s22, 1
      %p304 = scmp.lt.s32.totalorder %s301, 1
      %s305 = scalar_select %p304, %s301, 1
      %s306 = smul.addr %s303, 2
      %s307 = sadd.s32 %s305, %s306
      %s308 = smul.addr %s307, 4
      %s309 = scalar_lea.vmem %s5, %s308
      %s310 = sld [smem:[#allocation6 + %s23]]
      %s311 = smul.u32 2, %s310
      %s314 = sld [smem:[#allocation6 + %s23]]
      %s315 = sld [smem:[#allocation7 + %s23]]
      %p316 = scmp.eq.s32.totalorder %s315, 0
      // Predicated region
      $region33: #{causal_self_attention_forward.4} parent=31 // pred_check
        %p317 = pneg %p316
      $region34: #{causal_self_attention_forward.4} parent=31 // pred_check_branch
        %319 = sbr.rel (%p317) target = $region36
      $region35: #{causal_self_attention_forward.4} parent=31 // pred_region
        %vm320 = vcmask 31744
        %321 = vst.msk [vmem:[#allocation2] sm:$0xff] %vm320, -1e+30
        %322 = vst.msk [vmem:[#allocation2 + $0x8] sm:$0xff] %vm320, -1e+30
        %323 = vst.msk [vmem:[#allocation3] sm:$0xff] %vm320, 0.0
        %324 = vst.msk [vmem:[#allocation3 + $0x8] sm:$0xff] %vm320, 0.0
        %vm325 = vcmask 261120
        %326 = vst.msk [vmem:[#allocation4] sm:$0xff] %vm325, 0.0
        %327 = vst.msk [vmem:[#allocation4 + $0x8] sm:$0xff] %vm325, 0.0
      $region36: #{causal_self_attention_forward.4} parent=31 // pred_fallthru
        _
      %v328 = vld [vmem:[%s273] sm:$0xf]
      %v329 = vld [vmem:[%s273 + $0x4] sm:$0xf]
      %v330 = vmul.bf16 %v328, 1052065461
      %v331 = vmul.bf16 %v329, 1052065461
      %v332 = vld [vmem:[%s285] sm:$0xf]
      %v333 = vld [vmem:[%s285 + $0x4] sm:$0xf]
      %v334 = vld [vmem:[%s297] sm:$0xf]
      %v335 = vld [vmem:[%s297 + $0x4] sm:$0xf]
      %p336 = scmp.lt.s32.totalorder %s315, %s314
      // Predicated region
      $region37: #{causal_self_attention_forward.4} parent=31 // pred_check
        %p337 = pneg %p336
      $region38: #{causal_self_attention_forward.4} parent=31 // pred_check_branch
        %339 = sbr.rel (%p337) target = $region40
      $region39: #{causal_self_attention_forward.4} parent=31 // pred_region
        %v342 = vunpack.c.l.b16 %v330
        %v343 = vunpack.c.l.b16 %v331
        %v344 = vpack.c.b16 %v343, %v342
        %v347 = vunpack.c.l.b16 %v332
        %v348 = vunpack.c.l.b16 %v333
        %v349 = vpack.c.b16 %v348, %v347
        %vm350 = vcmask 64512
        %v352 = vsel %vm350, %v344, 0
        %v355 = vsel %vm350, %v349, 0
        %357 = vmatprep.subr.bf16.mxu0 0
        %358 = vmatpush1.bf16.xpose.msra.mxu0 %v355
        %359 = vmatprep.subr.bf16.mxu0 0
        %360 = vmatpush1.bf16.xpose.msra.mxu0 0
        %361 = vmatprep.subr.bf16.mxu0 0
        %362 = vmatpush1.bf16.xpose.msra.mxu0 0
        %363 = vmatprep.subr.bf16.mxu0 0
        %364 = vmatpush1.bf16.xpose.msra.mxu0 0
        %365 = vmatprep.subr.bf16.mxu0 0
        %366 = vmatpush1.bf16.xpose.msra.mxu0 0
        %367 = vmatprep.subr.bf16.mxu0 0
        %368 = vmatpush1.bf16.xpose.msra.mxu0 0
        %369 = vmatprep.subr.bf16.mxu0 0
        %370 = vmatpush1.bf16.xpose.msra.mxu0 0
        %371 = vmatprep.subr.bf16.mxu0 0
        %372 = vmatpush1.bf16.xpose.msra.mxu0 0
        %373 = vmatprep.subr.bf16.mxu0 0
        %374 = vmatpush1.bf16.xpose.msra.mxu0 0
        %375 = vmatprep.subr.bf16.mxu0 0
        %376 = vmatpush1.bf16.xpose.msra.mxu0 0
        %377 = vmatprep.subr.bf16.mxu0 0
        %378 = vmatpush1.bf16.xpose.msra.mxu0 0
        %379 = vmatprep.subr.bf16.mxu0 0
        %380 = vmatpush1.bf16.xpose.msra.mxu0 0
        %381 = vmatprep.subr.bf16.mxu0 0
        %382 = vmatpush1.bf16.xpose.msra.mxu0 0
        %383 = vmatprep.subr.bf16.mxu0 0
        %384 = vmatpush1.bf16.xpose.msra.mxu0 0
        %385 = vmatprep.subr.bf16.mxu0 0
        %386 = vmatpush1.bf16.xpose.msra.mxu0 0
        %387 = vmatprep.subr.bf16.mxu0 0
        %388 = vmatpush1.bf16.xpose.msra.mxu0 0
        %389 = vmatprep.mubr.bf16.mxu0 0
        %390 = vmatmul.mubr.bf16.gmra.mrb[0].mxu0 %v352
        %v391 = vpop.f32.mrb[0].mxu0
        %v392 = vadd.f32 0.0, %v391
        %v393 = vpop.f32.mrb[0].mxu0
        %v394 = vpop.f32.mrb[0].mxu0
        %v395 = vadd.f32 0.0, %v394
        %v396 = vpop.f32.mrb[0].mxu0
        %397 = vdwg.mxu0
        %v398 = vld [vmem:[#allocation2] sm:$0xff]
        %v399 = vld [vmem:[#allocation2 + $0x8] sm:$0xff]
        %v400 = vld [vmem:[#allocation3] sm:$0xff]
        %v401 = vld [vmem:[#allocation3 + $0x8] sm:$0xff]
        %vm402 = vcmask 130048
        %v403 = vsel %vm402, %v392, -inf
        %404 = vmax.xlane.f32.xlu0 %v403
        %v405 = vpop.xlane.xlu0 %404
        %v406 = vsel %vm402, %v395, -inf
        %407 = vmax.xlane.f32.xlu0 %v406
        %v408 = vpop.xlane.xlu0 %407
        %v409 = vmax.f32 %v398, %v405
        %v410 = vmax.f32 %v399, %v408
        %v411 = vsub.f32 %v398, %v409
        %v412 = vsub.f32 %v399, %v410
        %v413 = vmul.f32 %v411, 1.442695
        %v414 = vpow.pop %v413
        %v415 = vmul.f32 %v412, 1.442695
        %v416 = vpow.pop %v415
        %418 = vset.pattern.permute.xlu0 0
        %419 = vperm.xlu0 %418, %v409
        %v420 = vpop.permute.xlu0 %419
        %423 = vset.pattern.permute.xlu0 0
        %424 = vperm.xlu0 %423, %v410
        %v425 = vpop.permute.xlu0 %424
        %v427 = vsub.f32 %v392, %v420
        %v428 = vsub.f32 %v395, %v425
        %v429 = vmul.f32 %v427, 1.442695
        %v430 = vpow.pop %v429
        %v431 = vmul.f32 %v428, 1.442695
        %v432 = vpow.pop %v431
        %v433 = vmul.f32 %v414, %v400
        %v434 = vmul.f32 %v416, %v401
        %v435 = vsel %vm402, %v430, 0.0
        %436 = vadd.xlane.f32.xlu0 %v435
        %v437 = vpop.xlane.xlu0 %436
        %v438 = vsel %vm402, %v432, 0.0
        %439 = vadd.xlane.f32.xlu0 %v438
        %v440 = vpop.xlane.xlu0 %439
        %v441 = vadd.f32 %v433, %v437
        %v442 = vadd.f32 %v434, %v440
        %vm443 = vcmask 7168
        %444 = vst.msk [vmem:[#allocation3] sm:$0xff] %vm443, %v441
        %445 = vst.msk [vmem:[#allocation3 + $0x8] sm:$0xff] %vm443, %v442
        %v446 = vld [vmem:[#allocation4] sm:$0xff]
        %v447 = vld [vmem:[#allocation4 + $0x8] sm:$0xff]
        %449 = vset.pattern.permute.xlu0 0
        %450 = vperm.xlu0 %449, %v414
        %v451 = vpop.permute.xlu0 %450
        %454 = vset.pattern.permute.xlu0 0
        %455 = vperm.xlu0 %454, %v416
        %v456 = vpop.permute.xlu0 %455
        %v458 = vmul.f32 %v451, %v446
        %v459 = vmul.f32 %v456, %v447
        %v460 = vpack.c.bf16 %v432, %v430
        %v463 = vunpack.c.l.b16 %v334
        %v464 = vunpack.c.l.b16 %v335
        %v465 = vpack.c.b16 %v464, %v463
        %v468 = vsel %vm402, %v460, 0
        %470 = vmatprep.subr.bf16.mxu0 0
        %471 = vmatpush1.bf16.msra.mxu0 %v465
        %472 = vmatprep.subr.bf16.mxu0 0
        %473 = vmatpush1.bf16.msra.mxu0 0
        %474 = vmatprep.subr.bf16.mxu0 0
        %475 = vmatpush1.bf16.msra.mxu0 0
        %476 = vmatprep.subr.bf16.mxu0 0
        %477 = vmatpush1.bf16.msra.mxu0 0
        %478 = vmatprep.subr.bf16.mxu0 0
        %479 = vmatpush1.bf16.msra.mxu0 0
        %480 = vmatprep.subr.bf16.mxu0 0
        %481 = vmatpush1.bf16.msra.mxu0 0
        %482 = vmatprep.subr.bf16.mxu0 0
        %483 = vmatpush1.bf16.msra.mxu0 0
        %484 = vmatprep.subr.bf16.mxu0 0
        %485 = vmatpush1.bf16.msra.mxu0 0
        %486 = vmatprep.subr.bf16.mxu0 0
        %487 = vmatpush1.bf16.msra.mxu0 0
        %488 = vmatprep.subr.bf16.mxu0 0
        %489 = vmatpush1.bf16.msra.mxu0 0
        %490 = vmatprep.subr.bf16.mxu0 0
        %491 = vmatpush1.bf16.msra.mxu0 0
        %492 = vmatprep.subr.bf16.mxu0 0
        %493 = vmatpush1.bf16.msra.mxu0 0
        %494 = vmatprep.subr.bf16.mxu0 0
        %495 = vmatpush1.bf16.msra.mxu0 0
        %496 = vmatprep.subr.bf16.mxu0 0
        %497 = vmatpush1.bf16.msra.mxu0 0
        %498 = vmatprep.subr.bf16.mxu0 0
        %499 = vmatpush1.bf16.msra.mxu0 0
        %500 = vmatprep.subr.bf16.mxu0 0
        %501 = vmatpush1.bf16.msra.mxu0 0
        %502 = vmatprep.mubr.bf16.mxu0 0
        %503 = vmatmul.mubr.bf16.gmra.mrb[0].mxu0 %v468
        %v504 = vpop.f32.mrb[0].mxu0
        %v505 = vadd.f32 0.0, %v504
        %v506 = vpop.f32.mrb[0].mxu0
        %v507 = vpop.f32.mrb[0].mxu0
        %v508 = vadd.f32 0.0, %v507
        %v509 = vpop.f32.mrb[0].mxu0
        %510 = vdwg.mxu0
        %v511 = vadd.f32 %v458, %v505
        %v512 = vadd.f32 %v459, %v508
        %513 = vst.msk [vmem:[#allocation4] sm:$0xff] %vm350, %v511
        %514 = vst.msk [vmem:[#allocation4 + $0x8] sm:$0xff] %vm350, %v512
        %515 = vst.msk [vmem:[#allocation2] sm:$0xff] %vm443, %v409
        %516 = vst.msk [vmem:[#allocation2 + $0x8] sm:$0xff] %vm443, %v410
        %517 = vrot.lane.b32.xlu0 %v344, 120
        %v518 = vpop.permute.xlu0 %517
        %519 = vrot.lane.b32.xlu0 %v349, 120
        %v520 = vpop.permute.xlu0 %519
        %v522 = vsel %vm350, %v518, 0
        %v525 = vsel %vm350, %v520, 0
        %527 = vmatprep.subr.bf16.mxu0 0
        %528 = vmatpush1.bf16.xpose.msra.mxu0 %v525
        %529 = vmatprep.subr.bf16.mxu0 0
        %530 = vmatpush1.bf16.xpose.msra.mxu0 0
        %531 = vmatprep.subr.bf16.mxu0 0
        %532 = vmatpush1.bf16.xpose.msra.mxu0 0
        %533 = vmatprep.subr.bf16.mxu0 0
        %534 = vmatpush1.bf16.xpose.msra.mxu0 0
        %535 = vmatprep.subr.bf16.mxu0 0
        %536 = vmatpush1.bf16.xpose.msra.mxu0 0
        %537 = vmatprep.subr.bf16.mxu0 0
        %538 = vmatpush1.bf16.xpose.msra.mxu0 0
        %539 = vmatprep.subr.bf16.mxu0 0
        %540 = vmatpush1.bf16.xpose.msra.mxu0 0
        %541 = vmatprep.subr.bf16.mxu0 0
        %542 = vmatpush1.bf16.xpose.msra.mxu0 0
        %543 = vmatprep.subr.bf16.mxu0 0
        %544 = vmatpush1.bf16.xpose.msra.mxu0 0
        %545 = vmatprep.subr.bf16.mxu0 0
        %546 = vmatpush1.bf16.xpose.msra.mxu0 0
        %547 = vmatprep.subr.bf16.mxu0 0
        %548 = vmatpush1.bf16.xpose.msra.mxu0 0
        %549 = vmatprep.subr.bf16.mxu0 0
        %550 = vmatpush1.bf16.xpose.msra.mxu0 0
        %551 = vmatprep.subr.bf16.mxu0 0
        %552 = vmatpush1.bf16.xpose.msra.mxu0 0
        %553 = vmatprep.subr.bf16.mxu0 0
        %554 = vmatpush1.bf16.xpose.msra.mxu0 0
        %555 = vmatprep.subr.bf16.mxu0 0
        %556 = vmatpush1.bf16.xpose.msra.mxu0 0
        %557 = vmatprep.subr.bf16.mxu0 0
        %558 = vmatpush1.bf16.xpose.msra.mxu0 0
        %559 = vmatprep.mubr.bf16.mxu0 0
        %560 = vmatmul.mubr.bf16.gmra.mrb[0].mxu0 %v522
        %v561 = vpop.f32.mrb[0].mxu0
        %v562 = vadd.f32 0.0, %v561
        %v563 = vpop.f32.mrb[0].mxu0
        %v564 = vpop.f32.mrb[0].mxu0
        %v565 = vadd.f32 0.0, %v564
        %v566 = vpop.f32.mrb[0].mxu0
        %567 = vdwg.mxu0
        %v568 = vld [vmem:[#allocation2] sm:$0xff]
        %v569 = vld [vmem:[#allocation2 + $0x8] sm:$0xff]
        %v570 = vld [vmem:[#allocation3] sm:$0xff]
        %v571 = vld [vmem:[#allocation3 + $0x8] sm:$0xff]
        %v572 = vsel %vm402, %v562, -inf
        %573 = vmax.xlane.f32.xlu0 %v572
        %v574 = vpop.xlane.xlu0 %573
        %v575 = vsel %vm402, %v565, -inf
        %576 = vmax.xlane.f32.xlu0 %v575
        %v577 = vpop.xlane.xlu0 %576
        %v578 = vmax.f32 %v568, %v574
        %v579 = vmax.f32 %v569, %v577
        %v580 = vsub.f32 %v568, %v578
        %v581 = vsub.f32 %v569, %v579
        %v582 = vmul.f32 %v580, 1.442695
        %v583 = vpow.pop %v582
        %v584 = vmul.f32 %v581, 1.442695
        %v585 = vpow.pop %v584
        %587 = vset.pattern.permute.xlu0 1
        %588 = vperm.xlu0 %587, %v578
        %v589 = vpop.permute.xlu0 %588
        %592 = vset.pattern.permute.xlu0 1
        %593 = vperm.xlu0 %592, %v579
        %v594 = vpop.permute.xlu0 %593
        %v596 = vsub.f32 %v562, %v589
        %v597 = vsub.f32 %v565, %v594
        %v598 = vmul.f32 %v596, 1.442695
        %v599 = vpow.pop %v598
        %v600 = vmul.f32 %v597, 1.442695
        %v601 = vpow.pop %v600
        %v602 = vmul.f32 %v583, %v570
        %v603 = vmul.f32 %v585, %v571
        %v604 = vsel %vm402, %v599, 0.0
        %605 = vadd.xlane.f32.xlu0 %v604
        %v606 = vpop.xlane.xlu0 %605
        %v607 = vsel %vm402, %v601, 0.0
        %608 = vadd.xlane.f32.xlu0 %v607
        %v609 = vpop.xlane.xlu0 %608
        %v610 = vadd.f32 %v602, %v606
        %v611 = vadd.f32 %v603, %v609
        %vm612 = vcmask 15368
        %613 = vst.msk [vmem:[#allocation3] sm:$0xff] %vm612, %v610
        %614 = vst.msk [vmem:[#allocation3 + $0x8] sm:$0xff] %vm612, %v611
        %v615 = vld [vmem:[#allocation4] sm:$0xff]
        %v616 = vld [vmem:[#allocation4 + $0x8] sm:$0xff]
        %618 = vset.pattern.permute.xlu0 1
        %619 = vperm.xlu0 %618, %v583
        %v620 = vpop.permute.xlu0 %619
        %623 = vset.pattern.permute.xlu0 1
        %624 = vperm.xlu0 %623, %v585
        %v625 = vpop.permute.xlu0 %624
        %v627 = vmul.f32 %v620, %v615
        %v628 = vmul.f32 %v625, %v616
        %v629 = vpack.c.bf16 %v601, %v599
        %630 = vrot.lane.b32.xlu0 %v465, 120
        %v631 = vpop.permute.xlu0 %630
        %v634 = vsel %vm402, %v629, 0
        %636 = vmatprep.subr.bf16.mxu0 0
        %637 = vmatpush1.bf16.msra.mxu0 %v631
        %638 = vmatprep.subr.bf16.mxu0 0
        %639 = vmatpush1.bf16.msra.mxu0 0
        %640 = vmatprep.subr.bf16.mxu0 0
        %641 = vmatpush1.bf16.msra.mxu0 0
        %642 = vmatprep.subr.bf16.mxu0 0
        %643 = vmatpush1.bf16.msra.mxu0 0
        %644 = vmatprep.subr.bf16.mxu0 0
        %645 = vmatpush1.bf16.msra.mxu0 0
        %646 = vmatprep.subr.bf16.mxu0 0
        %647 = vmatpush1.bf16.msra.mxu0 0
        %648 = vmatprep.subr.bf16.mxu0 0
        %649 = vmatpush1.bf16.msra.mxu0 0
        %650 = vmatprep.subr.bf16.mxu0 0
        %651 = vmatpush1.bf16.msra.mxu0 0
        %652 = vmatprep.subr.bf16.mxu0 0
        %653 = vmatpush1.bf16.msra.mxu0 0
        %654 = vmatprep.subr.bf16.mxu0 0
        %655 = vmatpush1.bf16.msra.mxu0 0
        %656 = vmatprep.subr.bf16.mxu0 0
        %657 = vmatpush1.bf16.msra.mxu0 0
        %658 = vmatprep.subr.bf16.mxu0 0
        %659 = vmatpush1.bf16.msra.mxu0 0
        %660 = vmatprep.subr.bf16.mxu0 0
        %661 = vmatpush1.bf16.msra.mxu0 0
        %662 = vmatprep.subr.bf16.mxu0 0
        %663 = vmatpush1.bf16.msra.mxu0 0
        %664 = vmatprep.subr.bf16.mxu0 0
        %665 = vmatpush1.bf16.msra.mxu0 0
        %666 = vmatprep.subr.bf16.mxu0 0
        %667 = vmatpush1.bf16.msra.mxu0 0
        %668 = vmatprep.mubr.bf16.mxu0 0
        %669 = vmatmul.mubr.bf16.gmra.mrb[0].mxu0 %v634
        %v670 = vpop.f32.mrb[0].mxu0
        %v671 = vadd.f32 0.0, %v670
        %v672 = vpop.f32.mrb[0].mxu0
        %v673 = vpop.f32.mrb[0].mxu0
        %v674 = vadd.f32 0.0, %v673
        %v675 = vpop.f32.mrb[0].mxu0
        %676 = vdwg.mxu0
        %679 = vrot.lane.b32.xlu0 %v671, 8
        %v680 = vpop.permute.xlu0 %679
        %681 = vrot.lane.b32.xlu0 %v674, 8
        %v682 = vpop.permute.xlu0 %681
        %v685 = vadd.f32 %v627, %v680
        %v686 = vadd.f32 %v628, %v682
        %vm687 = vcmask 130112
        %688 = vst.msk [vmem:[#allocation4] sm:$0xff] %vm687, %v685
        %689 = vst.msk [vmem:[#allocation4 + $0x8] sm:$0xff] %vm687, %v686
        %690 = vst.msk [vmem:[#allocation2] sm:$0xff] %vm612, %v578
        %691 = vst.msk [vmem:[#allocation2 + $0x8] sm:$0xff] %vm612, %v579
        %692 = vrot.lane.b32.xlu0 %v344, 112
        %v693 = vpop.permute.xlu0 %692
        %694 = vrot.lane.b32.xlu0 %v349, 112
        %v695 = vpop.permute.xlu0 %694
        %v697 = vsel %vm350, %v693, 0
        %v700 = vsel %vm350, %v695, 0
        %702 = vmatprep.subr.bf16.mxu0 0
        %703 = vmatpush1.bf16.xpose.msra.mxu0 %v700
        %704 = vmatprep.subr.bf16.mxu0 0
        %705 = vmatpush1.bf16.xpose.msra.mxu0 0
        %706 = vmatprep.subr.bf16.mxu0 0
        %707 = vmatpush1.bf16.xpose.msra.mxu0 0
        %708 = vmatprep.subr.bf16.mxu0 0
        %709 = vmatpush1.bf16.xpose.msra.mxu0 0
        %710 = vmatprep.subr.bf16.mxu0 0
        %711 = vmatpush1.bf16.xpose.msra.mxu0 0
        %712 = vmatprep.subr.bf16.mxu0 0
        %713 = vmatpush1.bf16.xpose.msra.mxu0 0
        %714 = vmatprep.subr.bf16.mxu0 0
        %715 = vmatpush1.bf16.xpose.msra.mxu0 0
        %716 = vmatprep.subr.bf16.mxu0 0
        %717 = vmatpush1.bf16.xpose.msra.mxu0 0
        %718 = vmatprep.subr.bf16.mxu0 0
        %719 = vmatpush1.bf16.xpose.msra.mxu0 0
        %720 = vmatprep.subr.bf16.mxu0 0
        %721 = vmatpush1.bf16.xpose.msra.mxu0 0
        %722 = vmatprep.subr.bf16.mxu0 0
        %723 = vmatpush1.bf16.xpose.msra.mxu0 0
        %724 = vmatprep.subr.bf16.mxu0 0
        %725 = vmatpush1.bf16.xpose.msra.mxu0 0
        %726 = vmatprep.subr.bf16.mxu0 0
        %727 = vmatpush1.bf16.xpose.msra.mxu0 0
        %728 = vmatprep.subr.bf16.mxu0 0
        %729 = vmatpush1.bf16.xpose.msra.mxu0 0
        %730 = vmatprep.subr.bf16.mxu0 0
        %731 = vmatpush1.bf16.xpose.msra.mxu0 0
        %732 = vmatprep.subr.bf16.mxu0 0
        %733 = vmatpush1.bf16.xpose.msra.mxu0 0
        %734 = vmatprep.mubr.bf16.mxu0 0
        %735 = vmatmul.mubr.bf16.gmra.mrb[0].mxu0 %v697
        %v736 = vpop.f32.mrb[0].mxu0
        %v737 = vadd.f32 0.0, %v736
        %v738 = vpop.f32.mrb[0].mxu0
        %v739 = vpop.f32.mrb[0].mxu0
        %v740 = vadd.f32 0.0, %v739
        %v741 = vpop.f32.mrb[0].mxu0
        %742 = vdwg.mxu0
        %v743 = vld [vmem:[#allocation2] sm:$0xff]
        %v744 = vld [vmem:[#allocation2 + $0x8] sm:$0xff]
        %v745 = vld [vmem:[#allocation3] sm:$0xff]
        %v746 = vld [vmem:[#allocation3 + $0x8] sm:$0xff]
        %v747 = vsel %vm402, %v737, -inf
        %748 = vmax.xlane.f32.xlu0 %v747
        %v749 = vpop.xlane.xlu0 %748
        %v750 = vsel %vm402, %v740, -inf
        %751 = vmax.xlane.f32.xlu0 %v750
        %v752 = vpop.xlane.xlu0 %751
        %v753 = vmax.f32 %v743, %v749
        %v754 = vmax.f32 %v744, %v752
        %v755 = vsub.f32 %v743, %v753
        %v756 = vsub.f32 %v744, %v754
        %v757 = vmul.f32 %v755, 1.442695
        %v758 = vpow.pop %v757
        %v759 = vmul.f32 %v756, 1.442695
        %v760 = vpow.pop %v759
        %762 = vset.pattern.permute.xlu0 2
        %763 = vperm.xlu0 %762, %v753
        %v764 = vpop.permute.xlu0 %763
        %767 = vset.pattern.permute.xlu0 2
        %768 = vperm.xlu0 %767, %v754
        %v769 = vpop.permute.xlu0 %768
        %v771 = vsub.f32 %v737, %v764
        %v772 = vsub.f32 %v740, %v769
        %v773 = vmul.f32 %v771, 1.442695
        %v774 = vpow.pop %v773
        %v775 = vmul.f32 %v772, 1.442695
        %v776 = vpow.pop %v775
        %v777 = vmul.f32 %v758, %v745
        %v778 = vmul.f32 %v760, %v746
        %v779 = vsel %vm402, %v774, 0.0
        %780 = vadd.xlane.f32.xlu0 %v779
        %v781 = vpop.xlane.xlu0 %780
        %v782 = vsel %vm402, %v776, 0.0
        %783 = vadd.xlane.f32.xlu0 %v782
        %v784 = vpop.xlane.xlu0 %783
        %v785 = vadd.f32 %v777, %v781
        %v786 = vadd.f32 %v778, %v784
        %vm787 = vcmask 23568
        %788 = vst.msk [vmem:[#allocation3] sm:$0xff] %vm787, %v785
        %789 = vst.msk [vmem:[#allocation3 + $0x8] sm:$0xff] %vm787, %v786
        %v790 = vld [vmem:[#allocation4] sm:$0xff]
        %v791 = vld [vmem:[#allocation4 + $0x8] sm:$0xff]
        %793 = vset.pattern.permute.xlu0 2
        %794 = vperm.xlu0 %793, %v758
        %v795 = vpop.permute.xlu0 %794
        %798 = vset.pattern.permute.xlu0 2
        %799 = vperm.xlu0 %798, %v760
        %v800 = vpop.permute.xlu0 %799
        %v802 = vmul.f32 %v795, %v790
        %v803 = vmul.f32 %v800, %v791
        %v804 = vpack.c.bf16 %v776, %v774
        %805 = vrot.lane.b32.xlu0 %v465, 112
        %v806 = vpop.permute.xlu0 %805
        %v809 = vsel %vm402, %v804, 0
        %811 = vmatprep.subr.bf16.mxu0 0
        %812 = vmatpush1.bf16.msra.mxu0 %v806
        %813 = vmatprep.subr.bf16.mxu0 0
        %814 = vmatpush1.bf16.msra.mxu0 0
        %815 = vmatprep.subr.bf16.mxu0 0
        %816 = vmatpush1.bf16.msra.mxu0 0
        %817 = vmatprep.subr.bf16.mxu0 0
        %818 = vmatpush1.bf16.msra.mxu0 0
        %819 = vmatprep.subr.bf16.mxu0 0
        %820 = vmatpush1.bf16.msra.mxu0 0
        %821 = vmatprep.subr.bf16.mxu0 0
        %822 = vmatpush1.bf16.msra.mxu0 0
        %823 = vmatprep.subr.bf16.mxu0 0
        %824 = vmatpush1.bf16.msra.mxu0 0
        %825 = vmatprep.subr.bf16.mxu0 0
        %826 = vmatpush1.bf16.msra.mxu0 0
        %827 = vmatprep.subr.bf16.mxu0 0
        %828 = vmatpush1.bf16.msra.mxu0 0
        %829 = vmatprep.subr.bf16.mxu0 0
        %830 = vmatpush1.bf16.msra.mxu0 0
        %831 = vmatprep.subr.bf16.mxu0 0
        %832 = vmatpush1.bf16.msra.mxu0 0
        %833 = vmatprep.subr.bf16.mxu0 0
        %834 = vmatpush1.bf16.msra.mxu0 0
        %835 = vmatprep.subr.bf16.mxu0 0
        %836 = vmatpush1.bf16.msra.mxu0 0
        %837 = vmatprep.subr.bf16.mxu0 0
        %838 = vmatpush1.bf16.msra.mxu0 0
        %839 = vmatprep.subr.bf16.mxu0 0
        %840 = vmatpush1.bf16.msra.mxu0 0
        %841 = vmatprep.subr.bf16.mxu0 0
        %842 = vmatpush1.bf16.msra.mxu0 0
        %843 = vmatprep.mubr.bf16.mxu0 0
        %844 = vmatmul.mubr.bf16.gmra.mrb[0].mxu0 %v809
        %v845 = vpop.f32.mrb[0].mxu0
        %v846 = vadd.f32 0.0, %v845
        %v847 = vpop.f32.mrb[0].mxu0
        %v848 = vpop.f32.mrb[0].mxu0
        %v849 = vadd.f32 0.0, %v848
        %v850 = vpop.f32.mrb[0].mxu0
        %851 = vdwg.mxu0
        %854 = vrot.lane.b32.xlu0 %v846, 16
        %v855 = vpop.permute.xlu0 %854
        %856 = vrot.lane.b32.xlu0 %v849, 16
        %v857 = vpop.permute.xlu0 %856
        %v860 = vadd.f32 %v802, %v855
        %v861 = vadd.f32 %v803, %v857
        %vm862 = vcmask 195712
        %863 = vst.msk [vmem:[#allocation4] sm:$0xff] %vm862, %v860
        %864 = vst.msk [vmem:[#allocation4 + $0x8] sm:$0xff] %vm862, %v861
        %865 = vst.msk [vmem:[#allocation2] sm:$0xff] %vm787, %v753
        %866 = vst.msk [vmem:[#allocation2 + $0x8] sm:$0xff] %vm787, %v754
        %867 = vrot.lane.b32.xlu0 %v344, 104
        %v868 = vpop.permute.xlu0 %867
        %869 = vrot.lane.b32.xlu0 %v349, 104
        %v870 = vpop.permute.xlu0 %869
        %v872 = vsel %vm350, %v868, 0
        %v875 = vsel %vm350, %v870, 0
        %877 = vmatprep.subr.bf16.mxu0 0
        %878 = vmatpush1.bf16.xpose.msra.mxu0 %v875
        %879 = vmatprep.subr.bf16.mxu0 0
        %880 = vmatpush1.bf16.xpose.msra.mxu0 0
        %881 = vmatprep.subr.bf16.mxu0 0
        %882 = vmatpush1.bf16.xpose.msra.mxu0 0
        %883 = vmatprep.subr.bf16.mxu0 0
        %884 = vmatpush1.bf16.xpose.msra.mxu0 0
        %885 = vmatprep.subr.bf16.mxu0 0
        %886 = vmatpush1.bf16.xpose.msra.mxu0 0
        %887 = vmatprep.subr.bf16.mxu0 0
        %888 = vmatpush1.bf16.xpose.msra.mxu0 0
        %889 = vmatprep.subr.bf16.mxu0 0
        %890 = vmatpush1.bf16.xpose.msra.mxu0 0
        %891 = vmatprep.subr.bf16.mxu0 0
        %892 = vmatpush1.bf16.xpose.msra.mxu0 0
        %893 = vmatprep.subr.bf16.mxu0 0
        %894 = vmatpush1.bf16.xpose.msra.mxu0 0
        %895 = vmatprep.subr.bf16.mxu0 0
        %896 = vmatpush1.bf16.xpose.msra.mxu0 0
        %897 = vmatprep.subr.bf16.mxu0 0
        %898 = vmatpush1.bf16.xpose.msra.mxu0 0
        %899 = vmatprep.subr.bf16.mxu0 0
        %900 = vmatpush1.bf16.xpose.msra.mxu0 0
        %901 = vmatprep.subr.bf16.mxu0 0
        %902 = vmatpush1.bf16.xpose.msra.mxu0 0
        %903 = vmatprep.subr.bf16.mxu0 0
        %904 = vmatpush1.bf16.xpose.msra.mxu0 0
        %905 = vmatprep.subr.bf16.mxu0 0
        %906 = vmatpush1.bf16.xpose.msra.mxu0 0
        %907 = vmatprep.subr.bf16.mxu0 0
        %908 = vmatpush1.bf16.xpose.msra.mxu0 0
        %909 = vmatprep.mubr.bf16.mxu0 0
        %910 = vmatmul.mubr.bf16.gmra.mrb[0].mxu0 %v872
        %v911 = vpop.f32.mrb[0].mxu0
        %v912 = vadd.f32 0.0, %v911
        %v913 = vpop.f32.mrb[0].mxu0
        %v914 = vpop.f32.mrb[0].mxu0
        %v915 = vadd.f32 0.0, %v914
        %v916 = vpop.f32.mrb[0].mxu0
        %917 = vdwg.mxu0
        %v918 = vld [vmem:[#allocation2] sm:$0xff]
        %v919 = vld [vmem:[#allocation2 + $0x8] sm:$0xff]
        %v920 = vld [vmem:[#allocation3] sm:$0xff]
        %v921 = vld [vmem:[#allocation3 + $0x8] sm:$0xff]
        %v922 = vsel %vm402, %v912, -inf
        %923 = vmax.xlane.f32.xlu0 %v922
        %v924 = vpop.xlane.xlu0 %923
        %v925 = vsel %vm402, %v915, -inf
        %926 = vmax.xlane.f32.xlu0 %v925
        %v927 = vpop.xlane.xlu0 %926
        %v928 = vmax.f32 %v918, %v924
        %v929 = vmax.f32 %v919, %v927
        %v930 = vsub.f32 %v918, %v928
        %v931 = vsub.f32 %v919, %v929
        %v932 = vmul.f32 %v930, 1.442695
        %v933 = vpow.pop %v932
        %v934 = vmul.f32 %v931, 1.442695
        %v935 = vpow.pop %v934
        %937 = vset.pattern.permute.xlu0 3
        %938 = vperm.xlu0 %937, %v928
        %v939 = vpop.permute.xlu0 %938
        %942 = vset.pattern.permute.xlu0 3
        %943 = vperm.xlu0 %942, %v929
        %v944 = vpop.permute.xlu0 %943
        %v946 = vsub.f32 %v912, %v939
        %v947 = vsub.f32 %v915, %v944
        %v948 = vmul.f32 %v946, 1.442695
        %v949 = vpow.pop %v948
        %v950 = vmul.f32 %v947, 1.442695
        %v951 = vpow.pop %v950
        %v952 = vmul.f32 %v933, %v920
        %v953 = vmul.f32 %v935, %v921
        %v954 = vsel %vm402, %v949, 0.0
        %955 = vadd.xlane.f32.xlu0 %v954
        %v956 = vpop.xlane.xlu0 %955
        %v957 = vsel %vm402, %v951, 0.0
        %958 = vadd.xlane.f32.xlu0 %v957
        %v959 = vpop.xlane.xlu0 %958
        %v960 = vadd.f32 %v952, %v956
        %v961 = vadd.f32 %v953, %v959
        %vm962 = vcmask 31768
        %963 = vst.msk [vmem:[#allocation3] sm:$0xff] %vm962, %v960
        %964 = vst.msk [vmem:[#allocation3 + $0x8] sm:$0xff] %vm962, %v961
        %v965 = vld [vmem:[#allocation4] sm:$0xff]
        %v966 = vld [vmem:[#allocation4 + $0x8] sm:$0xff]
        %968 = vset.pattern.permute.xlu0 3
        %969 = vperm.xlu0 %968, %v933
        %v970 = vpop.permute.xlu0 %969
        %973 = vset.pattern.permute.xlu0 3
        %974 = vperm.xlu0 %973, %v935
        %v975 = vpop.permute.xlu0 %974
        %v977 = vmul.f32 %v970, %v965
        %v978 = vmul.f32 %v975, %v966
        %v979 = vpack.c.bf16 %v951, %v949
        %980 = vrot.lane.b32.xlu0 %v465, 104
        %v981 = vpop.permute.xlu0 %980
        %v984 = vsel %vm402, %v979, 0
        %986 = vmatprep.subr.bf16.mxu0 0
        %987 = vmatpush1.bf16.msra.mxu0 %v981
        %988 = vmatprep.subr.bf16.mxu0 0
        %989 = vmatpush1.bf16.msra.mxu0 0
        %990 = vmatprep.subr.bf16.mxu0 0
        %991 = vmatpush1.bf16.msra.mxu0 0
        %992 = vmatprep.subr.bf16.mxu0 0
        %993 = vmatpush1.bf16.msra.mxu0 0
        %994 = vmatprep.subr.bf16.mxu0 0
        %995 = vmatpush1.bf16.msra.mxu0 0
        %996 = vmatprep.subr.bf16.mxu0 0
        %997 = vmatpush1.bf16.msra.mxu0 0
        %998 = vmatprep.subr.bf16.mxu0 0
        %999 = vmatpush1.bf16.msra.mxu0 0
        %1000 = vmatprep.subr.bf16.mxu0 0
        %1001 = vmatpush1.bf16.msra.mxu0 0
        %1002 = vmatprep.subr.bf16.mxu0 0
        %1003 = vmatpush1.bf16.msra.mxu0 0
        %1004 = vmatprep.subr.bf16.mxu0 0
        %1005 = vmatpush1.bf16.msra.mxu0 0
        %1006 = vmatprep.subr.bf16.mxu0 0
        %1007 = vmatpush1.bf16.msra.mxu0 0
        %1008 = vmatprep.subr.bf16.mxu0 0
        %1009 = vmatpush1.bf16.msra.mxu0 0
        %1010 = vmatprep.subr.bf16.mxu0 0
        %1011 = vmatpush1.bf16.msra.mxu0 0
        %1012 = vmatprep.subr.bf16.mxu0 0
        %1013 = vmatpush1.bf16.msra.mxu0 0
        %1014 = vmatprep.subr.bf16.mxu0 0
        %1015 = vmatpush1.bf16.msra.mxu0 0
        %1016 = vmatprep.subr.bf16.mxu0 0
        %1017 = vmatpush1.bf16.msra.mxu0 0
        %1018 = vmatprep.mubr.bf16.mxu0 0
        %1019 = vmatmul.mubr.bf16.gmra.mrb[0].mxu0 %v984
        %v1020 = vpop.f32.mrb[0].mxu0
        %v1021 = vadd.f32 0.0, %v1020
        %v1022 = vpop.f32.mrb[0].mxu0
        %v1023 = vpop.f32.mrb[0].mxu0
        %v1024 = vadd.f32 0.0, %v1023
        %v1025 = vpop.f32.mrb[0].mxu0
        %1026 = vdwg.mxu0
        %1029 = vrot.lane.b32.xlu0 %v1021, 24
        %v1030 = vpop.permute.xlu0 %1029
        %1031 = vrot.lane.b32.xlu0 %v1024, 24
        %v1032 = vpop.permute.xlu0 %1031
        %v1035 = vadd.f32 %v977, %v1030
        %v1036 = vadd.f32 %v978, %v1032
        %vm1037 = vcmask 261312
        %1038 = vst.msk [vmem:[#allocation4] sm:$0xff] %vm1037, %v1035
        %1039 = vst.msk [vmem:[#allocation4 + $0x8] sm:$0xff] %vm1037, %v1036
        %1040 = vst.msk [vmem:[#allocation2] sm:$0xff] %vm962, %v928
        %1041 = vst.msk [vmem:[#allocation2 + $0x8] sm:$0xff] %vm962, %v929
      $region40: #{causal_self_attention_forward.4} parent=31 // pred_fallthru
        _
      %p1042 = scmp.eq.s32.totalorder %s315, %s314
      // Predicated region
      $region41: #{causal_self_attention_forward.4} parent=31 // pred_check
        %p1043 = pneg %p1042
      $region42: #{causal_self_attention_forward.4} parent=31 // pred_check_branch
        %1045 = sbr.rel (%p1043) target = $region44
      $region43: #{causal_self_attention_forward.4} parent=31 // pred_region
        %v1046 = vlaneseq
        %v1047 = vshrl.u32 %v1046, 7
        %v1048 = vadd.s32 %v1047, 8
        %v1049 = vlaneseq
        %v1050 = vand.u32 %v1049, 127
        %vm1051 = vcmp.le.s32.totalorder %v1050, %v1047
        %vm1052 = vcmp.le.s32.totalorder %v1050, %v1048
        %v1055 = vunpack.c.l.b16 %v330
        %v1056 = vunpack.c.l.b16 %v331
        %v1057 = vpack.c.b16 %v1056, %v1055
        %v1060 = vunpack.c.l.b16 %v332
        %v1061 = vunpack.c.l.b16 %v333
        %v1062 = vpack.c.b16 %v1061, %v1060
        %vm1063 = vcmask 64512
        %v1065 = vsel %vm1063, %v1057, 0
        %v1068 = vsel %vm1063, %v1062, 0
        %1070 = vmatprep.subr.bf16.mxu0 0
        %1071 = vmatpush1.bf16.xpose.msra.mxu0 %v1068
        %1072 = vmatprep.subr.bf16.mxu0 0
        %1073 = vmatpush1.bf16.xpose.msra.mxu0 0
        %1074 = vmatprep.subr.bf16.mxu0 0
        %1075 = vmatpush1.bf16.xpose.msra.mxu0 0
        %1076 = vmatprep.subr.bf16.mxu0 0
        %1077 = vmatpush1.bf16.xpose.msra.mxu0 0
        %1078 = vmatprep.subr.bf16.mxu0 0
        %1079 = vmatpush1.bf16.xpose.msra.mxu0 0
        %1080 = vmatprep.subr.bf16.mxu0 0
        %1081 = vmatpush1.bf16.xpose.msra.mxu0 0
        %1082 = vmatprep.subr.bf16.mxu0 0
        %1083 = vmatpush1.bf16.xpose.msra.mxu0 0
        %1084 = vmatprep.subr.bf16.mxu0 0
        %1085 = vmatpush1.bf16.xpose.msra.mxu0 0
        %1086 = vmatprep.subr.bf16.mxu0 0
        %1087 = vmatpush1.bf16.xpose.msra.mxu0 0
        %1088 = vmatprep.subr.bf16.mxu0 0
        %1089 = vmatpush1.bf16.xpose.msra.mxu0 0
        %1090 = vmatprep.subr.bf16.mxu0 0
        %1091 = vmatpush1.bf16.xpose.msra.mxu0 0
        %1092 = vmatprep.subr.bf16.mxu0 0
        %1093 = vmatpush1.bf16.xpose.msra.mxu0 0
        %1094 = vmatprep.subr.bf16.mxu0 0
        %1095 = vmatpush1.bf16.xpose.msra.mxu0 0
        %1096 = vmatprep.subr.bf16.mxu0 0
        %1097 = vmatpush1.bf16.xpose.msra.mxu0 0
        %1098 = vmatprep.subr.bf16.mxu0 0
        %1099 = vmatpush1.bf16.xpose.msra.mxu0 0
        %1100 = vmatprep.subr.bf16.mxu0 0
        %1101 = vmatpush1.bf16.xpose.msra.mxu0 0
        %1102 = vmatprep.mubr.bf16.mxu0 0
        %1103 = vmatmul.mubr.bf16.gmra.mrb[0].mxu0 %v1065
        %v1104 = vpop.f32.mrb[0].mxu0
        %v1105 = vadd.f32 0.0, %v1104
        %v1106 = vpop.f32.mrb[0].mxu0
        %v1107 = vpop.f32.mrb[0].mxu0
        %v1108 = vadd.f32 0.0, %v1107
        %v1109 = vpop.f32.mrb[0].mxu0
        %1110 = vdwg.mxu0
        %v1111 = vsel %vm1051, %v1105, -1e+30
        %v1112 = vsel %vm1052, %v1108, -1e+30
        %v1113 = vld [vmem:[#allocation2] sm:$0xff]
        %v1114 = vld [vmem:[#allocation2 + $0x8] sm:$0xff]
        %v1115 = vld [vmem:[#allocation3] sm:$0xff]
        %v1116 = vld [vmem:[#allocation3 + $0x8] sm:$0xff]
        %vm1117 = vcmask 130048
        %v1118 = vsel %vm1117, %v1111, -inf
        %1119 = vmax.xlane.f32.xlu0 %v1118
        %v1120 = vpop.xlane.xlu0 %1119
        %v1121 = vsel %vm1117, %v1112, -inf
        %1122 = vmax.xlane.f32.xlu0 %v1121
        %v1123 = vpop.xlane.xlu0 %1122
        %v1124 = vmax.f32 %v1113, %v1120
        %v1125 = vmax.f32 %v1114, %v1123
        %v1126 = vsub.f32 %v1113, %v1124
        %v1127 = vsub.f32 %v1114, %v1125
        %v1128 = vmul.f32 %v1126, 1.442695
        %v1129 = vpow.pop %v1128
        %v1130 = vmul.f32 %v1127, 1.442695
        %v1131 = vpow.pop %v1130
        %1133 = vset.pattern.permute.xlu0 0
        %1134 = vperm.xlu0 %1133, %v1124
        %v1135 = vpop.permute.xlu0 %1134
        %1138 = vset.pattern.permute.xlu0 0
        %1139 = vperm.xlu0 %1138, %v1125
        %v1140 = vpop.permute.xlu0 %1139
        %v1142 = vsub.f32 %v1111, %v1135
        %v1143 = vsub.f32 %v1112, %v1140
        %v1144 = vmul.f32 %v1142, 1.442695
        %v1145 = vpow.pop %v1144
        %v1146 = vmul.f32 %v1143, 1.442695
        %v1147 = vpow.pop %v1146
        %v1148 = vmul.f32 %v1129, %v1115
        %v1149 = vmul.f32 %v1131, %v1116
        %v1150 = vsel %vm1117, %v1145, 0.0
        %1151 = vadd.xlane.f32.xlu0 %v1150
        %v1152 = vpop.xlane.xlu0 %1151
        %v1153 = vsel %vm1117, %v1147, 0.0
        %1154 = vadd.xlane.f32.xlu0 %v1153
        %v1155 = vpop.xlane.xlu0 %1154
        %v1156 = vadd.f32 %v1148, %v1152
        %v1157 = vadd.f32 %v1149, %v1155
        %vm1158 = vcmask 7168
        %1159 = vst.msk [vmem:[#allocation3] sm:$0xff] %vm1158, %v1156
        %1160 = vst.msk [vmem:[#allocation3 + $0x8] sm:$0xff] %vm1158, %v1157
        %v1161 = vld [vmem:[#allocation4] sm:$0xff]
        %v1162 = vld [vmem:[#allocation4 + $0x8] sm:$0xff]
        %1164 = vset.pattern.permute.xlu0 0
        %1165 = vperm.xlu0 %1164, %v1129
        %v1166 = vpop.permute.xlu0 %1165
        %1169 = vset.pattern.permute.xlu0 0
        %1170 = vperm.xlu0 %1169, %v1131
        %v1171 = vpop.permute.xlu0 %1170
        %v1173 = vmul.f32 %v1166, %v1161
        %v1174 = vmul.f32 %v1171, %v1162
        %v1175 = vpack.c.bf16 %v1147, %v1145
        %v1178 = vunpack.c.l.b16 %v334
        %v1179 = vunpack.c.l.b16 %v335
        %v1180 = vpack.c.b16 %v1179, %v1178
        %v1183 = vsel %vm1117, %v1175, 0
        %1185 = vmatprep.subr.bf16.mxu0 0
        %1186 = vmatpush1.bf16.msra.mxu0 %v1180
        %1187 = vmatprep.subr.bf16.mxu0 0
        %1188 = vmatpush1.bf16.msra.mxu0 0
        %1189 = vmatprep.subr.bf16.mxu0 0
        %1190 = vmatpush1.bf16.msra.mxu0 0
        %1191 = vmatprep.subr.bf16.mxu0 0
        %1192 = vmatpush1.bf16.msra.mxu0 0
        %1193 = vmatprep.subr.bf16.mxu0 0
        %1194 = vmatpush1.bf16.msra.mxu0 0
        %1195 = vmatprep.subr.bf16.mxu0 0
        %1196 = vmatpush1.bf16.msra.mxu0 0
        %1197 = vmatprep.subr.bf16.mxu0 0
        %1198 = vmatpush1.bf16.msra.mxu0 0
        %1199 = vmatprep.subr.bf16.mxu0 0
        %1200 = vmatpush1.bf16.msra.mxu0 0
        %1201 = vmatprep.subr.bf16.mxu0 0
        %1202 = vmatpush1.bf16.msra.mxu0 0
        %1203 = vmatprep.subr.bf16.mxu0 0
        %1204 = vmatpush1.bf16.msra.mxu0 0
        %1205 = vmatprep.subr.bf16.mxu0 0
        %1206 = vmatpush1.bf16.msra.mxu0 0
        %1207 = vmatprep.subr.bf16.mxu0 0
        %1208 = vmatpush1.bf16.msra.mxu0 0
        %1209 = vmatprep.subr.bf16.mxu0 0
        %1210 = vmatpush1.bf16.msra.mxu0 0
        %1211 = vmatprep.subr.bf16.mxu0 0
        %1212 = vmatpush1.bf16.msra.mxu0 0
        %1213 = vmatprep.subr.bf16.mxu0 0
        %1214 = vmatpush1.bf16.msra.mxu0 0
        %1215 = vmatprep.subr.bf16.mxu0 0
        %1216 = vmatpush1.bf16.msra.mxu0 0
        %1217 = vmatprep.mubr.bf16.mxu0 0
        %1218 = vmatmul.mubr.bf16.gmra.mrb[0].mxu0 %v1183
        %v1219 = vpop.f32.mrb[0].mxu0
        %v1220 = vadd.f32 0.0, %v1219
        %v1221 = vpop.f32.mrb[0].mxu0
        %v1222 = vpop.f32.mrb[0].mxu0
        %v1223 = vadd.f32 0.0, %v1222
        %v1224 = vpop.f32.mrb[0].mxu0
        %1225 = vdwg.mxu0
        %v1226 = vadd.f32 %v1173, %v1220
        %v1227 = vadd.f32 %v1174, %v1223
        %1228 = vst.msk [vmem:[#allocation4] sm:$0xff] %vm1063, %v1226
        %1229 = vst.msk [vmem:[#allocation4 + $0x8] sm:$0xff] %vm1063, %v1227
        %1230 = vst.msk [vmem:[#allocation2] sm:$0xff] %vm1158, %v1124
        %1231 = vst.msk [vmem:[#allocation2 + $0x8] sm:$0xff] %vm1158, %v1125
        %1232 = vrot.lane.b32.xlu0 %v1057, 120
        %v1233 = vpop.permute.xlu0 %1232
        %1234 = vrot.lane.b32.xlu0 %v1062, 120
        %v1235 = vpop.permute.xlu0 %1234
        %v1237 = vsel %vm1063, %v1233, 0
        %v1240 = vsel %vm1063, %v1235, 0
        %1242 = vmatprep.subr.bf16.mxu0 0
        %1243 = vmatpush1.bf16.xpose.msra.mxu0 %v1240
        %1244 = vmatprep.subr.bf16.mxu0 0
        %1245 = vmatpush1.bf16.xpose.msra.mxu0 0
        %1246 = vmatprep.subr.bf16.mxu0 0
        %1247 = vmatpush1.bf16.xpose.msra.mxu0 0
        %1248 = vmatprep.subr.bf16.mxu0 0
        %1249 = vmatpush1.bf16.xpose.msra.mxu0 0
        %1250 = vmatprep.subr.bf16.mxu0 0
        %1251 = vmatpush1.bf16.xpose.msra.mxu0 0
        %1252 = vmatprep.subr.bf16.mxu0 0
        %1253 = vmatpush1.bf16.xpose.msra.mxu0 0
        %1254 = vmatprep.subr.bf16.mxu0 0
        %1255 = vmatpush1.bf16.xpose.msra.mxu0 0
        %1256 = vmatprep.subr.bf16.mxu0 0
        %1257 = vmatpush1.bf16.xpose.msra.mxu0 0
        %1258 = vmatprep.subr.bf16.mxu0 0
        %1259 = vmatpush1.bf16.xpose.msra.mxu0 0
        %1260 = vmatprep.subr.bf16.mxu0 0
        %1261 = vmatpush1.bf16.xpose.msra.mxu0 0
        %1262 = vmatprep.subr.bf16.mxu0 0
        %1263 = vmatpush1.bf16.xpose.msra.mxu0 0
        %1264 = vmatprep.subr.bf16.mxu0 0
        %1265 = vmatpush1.bf16.xpose.msra.mxu0 0
        %1266 = vmatprep.subr.bf16.mxu0 0
        %1267 = vmatpush1.bf16.xpose.msra.mxu0 0
        %1268 = vmatprep.subr.bf16.mxu0 0
        %1269 = vmatpush1.bf16.xpose.msra.mxu0 0
        %1270 = vmatprep.subr.bf16.mxu0 0
        %1271 = vmatpush1.bf16.xpose.msra.mxu0 0
        %1272 = vmatprep.subr.bf16.mxu0 0
        %1273 = vmatpush1.bf16.xpose.msra.mxu0 0
        %1274 = vmatprep.mubr.bf16.mxu0 0
        %1275 = vmatmul.mubr.bf16.gmra.mrb[0].mxu0 %v1237
        %v1276 = vpop.f32.mrb[0].mxu0
        %v1277 = vadd.f32 0.0, %v1276
        %v1278 = vpop.f32.mrb[0].mxu0
        %v1279 = vpop.f32.mrb[0].mxu0
        %v1280 = vadd.f32 0.0, %v1279
        %v1281 = vpop.f32.mrb[0].mxu0
        %1282 = vdwg.mxu0
        %v1283 = vsel %vm1051, %v1277, -1e+30
        %v1284 = vsel %vm1052, %v1280, -1e+30
        %v1285 = vld [vmem:[#allocation2] sm:$0xff]
        %v1286 = vld [vmem:[#allocation2 + $0x8] sm:$0xff]
        %v1287 = vld [vmem:[#allocation3] sm:$0xff]
        %v1288 = vld [vmem:[#allocation3 + $0x8] sm:$0xff]
        %v1289 = vsel %vm1117, %v1283, -inf
        %1290 = vmax.xlane.f32.xlu0 %v1289
        %v1291 = vpop.xlane.xlu0 %1290
        %v1292 = vsel %vm1117, %v1284, -inf
        %1293 = vmax.xlane.f32.xlu0 %v1292
        %v1294 = vpop.xlane.xlu0 %1293
        %v1295 = vmax.f32 %v1285, %v1291
        %v1296 = vmax.f32 %v1286, %v1294
        %v1297 = vsub.f32 %v1285, %v1295
        %v1298 = vsub.f32 %v1286, %v1296
        %v1299 = vmul.f32 %v1297, 1.442695
        %v1300 = vpow.pop %v1299
        %v1301 = vmul.f32 %v1298, 1.442695
        %v1302 = vpow.pop %v1301
        %1304 = vset.pattern.permute.xlu0 1
        %1305 = vperm.xlu0 %1304, %v1295
        %v1306 = vpop.permute.xlu0 %1305
        %1309 = vset.pattern.permute.xlu0 1
        %1310 = vperm.xlu0 %1309, %v1296
        %v1311 = vpop.permute.xlu0 %1310
        %v1313 = vsub.f32 %v1283, %v1306
        %v1314 = vsub.f32 %v1284, %v1311
        %v1315 = vmul.f32 %v1313, 1.442695
        %v1316 = vpow.pop %v1315
        %v1317 = vmul.f32 %v1314, 1.442695
        %v1318 = vpow.pop %v1317
        %v1319 = vmul.f32 %v1300, %v1287
        %v1320 = vmul.f32 %v1302, %v1288
        %v1321 = vsel %vm1117, %v1316, 0.0
        %1322 = vadd.xlane.f32.xlu0 %v1321
        %v1323 = vpop.xlane.xlu0 %1322
        %v1324 = vsel %vm1117, %v1318, 0.0
        %1325 = vadd.xlane.f32.xlu0 %v1324
        %v1326 = vpop.xlane.xlu0 %1325
        %v1327 = vadd.f32 %v1319, %v1323
        %v1328 = vadd.f32 %v1320, %v1326
        %vm1329 = vcmask 15368
        %1330 = vst.msk [vmem:[#allocation3] sm:$0xff] %vm1329, %v1327
        %1331 = vst.msk [vmem:[#allocation3 + $0x8] sm:$0xff] %vm1329, %v1328
        %v1332 = vld [vmem:[#allocation4] sm:$0xff]
        %v1333 = vld [vmem:[#allocation4 + $0x8] sm:$0xff]
        %1335 = vset.pattern.permute.xlu0 1
        %1336 = vperm.xlu0 %1335, %v1300
        %v1337 = vpop.permute.xlu0 %1336
        %1340 = vset.pattern.permute.xlu0 1
        %1341 = vperm.xlu0 %1340, %v1302
        %v1342 = vpop.permute.xlu0 %1341
        %v1344 = vmul.f32 %v1337, %v1332
        %v1345 = vmul.f32 %v1342, %v1333
        %v1346 = vpack.c.bf16 %v1318, %v1316
        %1347 = vrot.lane.b32.xlu0 %v1180, 120
        %v1348 = vpop.permute.xlu0 %1347
        %v1351 = vsel %vm1117, %v1346, 0
        %1353 = vmatprep.subr.bf16.mxu0 0
        %1354 = vmatpush1.bf16.msra.mxu0 %v1348
        %1355 = vmatprep.subr.bf16.mxu0 0
        %1356 = vmatpush1.bf16.msra.mxu0 0
        %1357 = vmatprep.subr.bf16.mxu0 0
        %1358 = vmatpush1.bf16.msra.mxu0 0
        %1359 = vmatprep.subr.bf16.mxu0 0
        %1360 = vmatpush1.bf16.msra.mxu0 0
        %1361 = vmatprep.subr.bf16.mxu0 0
        %1362 = vmatpush1.bf16.msra.mxu0 0
        %1363 = vmatprep.subr.bf16.mxu0 0
        %1364 = vmatpush1.bf16.msra.mxu0 0
        %1365 = vmatprep.subr.bf16.mxu0 0
        %1366 = vmatpush1.bf16.msra.mxu0 0
        %1367 = vmatprep.subr.bf16.mxu0 0
        %1368 = vmatpush1.bf16.msra.mxu0 0
        %1369 = vmatprep.subr.bf16.mxu0 0
        %1370 = vmatpush1.bf16.msra.mxu0 0
        %1371 = vmatprep.subr.bf16.mxu0 0
        %1372 = vmatpush1.bf16.msra.mxu0 0
        %1373 = vmatprep.subr.bf16.mxu0 0
        %1374 = vmatpush1.bf16.msra.mxu0 0
        %1375 = vmatprep.subr.bf16.mxu0 0
        %1376 = vmatpush1.bf16.msra.mxu0 0
        %1377 = vmatprep.subr.bf16.mxu0 0
        %1378 = vmatpush1.bf16.msra.mxu0 0
        %1379 = vmatprep.subr.bf16.mxu0 0
        %1380 = vmatpush1.bf16.msra.mxu0 0
        %1381 = vmatprep.subr.bf16.mxu0 0
        %1382 = vmatpush1.bf16.msra.mxu0 0
        %1383 = vmatprep.subr.bf16.mxu0 0
        %1384 = vmatpush1.bf16.msra.mxu0 0
        %1385 = vmatprep.mubr.bf16.mxu0 0
        %1386 = vmatmul.mubr.bf16.gmra.mrb[0].mxu0 %v1351
        %v1387 = vpop.f32.mrb[0].mxu0
        %v1388 = vadd.f32 0.0, %v1387
        %v1389 = vpop.f32.mrb[0].mxu0
        %v1390 = vpop.f32.mrb[0].mxu0
        %v1391 = vadd.f32 0.0, %v1390
        %v1392 = vpop.f32.mrb[0].mxu0
        %1393 = vdwg.mxu0
        %1396 = vrot.lane.b32.xlu0 %v1388, 8
        %v1397 = vpop.permute.xlu0 %1396
        %1398 = vrot.lane.b32.xlu0 %v1391, 8
        %v1399 = vpop.permute.xlu0 %1398
        %v1402 = vadd.f32 %v1344, %v1397
        %v1403 = vadd.f32 %v1345, %v1399
        %vm1404 = vcmask 130112
        %1405 = vst.msk [vmem:[#allocation4] sm:$0xff] %vm1404, %v1402
        %1406 = vst.msk [vmem:[#allocation4 + $0x8] sm:$0xff] %vm1404, %v1403
        %1407 = vst.msk [vmem:[#allocation2] sm:$0xff] %vm1329, %v1295
        %1408 = vst.msk [vmem:[#allocation2 + $0x8] sm:$0xff] %vm1329, %v1296
        %1409 = vrot.lane.b32.xlu0 %v1057, 112
        %v1410 = vpop.permute.xlu0 %1409
        %1411 = vrot.lane.b32.xlu0 %v1062, 112
        %v1412 = vpop.permute.xlu0 %1411
        %v1414 = vsel %vm1063, %v1410, 0
        %v1417 = vsel %vm1063, %v1412, 0
        %1419 = vmatprep.subr.bf16.mxu0 0
        %1420 = vmatpush1.bf16.xpose.msra.mxu0 %v1417
        %1421 = vmatprep.subr.bf16.mxu0 0
        %1422 = vmatpush1.bf16.xpose.msra.mxu0 0
        %1423 = vmatprep.subr.bf16.mxu0 0
        %1424 = vmatpush1.bf16.xpose.msra.mxu0 0
        %1425 = vmatprep.subr.bf16.mxu0 0
        %1426 = vmatpush1.bf16.xpose.msra.mxu0 0
        %1427 = vmatprep.subr.bf16.mxu0 0
        %1428 = vmatpush1.bf16.xpose.msra.mxu0 0
        %1429 = vmatprep.subr.bf16.mxu0 0
        %1430 = vmatpush1.bf16.xpose.msra.mxu0 0
        %1431 = vmatprep.subr.bf16.mxu0 0
        %1432 = vmatpush1.bf16.xpose.msra.mxu0 0
        %1433 = vmatprep.subr.bf16.mxu0 0
        %1434 = vmatpush1.bf16.xpose.msra.mxu0 0
        %1435 = vmatprep.subr.bf16.mxu0 0
        %1436 = vmatpush1.bf16.xpose.msra.mxu0 0
        %1437 = vmatprep.subr.bf16.mxu0 0
        %1438 = vmatpush1.bf16.xpose.msra.mxu0 0
        %1439 = vmatprep.subr.bf16.mxu0 0
        %1440 = vmatpush1.bf16.xpose.msra.mxu0 0
        %1441 = vmatprep.subr.bf16.mxu0 0
        %1442 = vmatpush1.bf16.xpose.msra.mxu0 0
        %1443 = vmatprep.subr.bf16.mxu0 0
        %1444 = vmatpush1.bf16.xpose.msra.mxu0 0
        %1445 = vmatprep.subr.bf16.mxu0 0
        %1446 = vmatpush1.bf16.xpose.msra.mxu0 0
        %1447 = vmatprep.subr.bf16.mxu0 0
        %1448 = vmatpush1.bf16.xpose.msra.mxu0 0
        %1449 = vmatprep.subr.bf16.mxu0 0
        %1450 = vmatpush1.bf16.xpose.msra.mxu0 0
        %1451 = vmatprep.mubr.bf16.mxu0 0
        %1452 = vmatmul.mubr.bf16.gmra.mrb[0].mxu0 %v1414
        %v1453 = vpop.f32.mrb[0].mxu0
        %v1454 = vadd.f32 0.0, %v1453
        %v1455 = vpop.f32.mrb[0].mxu0
        %v1456 = vpop.f32.mrb[0].mxu0
        %v1457 = vadd.f32 0.0, %v1456
        %v1458 = vpop.f32.mrb[0].mxu0
        %1459 = vdwg.mxu0
        %v1460 = vsel %vm1051, %v1454, -1e+30
        %v1461 = vsel %vm1052, %v1457, -1e+30
        %v1462 = vld [vmem:[#allocation2] sm:$0xff]
        %v1463 = vld [vmem:[#allocation2 + $0x8] sm:$0xff]
        %v1464 = vld [vmem:[#allocation3] sm:$0xff]
        %v1465 = vld [vmem:[#allocation3 + $0x8] sm:$0xff]
        %v1466 = vsel %vm1117, %v1460, -inf
        %1467 = vmax.xlane.f32.xlu0 %v1466
        %v1468 = vpop.xlane.xlu0 %1467
        %v1469 = vsel %vm1117, %v1461, -inf
        %1470 = vmax.xlane.f32.xlu0 %v1469
        %v1471 = vpop.xlane.xlu0 %1470
        %v1472 = vmax.f32 %v1462, %v1468
        %v1473 = vmax.f32 %v1463, %v1471
        %v1474 = vsub.f32 %v1462, %v1472
        %v1475 = vsub.f32 %v1463, %v1473
        %v1476 = vmul.f32 %v1474, 1.442695
        %v1477 = vpow.pop %v1476
        %v1478 = vmul.f32 %v1475, 1.442695
        %v1479 = vpow.pop %v1478
        %1481 = vset.pattern.permute.xlu0 2
        %1482 = vperm.xlu0 %1481, %v1472
        %v1483 = vpop.permute.xlu0 %1482
        %1486 = vset.pattern.permute.xlu0 2
        %1487 = vperm.xlu0 %1486, %v1473
        %v1488 = vpop.permute.xlu0 %1487
        %v1490 = vsub.f32 %v1460, %v1483
        %v1491 = vsub.f32 %v1461, %v1488
        %v1492 = vmul.f32 %v1490, 1.442695
        %v1493 = vpow.pop %v1492
        %v1494 = vmul.f32 %v1491, 1.442695
        %v1495 = vpow.pop %v1494
        %v1496 = vmul.f32 %v1477, %v1464
        %v1497 = vmul.f32 %v1479, %v1465
        %v1498 = vsel %vm1117, %v1493, 0.0
        %1499 = vadd.xlane.f32.xlu0 %v1498
        %v1500 = vpop.xlane.xlu0 %1499
        %v1501 = vsel %vm1117, %v1495, 0.0
        %1502 = vadd.xlane.f32.xlu0 %v1501
        %v1503 = vpop.xlane.xlu0 %1502
        %v1504 = vadd.f32 %v1496, %v1500
        %v1505 = vadd.f32 %v1497, %v1503
        %vm1506 = vcmask 23568
        %1507 = vst.msk [vmem:[#allocation3] sm:$0xff] %vm1506, %v1504
        %1508 = vst.msk [vmem:[#allocation3 + $0x8] sm:$0xff] %vm1506, %v1505
        %v1509 = vld [vmem:[#allocation4] sm:$0xff]
        %v1510 = vld [vmem:[#allocation4 + $0x8] sm:$0xff]
        %1512 = vset.pattern.permute.xlu0 2
        %1513 = vperm.xlu0 %1512, %v1477
        %v1514 = vpop.permute.xlu0 %1513
        %1517 = vset.pattern.permute.xlu0 2
        %1518 = vperm.xlu0 %1517, %v1479
        %v1519 = vpop.permute.xlu0 %1518
        %v1521 = vmul.f32 %v1514, %v1509
        %v1522 = vmul.f32 %v1519, %v1510
        %v1523 = vpack.c.bf16 %v1495, %v1493
        %1524 = vrot.lane.b32.xlu0 %v1180, 112
        %v1525 = vpop.permute.xlu0 %1524
        %v1528 = vsel %vm1117, %v1523, 0
        %1530 = vmatprep.subr.bf16.mxu0 0
        %1531 = vmatpush1.bf16.msra.mxu0 %v1525
        %1532 = vmatprep.subr.bf16.mxu0 0
        %1533 = vmatpush1.bf16.msra.mxu0 0
        %1534 = vmatprep.subr.bf16.mxu0 0
        %1535 = vmatpush1.bf16.msra.mxu0 0
        %1536 = vmatprep.subr.bf16.mxu0 0
        %1537 = vmatpush1.bf16.msra.mxu0 0
        %1538 = vmatprep.subr.bf16.mxu0 0
        %1539 = vmatpush1.bf16.msra.mxu0 0
        %1540 = vmatprep.subr.bf16.mxu0 0
        %1541 = vmatpush1.bf16.msra.mxu0 0
        %1542 = vmatprep.subr.bf16.mxu0 0
        %1543 = vmatpush1.bf16.msra.mxu0 0
        %1544 = vmatprep.subr.bf16.mxu0 0
        %1545 = vmatpush1.bf16.msra.mxu0 0
        %1546 = vmatprep.subr.bf16.mxu0 0
        %1547 = vmatpush1.bf16.msra.mxu0 0
        %1548 = vmatprep.subr.bf16.mxu0 0
        %1549 = vmatpush1.bf16.msra.mxu0 0
        %1550 = vmatprep.subr.bf16.mxu0 0
        %1551 = vmatpush1.bf16.msra.mxu0 0
        %1552 = vmatprep.subr.bf16.mxu0 0
        %1553 = vmatpush1.bf16.msra.mxu0 0
        %1554 = vmatprep.subr.bf16.mxu0 0
        %1555 = vmatpush1.bf16.msra.mxu0 0
        %1556 = vmatprep.subr.bf16.mxu0 0
        %1557 = vmatpush1.bf16.msra.mxu0 0
        %1558 = vmatprep.subr.bf16.mxu0 0
        %1559 = vmatpush1.bf16.msra.mxu0 0
        %1560 = vmatprep.subr.bf16.mxu0 0
        %1561 = vmatpush1.bf16.msra.mxu0 0
        %1562 = vmatprep.mubr.bf16.mxu0 0
        %1563 = vmatmul.mubr.bf16.gmra.mrb[0].mxu0 %v1528
        %v1564 = vpop.f32.mrb[0].mxu0
        %v1565 = vadd.f32 0.0, %v1564
        %v1566 = vpop.f32.mrb[0].mxu0
        %v1567 = vpop.f32.mrb[0].mxu0
        %v1568 = vadd.f32 0.0, %v1567
        %v1569 = vpop.f32.mrb[0].mxu0
        %1570 = vdwg.mxu0
        %1573 = vrot.lane.b32.xlu0 %v1565, 16
        %v1574 = vpop.permute.xlu0 %1573
        %1575 = vrot.lane.b32.xlu0 %v1568, 16
        %v1576 = vpop.permute.xlu0 %1575
        %v1579 = vadd.f32 %v1521, %v1574
        %v1580 = vadd.f32 %v1522, %v1576
        %vm1581 = vcmask 195712
        %1582 = vst.msk [vmem:[#allocation4] sm:$0xff] %vm1581, %v1579
        %1583 = vst.msk [vmem:[#allocation4 + $0x8] sm:$0xff] %vm1581, %v1580
        %1584 = vst.msk [vmem:[#allocation2] sm:$0xff] %vm1506, %v1472
        %1585 = vst.msk [vmem:[#allocation2 + $0x8] sm:$0xff] %vm1506, %v1473
        %1586 = vrot.lane.b32.xlu0 %v1057, 104
        %v1587 = vpop.permute.xlu0 %1586
        %1588 = vrot.lane.b32.xlu0 %v1062, 104
        %v1589 = vpop.permute.xlu0 %1588
        %v1591 = vsel %vm1063, %v1587, 0
        %v1594 = vsel %vm1063, %v1589, 0
        %1596 = vmatprep.subr.bf16.mxu0 0
        %1597 = vmatpush1.bf16.xpose.msra.mxu0 %v1594
        %1598 = vmatprep.subr.bf16.mxu0 0
        %1599 = vmatpush1.bf16.xpose.msra.mxu0 0
        %1600 = vmatprep.subr.bf16.mxu0 0
        %1601 = vmatpush1.bf16.xpose.msra.mxu0 0
        %1602 = vmatprep.subr.bf16.mxu0 0
        %1603 = vmatpush1.bf16.xpose.msra.mxu0 0
        %1604 = vmatprep.subr.bf16.mxu0 0
        %1605 = vmatpush1.bf16.xpose.msra.mxu0 0
        %1606 = vmatprep.subr.bf16.mxu0 0
        %1607 = vmatpush1.bf16.xpose.msra.mxu0 0
        %1608 = vmatprep.subr.bf16.mxu0 0
        %1609 = vmatpush1.bf16.xpose.msra.mxu0 0
        %1610 = vmatprep.subr.bf16.mxu0 0
        %1611 = vmatpush1.bf16.xpose.msra.mxu0 0
        %1612 = vmatprep.subr.bf16.mxu0 0
        %1613 = vmatpush1.bf16.xpose.msra.mxu0 0
        %1614 = vmatprep.subr.bf16.mxu0 0
        %1615 = vmatpush1.bf16.xpose.msra.mxu0 0
        %1616 = vmatprep.subr.bf16.mxu0 0
        %1617 = vmatpush1.bf16.xpose.msra.mxu0 0
        %1618 = vmatprep.subr.bf16.mxu0 0
        %1619 = vmatpush1.bf16.xpose.msra.mxu0 0
        %1620 = vmatprep.subr.bf16.mxu0 0
        %1621 = vmatpush1.bf16.xpose.msra.mxu0 0
        %1622 = vmatprep.subr.bf16.mxu0 0
        %1623 = vmatpush1.bf16.xpose.msra.mxu0 0
        %1624 = vmatprep.subr.bf16.mxu0 0
        %1625 = vmatpush1.bf16.xpose.msra.mxu0 0
        %1626 = vmatprep.subr.bf16.mxu0 0
        %1627 = vmatpush1.bf16.xpose.msra.mxu0 0
        %1628 = vmatprep.mubr.bf16.mxu0 0
        %1629 = vmatmul.mubr.bf16.gmra.mrb[0].mxu0 %v1591
        %v1630 = vpop.f32.mrb[0].mxu0
        %v1631 = vadd.f32 0.0, %v1630
        %v1632 = vpop.f32.mrb[0].mxu0
        %v1633 = vpop.f32.mrb[0].mxu0
        %v1634 = vadd.f32 0.0, %v1633
        %v1635 = vpop.f32.mrb[0].mxu0
        %1636 = vdwg.mxu0
        %v1637 = vsel %vm1051, %v1631, -1e+30
        %v1638 = vsel %vm1052, %v1634, -1e+30
        %v1639 = vld [vmem:[#allocation2] sm:$0xff]
        %v1640 = vld [vmem:[#allocation2 + $0x8] sm:$0xff]
        %v1641 = vld [vmem:[#allocation3] sm:$0xff]
        %v1642 = vld [vmem:[#allocation3 + $0x8] sm:$0xff]
        %v1643 = vsel %vm1117, %v1637, -inf
        %1644 = vmax.xlane.f32.xlu0 %v1643
        %v1645 = vpop.xlane.xlu0 %1644
        %v1646 = vsel %vm1117, %v1638, -inf
        %1647 = vmax.xlane.f32.xlu0 %v1646
        %v1648 = vpop.xlane.xlu0 %1647
        %v1649 = vmax.f32 %v1639, %v1645
        %v1650 = vmax.f32 %v1640, %v1648
        %v1651 = vsub.f32 %v1639, %v1649
        %v1652 = vsub.f32 %v1640, %v1650
        %v1653 = vmul.f32 %v1651, 1.442695
        %v1654 = vpow.pop %v1653
        %v1655 = vmul.f32 %v1652, 1.442695
        %v1656 = vpow.pop %v1655
        %1658 = vset.pattern.permute.xlu0 3
        %1659 = vperm.xlu0 %1658, %v1649
        %v1660 = vpop.permute.xlu0 %1659
        %1663 = vset.pattern.permute.xlu0 3
        %1664 = vperm.xlu0 %1663, %v1650
        %v1665 = vpop.permute.xlu0 %1664
        %v1667 = vsub.f32 %v1637, %v1660
        %v1668 = vsub.f32 %v1638, %v1665
        %v1669 = vmul.f32 %v1667, 1.442695
        %v1670 = vpow.pop %v1669
        %v1671 = vmul.f32 %v1668, 1.442695
        %v1672 = vpow.pop %v1671
        %v1673 = vmul.f32 %v1654, %v1641
        %v1674 = vmul.f32 %v1656, %v1642
        %v1675 = vsel %vm1117, %v1670, 0.0
        %1676 = vadd.xlane.f32.xlu0 %v1675
        %v1677 = vpop.xlane.xlu0 %1676
        %v1678 = vsel %vm1117, %v1672, 0.0
        %1679 = vadd.xlane.f32.xlu0 %v1678
        %v1680 = vpop.xlane.xlu0 %1679
        %v1681 = vadd.f32 %v1673, %v1677
        %v1682 = vadd.f32 %v1674, %v1680
        %vm1683 = vcmask 31768
        %1684 = vst.msk [vmem:[#allocation3] sm:$0xff] %vm1683, %v1681
        %1685 = vst.msk [vmem:[#allocation3 + $0x8] sm:$0xff] %vm1683, %v1682
        %v1686 = vld [vmem:[#allocation4] sm:$0xff]
        %v1687 = vld [vmem:[#allocation4 + $0x8] sm:$0xff]
        %1689 = vset.pattern.permute.xlu0 3
        %1690 = vperm.xlu0 %1689, %v1654
        %v1691 = vpop.permute.xlu0 %1690
        %1694 = vset.pattern.permute.xlu0 3
        %1695 = vperm.xlu0 %1694, %v1656
        %v1696 = vpop.permute.xlu0 %1695
        %v1698 = vmul.f32 %v1691, %v1686
        %v1699 = vmul.f32 %v1696, %v1687
        %v1700 = vpack.c.bf16 %v1672, %v1670
        %1701 = vrot.lane.b32.xlu0 %v1180, 104
        %v1702 = vpop.permute.xlu0 %1701
        %v1705 = vsel %vm1117, %v1700, 0
        %1707 = vmatprep.subr.bf16.mxu0 0
        %1708 = vmatpush1.bf16.msra.mxu0 %v1702
        %1709 = vmatprep.subr.bf16.mxu0 0
        %1710 = vmatpush1.bf16.msra.mxu0 0
        %1711 = vmatprep.subr.bf16.mxu0 0
        %1712 = vmatpush1.bf16.msra.mxu0 0
        %1713 = vmatprep.subr.bf16.mxu0 0
        %1714 = vmatpush1.bf16.msra.mxu0 0
        %1715 = vmatprep.subr.bf16.mxu0 0
        %1716 = vmatpush1.bf16.msra.mxu0 0
        %1717 = vmatprep.subr.bf16.mxu0 0
        %1718 = vmatpush1.bf16.msra.mxu0 0
        %1719 = vmatprep.subr.bf16.mxu0 0
        %1720 = vmatpush1.bf16.msra.mxu0 0
        %1721 = vmatprep.subr.bf16.mxu0 0
        %1722 = vmatpush1.bf16.msra.mxu0 0
        %1723 = vmatprep.subr.bf16.mxu0 0
        %1724 = vmatpush1.bf16.msra.mxu0 0
        %1725 = vmatprep.subr.bf16.mxu0 0
        %1726 = vmatpush1.bf16.msra.mxu0 0
        %1727 = vmatprep.subr.bf16.mxu0 0
        %1728 = vmatpush1.bf16.msra.mxu0 0
        %1729 = vmatprep.subr.bf16.mxu0 0
        %1730 = vmatpush1.bf16.msra.mxu0 0
        %1731 = vmatprep.subr.bf16.mxu0 0
        %1732 = vmatpush1.bf16.msra.mxu0 0
        %1733 = vmatprep.subr.bf16.mxu0 0
        %1734 = vmatpush1.bf16.msra.mxu0 0
        %1735 = vmatprep.subr.bf16.mxu0 0
        %1736 = vmatpush1.bf16.msra.mxu0 0
        %1737 = vmatprep.subr.bf16.mxu0 0
        %1738 = vmatpush1.bf16.msra.mxu0 0
        %1739 = vmatprep.mubr.bf16.mxu0 0
        %1740 = vmatmul.mubr.bf16.gmra.mrb[0].mxu0 %v1705
        %v1741 = vpop.f32.mrb[0].mxu0
        %v1742 = vadd.f32 0.0, %v1741
        %v1743 = vpop.f32.mrb[0].mxu0
        %v1744 = vpop.f32.mrb[0].mxu0
        %v1745 = vadd.f32 0.0, %v1744
        %v1746 = vpop.f32.mrb[0].mxu0
        %1747 = vdwg.mxu0
        %1750 = vrot.lane.b32.xlu0 %v1742, 24
        %v1751 = vpop.permute.xlu0 %1750
        %1752 = vrot.lane.b32.xlu0 %v1745, 24
        %v1753 = vpop.permute.xlu0 %1752
        %v1756 = vadd.f32 %v1698, %v1751
        %v1757 = vadd.f32 %v1699, %v1753
        %vm1758 = vcmask 261312
        %1759 = vst.msk [vmem:[#allocation4] sm:$0xff] %vm1758, %v1756
        %1760 = vst.msk [vmem:[#allocation4 + $0x8] sm:$0xff] %vm1758, %v1757
        %1761 = vst.msk [vmem:[#allocation2] sm:$0xff] %vm1683, %v1649
        %1762 = vst.msk [vmem:[#allocation2 + $0x8] sm:$0xff] %vm1683, %v1650
        %v1763 = vld [vmem:[#allocation3] sm:$0xff]
        %v1764 = vld [vmem:[#allocation3 + $0x8] sm:$0xff]
        %v1765 = vrcp.pop %v1763
        %v1766 = vmul.f32 1.0, %v1765
        %v1767 = vrcp.pop %v1764
        %v1768 = vmul.f32 1.0, %v1767
        %v1769 = vld [vmem:[#allocation4] sm:$0xff]
        %v1770 = vld [vmem:[#allocation4 + $0x8] sm:$0xff]
        %1772 = vset.pattern.permute.xlu0 0
        %1773 = vperm.xlu0 %1772, %v1766
        %v1774 = vpop.permute.xlu0 %1773
        %1777 = vset.pattern.permute.xlu0 0
        %1778 = vperm.xlu0 %1777, %v1768
        %v1779 = vpop.permute.xlu0 %1778
        %v1781 = vmul.f32 %v1769, %v1774
        %v1782 = vmul.f32 %v1770, %v1779
        %1783 = vst.msk [vmem:[#allocation4] sm:$0xff] %vm1063, %v1781
        %1784 = vst.msk [vmem:[#allocation4 + $0x8] sm:$0xff] %vm1063, %v1782
        %v1785 = vld [vmem:[#allocation4] sm:$0xff]
        %v1786 = vld [vmem:[#allocation4 + $0x8] sm:$0xff]
        %1787 = vset.pattern.permute.xlu0 1
        %1788 = vperm.xlu0 %1787, %v1766
        %v1789 = vpop.permute.xlu0 %1788
        %1791 = vset.pattern.permute.xlu0 1
        %1792 = vperm.xlu0 %1791, %v1768
        %v1793 = vpop.permute.xlu0 %1792
        %v1795 = vmul.f32 %v1785, %v1789
        %v1796 = vmul.f32 %v1786, %v1793
        %1797 = vst.msk [vmem:[#allocation4] sm:$0xff] %vm1404, %v1795
        %1798 = vst.msk [vmem:[#allocation4 + $0x8] sm:$0xff] %vm1404, %v1796
        %v1799 = vld [vmem:[#allocation4] sm:$0xff]
        %v1800 = vld [vmem:[#allocation4 + $0x8] sm:$0xff]
        %1801 = vset.pattern.permute.xlu0 2
        %1802 = vperm.xlu0 %1801, %v1766
        %v1803 = vpop.permute.xlu0 %1802
        %1805 = vset.pattern.permute.xlu0 2
        %1806 = vperm.xlu0 %1805, %v1768
        %v1807 = vpop.permute.xlu0 %1806
        %v1809 = vmul.f32 %v1799, %v1803
        %v1810 = vmul.f32 %v1800, %v1807
        %1811 = vst.msk [vmem:[#allocation4] sm:$0xff] %vm1581, %v1809
        %1812 = vst.msk [vmem:[#allocation4 + $0x8] sm:$0xff] %vm1581, %v1810
        %v1813 = vld [vmem:[#allocation4] sm:$0xff]
        %v1814 = vld [vmem:[#allocation4 + $0x8] sm:$0xff]
        %1815 = vset.pattern.permute.xlu0 3
        %1816 = vperm.xlu0 %1815, %v1766
        %v1817 = vpop.permute.xlu0 %1816
        %1819 = vset.pattern.permute.xlu0 3
        %1820 = vperm.xlu0 %1819, %v1768
        %v1821 = vpop.permute.xlu0 %1820
        %v1823 = vmul.f32 %v1813, %v1817
        %v1824 = vmul.f32 %v1814, %v1821
        %1825 = vst.msk [vmem:[#allocation4] sm:$0xff] %vm1758, %v1823
        %1826 = vst.msk [vmem:[#allocation4 + $0x8] sm:$0xff] %vm1758, %v1824
        %v1827 = vld [vmem:[#allocation4] sm:$0xff]
        %v1828 = vld [vmem:[#allocation4 + $0x8] sm:$0xff]
        %v1829 = vpack.c.bf16 %v1828, %v1827
        %v1831 = vunpack.c.l.b16 %v1829
        %v1832 = vunpack.c.h.b16 %v1829
        %v1833 = vpack.c.b16 %v1831, %v1831
        %v1834 = vpack.c.b16 %v1832, %v1832
        %vm1837 = vcmask 257024
        %1838 = vst.msk [vmem:[%s309] sm:$0xf] %vm1837, %v1833
        %1839 = vst.msk [vmem:[%s309 + $0x4] sm:$0xf] %vm1837, %v1834
      $region44: #{causal_self_attention_forward.4} parent=31 // pred_fallthru
        _
      %s1840 = sld [smem:[#allocation6 + %s23]]
      %s1841 = smul.u32 2, %s1840
      %p1842 = scmp.lt.s32.totalorder %s22, 1
      %s1843 = scalar_select %p1842, %s22, 1
      %p1844 = scmp.lt.s32.totalorder %s1841, 1
      %s1845 = scalar_select %p1844, %s1841, 1
      %s1846 = smul.addr %s1843, 2
      %s1847 = sadd.s32 %s1845, %s1846
      %s1848 = smul.addr %s1847, 4
      %s1849 = scalar_lea.vmem %s5, %s1848
      // Predicated region
      $region45: #{causal_self_attention_forward.4} parent=31 // pred_check
        %p1850 = pneg %p142
      $region46: #{causal_self_attention_forward.4} parent=31 // pred_check_branch
        %1852 = sbr.rel (%p1850) target = $region48
      $region47: #{causal_self_attention_forward.4} parent=31 // pred_region
        %s1853 = sld [smem:[#allocation6 + %s23]]
        %s1854 = smul.u32 2, %s1853
      $region48: #{causal_self_attention_forward.4} parent=31 // pred_fallthru
        _
    $region32: #{causal_self_attention_forward.4} parent=5 // pred_fallthru
      _
    %p1855 = scmp.le.s32.totalorder 2, %s13
    // Predicated region
    $region49: #{causal_self_attention_forward.4} parent=5 // pred_check
      %p1856 = pneg %p1855
    $region50: #{causal_self_attention_forward.4} parent=5 // pred_check_branch
      %1858 = sbr.rel (%p1856) target = $region52
    $region51: #{causal_self_attention_forward.4} parent=5 // pred_region
      %s1859 = ssub.s32 %s13, 2
      // Predicated region
      $region53: #{causal_self_attention_forward.4} parent=51 // pred_check
        %p1860 = pneg %p148
      $region54: #{causal_self_attention_forward.4} parent=51 // pred_check_branch
        %1862 = sbr.rel (%p1860) target = $region56
      $region55: #{causal_self_attention_forward.4} parent=51 // pred_region
        %s1863 = sld [smem:[#allocation6 + %s25]]
        %s1864 = smul.u32 2, %s1863
        %p1865 = scmp.lt.s32.totalorder %s24, 1
        %s1866 = scalar_select %p1865, %s24, 1
        %p1867 = scmp.lt.s32.totalorder %s1864, 1
        %s1868 = scalar_select %p1867, %s1864, 1
        %s1869 = smul.addr %s1866, 2
        %s1870 = sadd.s32 %s1868, %s1869
        %s1871 = smul.addr %s1870, 4
        %s1872 = scalar_lea.vmem %s5, %s1871
      $region56: #{causal_self_attention_forward.4} parent=51 // pred_fallthru
        _
    $region52: #{causal_self_attention_forward.4} parent=5 // pred_fallthru
      _
  $region6: #{causal_self_attention_forward.4} parent=0 // loop_footer
    %s17 = sadd.s32 1, %s13
  $region7: #{causal_self_attention_forward.4} parent=0 // loop_footer_branch
    %12 = sbr.rel target = $region3
  $region8: #{causal_self_attention_forward.4} parent=0 // loop_exit
    _

</llo_original>
